<compile_context>
chip_gen: v5e
topology: v5e:2x2
jax: 0.10.0
libtpu: 0.0.40
codegen_flags: <defaults>
</compile_context>

<pallas_src>
import numpy as np
import jax
import jax.numpy as jnp
from jax.experimental import pallas as pl
from jax.experimental.pallas import tpu as pltpu

# ---- model hyper-parameters (small, consistent with DeepAugmentedMUSIC.__init__) ----
N = 4            # number of sensors
T = 10           # number of observations (snapshots)
M = 2            # number of sources
B = 2            # batch size
H = 2 * N        # GRU hidden size == input size (= 2N)
A = 361          # number of angles in the MUSIC spectrum grid
A_PAD = 384      # angle axis padded to 3*128 lanes (lane-dense layout)
EPS = 1e-5       # BatchNorm1d eps
TB = T * B       # flattened (time, batch) rows fed to the GRU kernel


# ============ Pallas kernel 1: BatchNorm1d(T) + GRU (batch_first) + fc ============
def gru_fc_kernel(x_ref, bn_ref, wb_ref, rx_ref):
    X = x_ref[...]                                   # (T*B, 2N), row index = t*B + b

    # --- BatchNorm1d(num_features=T), training-mode (biased) batch statistics.
    # Per-time-step stats over (batch, feature) via a constant group-averaging matmul
    # (keeps everything 2-D inside the kernel: no 3-D reshapes / relayouts).
    Pn = bn_ref[:, 0:TB]                             # (TB, TB) block-diag ones / (B*2N)
    gamma = bn_ref[:, TB:TB + 1]                     # (TB, 1) affine gamma per row
    beta = bn_ref[:, TB + 1:TB + 2]                  # (TB, 1) affine beta per row
    mean = jnp.sum(jnp.dot(Pn, X, preferred_element_type=jnp.float32),
                   axis=1, keepdims=True)            # (TB, 1) per-time mean
    d = X - mean
    var = jnp.sum(jnp.dot(Pn, d * d, preferred_element_type=jnp.float32),
                  axis=1, keepdims=True)             # (TB, 1) per-time biased variance
    Xn = d * (gamma * jax.lax.rsqrt(var + EPS)) + beta

    # --- packed GRU / fc parameters (single VMEM block) ---
    WihT = wb_ref[0:H, 0:3 * H]                      # (2N, 3H)  pre-transposed
    WhhT = wb_ref[0:H, 3 * H:6 * H]                  # (H, 3H)   pre-transposed
    fcWT = wb_ref[0:H, 6 * H:6 * H + H * N]          # (H, H*N)  pre-transposed
    bih = wb_ref[H:H + 1, 0:3 * H]                   # (1, 3H)
    bhh = wb_ref[H + 1:H + 2, 0:3 * H]               # (1, 3H)
    fcb = wb_ref[H + 2:H + 3, 0:H * N]               # (1, H*N)

    # --- ONE fused input projection for all T steps (off the recurrent critical path) ---
    gi_all = jnp.dot(Xn, WihT, preferred_element_type=jnp.float32) + bih   # (T*B, 3H)

    # --- GRU recurrence (PyTorch gate order r, z, n); gh computed on the VPU as
    # K=H broadcast multiply-adds instead of a serial per-step MXU round trip.
    h = jnp.zeros((B, H), dtype=jnp.float32)
    for t in range(T):                               # static, tiny trip count (unrolled)
        gi = gi_all[t * B:(t + 1) * B, :]            # (B, 3H) static slice
        gh = bhh                                     # (1, 3H), broadcasts to (B, 3H)
        for k in range(H):
            gh = gh + h[:, k:k + 1] * WhhT[k:k + 1, :]
        r = jax.nn.sigmoid(gi[:, 0:H] + gh[:, 0:H])
        z = jax.nn.sigmoid(gi[:, H:2 * H] + gh[:, H:2 * H])
        n = jnp.tanh(gi[:, 2 * H:3 * H] + r * gh[:, 2 * H:3 * H])
        h = (1.0 - z) * n + z * h

    # fc: Linear(H, H*N) on the last GRU output -> Rx (B, 2*N*N)
    rx_ref[...] = jnp.dot(h, fcWT, preferred_element_type=jnp.float32) + fcb


def run_gru_fc(x_flat, bn_pack, wb_pack):
    return pl.pallas_call(
        gru_fc_kernel,
        out_shape=jax.ShapeDtypeStruct((B, 2 * N * N), jnp.float32),
        in_specs=[pl.BlockSpec(memory_space=pltpu.MemorySpace.VMEM)] * 3,
        out_specs=pl.BlockSpec(memory_space=pltpu.MemorySpace.VMEM),
    )(x_flat, bn_pack, wb_pack)


# ====== Pallas kernel 2: MUSIC spectrum (lane-dense over angles) + fc1/fc2/fc2/fc3 ======
def spectrum_head_kernel(p_ref, g_ref, w1t_ref, head_ref, out_ref):
    # p_ref: (B, 2*N*N)    packed [vec(Pr) | vec(Pi)] of Un @ Un^H
    # g_ref: (2*N*N, A_PAD) packed [Gr^T ; Gi^T] quadratic-form constants
    # spec_eq[b, a] = Re(sv_a^H (Un Un^H)_b sv_a), angle axis on the 128-lane axis.
    spec_eq = jnp.dot(p_ref[...], g_ref[...], preferred_element_type=jnp.float32)  # (B, A_PAD)
    col = jax.lax.broadcasted_iota(jnp.int32, spec_eq.shape, 1)
    spec_eq = jnp.where(col < A, spec_eq, 1.0)       # keep padded lanes finite
    spec = pl.reciprocal(spec_eq, approx=False)      # exact 1/x (parity with torch)

    W2T = head_ref[0:H, 0:H]                         # (H, H)
    W3T = head_ref[0:H, H:H + M]                     # (H, M)
    b1 = head_ref[H:H + 1, 0:H]                      # (1, H)
    b2 = head_ref[H + 1:H + 2, 0:H]                  # (1, H)
    b3 = head_ref[H + 2:H + 3, 0:M]                  # (1, M)

    # fc1: plain (B, A_PAD) @ (A_PAD, H) MXU matmul; padded rows of W1T are zero.
    y = jnp.maximum(jnp.dot(spec, w1t_ref[...], preferred_element_type=jnp.float32) + b1, 0.0)
    y = jnp.maximum(jnp.dot(y, W2T, preferred_element_type=jnp.float32) + b2, 0.0)
    # fc2 is applied twice, exactly as in the reference forward().
    y = jnp.maximum(jnp.dot(y, W2T, preferred_element_type=jnp.float32) + b2, 0.0)
    out_ref[...] = jnp.dot(y, W3T, preferred_element_type=jnp.float32) + b3   # (B, M)


def run_spectrum_head(p_pack, G, W1T, head_pack):
    return pl.pallas_call(
        spectrum_head_kernel,
        out_shape=jax.ShapeDtypeStruct((B, M), jnp.float32),
        in_specs=[pl.BlockSpec(memory_space=pltpu.MemorySpace.VMEM)] * 4,
        out_specs=pl.BlockSpec(memory_space=pltpu.MemorySpace.VMEM),
    )(p_pack, G, W1T, head_pack)


# =================== host callback: batched general complex eigendecomposition ===================
def _host_noise_projection(rx):
    # TODO(synk): torch.linalg.eig (general complex eigendecomposition) has no Pallas/TPU
    # equivalent; it runs on the host as ONE batched LAPACK call inside jax.pure_callback
    # (single dispatch per forward, no Python-level sync, no per-batch loop).
    rx = np.asarray(rx)
    bsz = rx.shape[0]
    Kr = rx[:, :N * N].reshape(bsz, N, N)
    Ki = rx[:, N * N:].reshape(bsz, N, N)
    Kx = (Kr + 1j * Ki).astype(np.complex64)          # complex64, like torch.linalg.eig
    _, V = np.linalg.eig(Kx)                          # batched; unsorted columns, as in reference
    Un = V[:, :, M:]                                  # noise subspace (bsz, N, N-M)
    P = np.einsum("bij,bkj->bik", Un, np.conj(Un))    # Un @ Un^H (vectorized over batch)
    out = np.concatenate([P.real.reshape(bsz, -1), P.imag.reshape(bsz, -1)], axis=1)
    return np.ascontiguousarray(out, dtype=np.float32)


# =============================== parameter setup ===============================
def xavier_uniform(key, shape):
    fan_out, fan_in = shape
    bound = float(np.sqrt(6.0 / (fan_in + fan_out)))
    return jax.random.uniform(key, shape, jnp.float32, -bound, bound)


def uniform_pm(key, shape, bound):
    return jax.random.uniform(key, shape, jnp.float32, -bound, bound)


def make_params(key):
    ks = jax.random.split(key, 12)
    k_gru = 1.0 / np.sqrt(H)
    p = {}
    # GRU weights/biases (PyTorch gate order: r, z, n)
    p["Wih"] = uniform_pm(ks[0], (3 * H, 2 * N), k_gru)
    p["Whh"] = uniform_pm(ks[1], (3 * H, H), k_gru)
    p["bih"] = uniform_pm(ks[2], (3 * H,), k_gru)
    p["bhh"] = uniform_pm(ks[3], (3 * H,), k_gru)
    # fc: Linear(H, H*N) with xavier_uniform weight
    p["fcW"] = xavier_uniform(ks[4], (H * N, H))
    p["fcb"] = uniform_pm(ks[5], (H * N,), 1.0 / np.sqrt(H))
    # fc1: Linear(A, H), fc2: Linear(H, H), fc3: Linear(H, M)
    p["W1"] = xavier_uniform(ks[6], (H, A))
    p["b1"] = uniform_pm(ks[7], (H,), 1.0 / np.sqrt(A))
    p["W2"] = xavier_uniform(ks[8], (H, H))
    p["b2"] = uniform_pm(ks[9], (H,), 1.0 / np.sqrt(H))
    p["W3"] = xavier_uniform(ks[10], (M, H))
    p["b3"] = uniform_pm(ks[11], (M,), 1.0 / np.sqrt(H))
    return p


def prepare_kernel_params(p):
    """One-time layout prep: pack / pre-transpose / pad everything so the jitted
    forward does no per-call layout work and each kernel takes only a few inputs."""
    kp = {}

    # --- kernel 1: BN group-averaging matrix + affine rows, packed (T*B, T*B + 2) ---
    grp = np.repeat(np.arange(T), B)                       # row -> time index
    Pn = (grp[:, None] == grp[None, :]).astype(np.float32) / float(B * 2 * N)
    bn = np.zeros((TB, TB + 2), np.float32)
    bn[:, :TB] = Pn
    bn[:, TB] = np.repeat(np.ones(T, np.float32), B)       # BatchNorm1d default gamma = 1
    bn[:, TB + 1] = np.repeat(np.zeros(T, np.float32), B)  # beta = 0
    kp["bn_pack"] = jnp.asarray(bn)

    # --- kernel 1: GRU + fc weights/biases packed into one (H+3, 6H + H*N) block ---
    wb = np.zeros((H + 3, 6 * H + H * N), np.float32)
    wb[0:H, 0:3 * H] = np.asarray(p["Wih"]).T              # WihT (2N, 3H)
    wb[0:H, 3 * H:6 * H] = np.asarray(p["Whh"]).T          # WhhT (H, 3H)
    wb[0:H, 6 * H:6 * H + H * N] = np.asarray(p["fcW"]).T  # fcWT (H, H*N)
    wb[H, 0:3 * H] = np.asarray(p["bih"])
    wb[H + 1, 0:3 * H] = np.asarray(p["bhh"])
    wb[H + 2, 0:H * N] = np.asarray(p["fcb"])
    kp["wb_pack"] = jnp.asarray(wb)

    # --- kernel 2: quadratic-form constants, lane-dense over angles ---
    # sv[a, n] = exp(-1j * pi * n * sin(theta_a)).  With P = Pr + i*Pi:
    #   Re(sv^H P sv) = sum_pq Pr[p,q]*(Ar_p Ar_q + Ai_p Ai_q)
    #                 + sum_pq Pi[p,q]*(Ai_p Ar_q - Ar_p Ai_q)
    angles = np.linspace(-np.pi / 2, np.pi / 2, A)
    n_idx = np.arange(N, dtype=np.float64)
    phase = np.pi * np.outer(np.sin(angles), n_idx)        # (A, N)
    Ar = np.cos(phase)
    Ai = -np.sin(phase)
    GrT = (np.einsum("ap,aq->pqa", Ar, Ar) + np.einsum("ap,aq->pqa", Ai, Ai)).reshape(N * N, A)
    GiT = (np.einsum("ap,aq->pqa", Ai, Ar) - np.einsum("ap,aq->pqa", Ar, Ai)).reshape(N * N, A)
    G = np.zeros((2 * N * N, A_PAD), np.float32)
    G[:N * N, :A] = GrT
    G[N * N:, :A] = GiT
    kp["G"] = jnp.asarray(G)

    # fc1 weight pre-transposed to (A_PAD, H) at setup; padded rows stay zero.
    W1T = np.zeros((A_PAD, H), np.float32)
    W1T[:A, :] = np.asarray(p["W1"]).T
    kp["W1T"] = jnp.asarray(W1T)

    # --- kernel 2: fc2/fc3 weights + all head biases packed into one (H+3, H+M) block ---
    head = np.zeros((H + 3, H + M), np.float32)
    head[0:H, 0:H] = np.asarray(p["W2"]).T                 # W2T
    head[0:H, H:H + M] = np.asarray(p["W3"]).T             # W3T
    head[H, 0:H] = np.asarray(p["b1"])
    head[H + 1, 0:H] = np.asarray(p["b2"])
    head[H + 2, 0:M] = np.asarray(p["b3"])
    kp["head_pack"] = jnp.asarray(head)
    return kp


# ================================ full forward ================================
@jax.jit
def deep_augmented_music_forward(X, kp):
    """X: complex64 array of shape (B, N, T). Returns DOA of shape (B, M).
    Entire forward is ONE jitted graph: kernel 1 -> batched host eig -> kernel 2."""
    Xr = jnp.real(X).astype(jnp.float32)
    Xi = jnp.imag(X).astype(jnp.float32)
    # torch.cat((real, imag), dim=1) -> (B, 2N, T); the subsequent .view(B, T, 2N) is a
    # raw memory reinterpretation (NOT a transpose) -- reproduced with jnp.reshape.
    Xcat = jnp.concatenate([Xr, Xi], axis=1)               # (B, 2N, T)
    x_btf = jnp.reshape(Xcat, (B, T, 2 * N))               # raw view semantics
    x_flat = jnp.reshape(jnp.transpose(x_btf, (1, 0, 2)), (TB, 2 * N))   # row = t*B + b

    # kernel 1: BatchNorm1d(T) + GRU + fc  -> Rx (B, 2*N*N)
    rx = run_gru_fc(x_flat, kp["bn_pack"], kp["wb_pack"])

    # host eig (no Pallas/TPU equivalent) stays inside the graph via pure_callback;
    # returns packed [vec(Re(Un Un^H)) | vec(Im(Un Un^H))] per batch element.
    p_pack = jax.pure_callback(
        _host_noise_projection,
        jax.ShapeDtypeStruct((B, 2 * N * N), jnp.float32),
        rx)

    # kernel 2: MUSIC spectrum + fc1/ReLU + fc2/ReLU + fc2/ReLU + fc3 -> (B, M)
    return run_spectrum_head(p_pack, kp["G"], kp["W1T"], kp["head_pack"])


if __name__ == "__main__":
    key = jax.random.PRNGKey(0)
    k_params, k_real, k_imag = jax.random.split(key, 3)
    kp = prepare_kernel_params(make_params(k_params))

    Xr = jax.random.normal(k_real, (B, N, T), dtype=jnp.float32)
    Xi = jax.random.normal(k_imag, (B, N, T), dtype=jnp.float32)
    X = (Xr + 1j * Xi).astype(jnp.complex64)

    doa = deep_augmented_music_forward(X, kp)
    doa = jax.block_until_ready(doa)
    assert doa.shape == (B, M) and doa.dtype == jnp.float32
    print("KERNEL_OK")
</pallas_src>

<mosaic_0001>
module attributes {stable_mosaic.version = 11 : i64} {
  func.func @spectrum_head_kernel(%arg0: memref<2x32xf32, #tpu.memory_space<vmem>>, %arg1: memref<32x384xf32, #tpu.memory_space<vmem>>, %arg2: memref<384x8xf32, #tpu.memory_space<vmem>>, %arg3: memref<11x10xf32, #tpu.memory_space<vmem>>, %arg4: memref<2x2xf32, #tpu.memory_space<vmem>>) attributes {dimension_semantics = [], scalar_prefetch = 0 : i64, scratch_operands = 0 : i64, tpu.core_type = #tpu.core_type<tc>} {
    %c0 = arith.constant 0 : index
    %c0_0 = arith.constant 0 : index
    %0 = vector.load %arg0[%c0, %c0_0] : memref<2x32xf32, #tpu.memory_space<vmem>>, vector<2x32xf32>
    %c0_1 = arith.constant 0 : index
    %c0_2 = arith.constant 0 : index
    %1 = vector.load %arg1[%c0_1, %c0_2] : memref<32x384xf32, #tpu.memory_space<vmem>>, vector<32x384xf32>
    %cst = arith.constant dense<0.000000e+00> : vector<2x384xf32>
    %2 = tpu.matmul %0, %1, %cst {dimension_numbers = #tpu.dot_dimension_numbers<[1], [0], [0], [1], [0, 0, 1, 1], [], []>} : vector<2x32xf32>, vector<32x384xf32>, vector<2x384xf32> -> vector<2x384xf32>
    %3 = tpu.iota {dimensions = array<i32: 1>} : vector<2x384xi32>
    %c361_i32 = arith.constant 361 : i32
    %4 = vector.broadcast %c361_i32 : i32 to vector<2x384xi32>
    %5 = arith.cmpi slt, %3, %4 : vector<2x384xi32>
    %cst_3 = arith.constant 1.000000e+00 : f32
    %6 = vector.broadcast %cst_3 : f32 to vector<2x384xf32>
    %7 = arith.select %5, %2, %6 : vector<2x384xi1>, vector<2x384xf32>
    %8 = tpu.reciprocal %7 : vector<2x384xf32> -> vector<2x384xf32>
    %c0_4 = arith.constant 0 : index
    %c0_5 = arith.constant 0 : index
    %9 = vector.load %arg3[%c0_4, %c0_5] : memref<11x10xf32, #tpu.memory_space<vmem>>, vector<8x8xf32>
    %c0_6 = arith.constant 0 : index
    %c8 = arith.constant 8 : index
    %10 = vector.load %arg3[%c0_6, %c8] : memref<11x10xf32, #tpu.memory_space<vmem>>, vector<8x2xf32>
    %c8_7 = arith.constant 8 : index
    %c0_8 = arith.constant 0 : index
    %11 = vector.load %arg3[%c8_7, %c0_8] : memref<11x10xf32, #tpu.memory_space<vmem>>, vector<1x8xf32>
    %c9 = arith.constant 9 : index
    %c0_9 = arith.constant 0 : index
    %12 = vector.load %arg3[%c9, %c0_9] : memref<11x10xf32, #tpu.memory_space<vmem>>, vector<1x8xf32>
    %c10 = arith.constant 10 : index
    %c0_10 = arith.constant 0 : index
    %13 = vector.load %arg3[%c10, %c0_10] : memref<11x10xf32, #tpu.memory_space<vmem>>, vector<1x2xf32>
    %c0_11 = arith.constant 0 : index
    %c0_12 = arith.constant 0 : index
    %14 = vector.load %arg2[%c0_11, %c0_12] : memref<384x8xf32, #tpu.memory_space<vmem>>, vector<384x8xf32>
    %cst_13 = arith.constant dense<0.000000e+00> : vector<2x8xf32>
    %15 = tpu.matmul %8, %14, %cst_13 {dimension_numbers = #tpu.dot_dimension_numbers<[1], [0], [0], [1], [0, 0, 1, 1], [], []>} : vector<2x384xf32>, vector<384x8xf32>, vector<2x8xf32> -> vector<2x8xf32>
    %16 = vector.broadcast %11 : vector<1x8xf32> to vector<2x8xf32>
    %17 = arith.addf %15, %16 : vector<2x8xf32>
    %cst_14 = arith.constant 0.000000e+00 : f32
    %18 = vector.broadcast %cst_14 : f32 to vector<2x8xf32>
    %19 = arith.maximumf %17, %18 : vector<2x8xf32>
    %cst_15 = arith.constant dense<0.000000e+00> : vector<2x8xf32>
    %20 = tpu.matmul %19, %9, %cst_15 {dimension_numbers = #tpu.dot_dimension_numbers<[1], [0], [0], [1], [0, 0, 1, 1], [], []>} : vector<2x8xf32>, vector<8x8xf32>, vector<2x8xf32> -> vector<2x8xf32>
    %21 = vector.broadcast %12 : vector<1x8xf32> to vector<2x8xf32>
    %22 = arith.addf %20, %21 : vector<2x8xf32>
    %cst_16 = arith.constant 0.000000e+00 : f32
    %23 = vector.broadcast %cst_16 : f32 to vector<2x8xf32>
    %24 = arith.maximumf %22, %23 : vector<2x8xf32>
    %cst_17 = arith.constant dense<0.000000e+00> : vector<2x8xf32>
    %25 = tpu.matmul %24, %9, %cst_17 {dimension_numbers = #tpu.dot_dimension_numbers<[1], [0], [0], [1], [0, 0, 1, 1], [], []>} : vector<2x8xf32>, vector<8x8xf32>, vector<2x8xf32> -> vector<2x8xf32>
    %26 = vector.broadcast %12 : vector<1x8xf32> to vector<2x8xf32>
    %27 = arith.addf %25, %26 : vector<2x8xf32>
    %cst_18 = arith.constant 0.000000e+00 : f32
    %28 = vector.broadcast %cst_18 : f32 to vector<2x8xf32>
    %29 = arith.maximumf %27, %28 : vector<2x8xf32>
    %cst_19 = arith.constant dense<0.000000e+00> : vector<2x2xf32>
    %30 = tpu.matmul %29, %10, %cst_19 {dimension_numbers = #tpu.dot_dimension_numbers<[1], [0], [0], [1], [0, 0, 1, 1], [], []>} : vector<2x8xf32>, vector<8x2xf32>, vector<2x2xf32> -> vector<2x2xf32>
    %31 = vector.broadcast %13 : vector<1x2xf32> to vector<2x2xf32>
    %32 = arith.addf %30, %31 : vector<2x2xf32>
    %c0_20 = arith.constant 0 : index
    %c0_21 = arith.constant 0 : index
    %33 = vector.load %arg4[%c0_20, %c0_21] : memref<2x2xf32, #tpu.memory_space<vmem>>, vector<2x2xf32>
    tpu.vector_store %arg4[%c0_20, %c0_21], %32 {strides = array<i32>} : memref<2x2xf32, #tpu.memory_space<vmem>>, vector<2x2xf32>,
    return
  }
}

module attributes {stable_mosaic.version = 11 : i64} {
  func.func @gru_fc_kernel(%arg0: memref<20x8xf32, #tpu.memory_space<vmem>>, %arg1: memref<20x22xf32, #tpu.memory_space<vmem>>, %arg2: memref<11x80xf32, #tpu.memory_space<vmem>>, %arg3: memref<2x32xf32, #tpu.memory_space<vmem>>) attributes {dimension_semantics = [], scalar_prefetch = 0 : i64, scratch_operands = 0 : i64, tpu.core_type = #tpu.core_type<tc>} {
    %c0 = arith.constant 0 : index
    %c0_0 = arith.constant 0 : index
    %0 = vector.load %arg0[%c0, %c0_0] : memref<20x8xf32, #tpu.memory_space<vmem>>, vector<20x8xf32>
    %c0_1 = arith.constant 0 : index
    %c0_2 = arith.constant 0 : index
    %1 = vector.load %arg1[%c0_1, %c0_2] : memref<20x22xf32, #tpu.memory_space<vmem>>, vector<20x20xf32>
    %c0_3 = arith.constant 0 : index
    %c20 = arith.constant 20 : index
    %2 = vector.load %arg1[%c0_3, %c20] : memref<20x22xf32, #tpu.memory_space<vmem>>, vector<20x1xf32>
    %c0_4 = arith.constant 0 : index
    %c21 = arith.constant 21 : index
    %3 = vector.load %arg1[%c0_4, %c21] : memref<20x22xf32, #tpu.memory_space<vmem>>, vector<20x1xf32>
    %cst = arith.constant dense<0.000000e+00> : vector<20x8xf32>
    %4 = tpu.matmul %1, %0, %cst {dimension_numbers = #tpu.dot_dimension_numbers<[1], [0], [0], [1], [0, 0, 1, 1], [], []>} : vector<20x20xf32>, vector<20x8xf32>, vector<20x8xf32> -> vector<20x8xf32>
    %cst_5 = arith.constant dense<0.000000e+00> : vector<20xf32>
    %5 = vector.multi_reduction <add>, %4, %cst_5 [1] : vector<20x8xf32> to vector<20xf32>
    %6 = vector.shape_cast %5 : vector<20xf32> to vector<20x1xf32>
    %7 = vector.broadcast %6 : vector<20x1xf32> to vector<20x8xf32>
    %8 = arith.subf %0, %7 : vector<20x8xf32>
    %9 = arith.mulf %8, %8 : vector<20x8xf32>
    %cst_6 = arith.constant dense<0.000000e+00> : vector<20x8xf32>
    %10 = tpu.matmul %1, %9, %cst_6 {dimension_numbers = #tpu.dot_dimension_numbers<[1], [0], [0], [1], [0, 0, 1, 1], [], []>} : vector<20x20xf32>, vector<20x8xf32>, vector<20x8xf32> -> vector<20x8xf32>
    %cst_7 = arith.constant dense<0.000000e+00> : vector<20xf32>
    %11 = vector.multi_reduction <add>, %10, %cst_7 [1] : vector<20x8xf32> to vector<20xf32>
    %12 = vector.shape_cast %11 : vector<20xf32> to vector<20x1xf32>
    %cst_8 = arith.constant 9.99999974E-6 : f32
    %13 = vector.broadcast %cst_8 : f32 to vector<20x1xf32>
    %14 = arith.addf %12, %13 : vector<20x1xf32>
    %15 = math.rsqrt %14 : vector<20x1xf32>
    %16 = arith.mulf %2, %15 : vector<20x1xf32>
    %17 = vector.broadcast %16 : vector<20x1xf32> to vector<20x8xf32>
    %18 = arith.mulf %8, %17 : vector<20x8xf32>
    %19 = vector.broadcast %3 : vector<20x1xf32> to vector<20x8xf32>
    %20 = arith.addf %18, %19 : vector<20x8xf32>
    %c0_9 = arith.constant 0 : index
    %c0_10 = arith.constant 0 : index
    %21 = vector.load %arg2[%c0_9, %c0_10] : memref<11x80xf32, #tpu.memory_space<vmem>>, vector<8x24xf32>
    %c0_11 = arith.constant 0 : index
    %c24 = arith.constant 24 : index
    %22 = vector.load %arg2[%c0_11, %c24] : memref<11x80xf32, #tpu.memory_space<vmem>>, vector<8x24xf32>
    %c0_12 = arith.constant 0 : index
    %c48 = arith.constant 48 : index
    %23 = vector.load %arg2[%c0_12, %c48] : memref<11x80xf32, #tpu.memory_space<vmem>>, vector<8x32xf32>
    %c8 = arith.constant 8 : index
    %c0_13 = arith.constant 0 : index
    %24 = vector.load %arg2[%c8, %c0_13] : memref<11x80xf32, #tpu.memory_space<vmem>>, vector<1x24xf32>
    %c9 = arith.constant 9 : index
    %c0_14 = arith.constant 0 : index
    %25 = vector.load %arg2[%c9, %c0_14] : memref<11x80xf32, #tpu.memory_space<vmem>>, vector<1x24xf32>
    %c10 = arith.constant 10 : index
    %c0_15 = arith.constant 0 : index
    %26 = vector.load %arg2[%c10, %c0_15] : memref<11x80xf32, #tpu.memory_space<vmem>>, vector<1x32xf32>
    %cst_16 = arith.constant dense<0.000000e+00> : vector<20x24xf32>
    %27 = tpu.matmul %20, %21, %cst_16 {dimension_numbers = #tpu.dot_dimension_numbers<[1], [0], [0], [1], [0, 0, 1, 1], [], []>} : vector<20x8xf32>, vector<8x24xf32>, vector<20x24xf32> -> vector<20x24xf32>
    %28 = vector.broadcast %24 : vector<1x24xf32> to vector<20x24xf32>
    %29 = arith.addf %27, %28 : vector<20x24xf32>
    %cst_17 = arith.constant 0.000000e+00 : f32
    %30 = vector.broadcast %cst_17 : f32 to vector<2x8xf32>
    %31 = vector.extract_strided_slice %29 {offsets = [0, 0], sizes = [2, 24], strides = [1, 1]} : vector<20x24xf32> to vector<2x24xf32>
    %32 = vector.extract_strided_slice %30 {offsets = [0, 0], sizes = [2, 1], strides = [1, 1]} : vector<2x8xf32> to vector<2x1xf32>
    %33 = vector.extract_strided_slice %22 {offsets = [0, 0], sizes = [1, 24], strides = [1, 1]} : vector<8x24xf32> to vector<1x24xf32>
    %34 = vector.broadcast %32 : vector<2x1xf32> to vector<2x24xf32>
    %35 = vector.broadcast %33 : vector<1x24xf32> to vector<2x24xf32>
    %36 = arith.mulf %34, %35 : vector<2x24xf32>
    %37 = vector.broadcast %25 : vector<1x24xf32> to vector<2x24xf32>
    %38 = arith.addf %37, %36 : vector<2x24xf32>
    %39 = vector.extract_strided_slice %30 {offsets = [0, 1], sizes = [2, 1], strides = [1, 1]} : vector<2x8xf32> to vector<2x1xf32>
    %40 = vector.extract_strided_slice %22 {offsets = [1, 0], sizes = [1, 24], strides = [1, 1]} : vector<8x24xf32> to vector<1x24xf32>
    %41 = vector.broadcast %39 : vector<2x1xf32> to vector<2x24xf32>
    %42 = vector.broadcast %40 : vector<1x24xf32> to vector<2x24xf32>
    %43 = arith.mulf %41, %42 : vector<2x24xf32>
    %44 = arith.addf %38, %43 : vector<2x24xf32>
    %45 = vector.extract_strided_slice %30 {offsets = [0, 2], sizes = [2, 1], strides = [1, 1]} : vector<2x8xf32> to vector<2x1xf32>
    %46 = vector.extract_strided_slice %22 {offsets = [2, 0], sizes = [1, 24], strides = [1, 1]} : vector<8x24xf32> to vector<1x24xf32>
    %47 = vector.broadcast %45 : vector<2x1xf32> to vector<2x24xf32>
    %48 = vector.broadcast %46 : vector<1x24xf32> to vector<2x24xf32>
    %49 = arith.mulf %47, %48 : vector<2x24xf32>
    %50 = arith.addf %44, %49 : vector<2x24xf32>
    %51 = vector.extract_strided_slice %30 {offsets = [0, 3], sizes = [2, 1], strides = [1, 1]} : vector<2x8xf32> to vector<2x1xf32>
    %52 = vector.extract_strided_slice %22 {offsets = [3, 0], sizes = [1, 24], strides = [1, 1]} : vector<8x24xf32> to vector<1x24xf32>
    %53 = vector.broadcast %51 : vector<2x1xf32> to vector<2x24xf32>
    %54 = vector.broadcast %52 : vector<1x24xf32> to vector<2x24xf32>
    %55 = arith.mulf %53, %54 : vector<2x24xf32>
    %56 = arith.addf %50, %55 : vector<2x24xf32>
    %57 = vector.extract_strided_slice %30 {offsets = [0, 4], sizes = [2, 1], strides = [1, 1]} : vector<2x8xf32> to vector<2x1xf32>
    %58 = vector.extract_strided_slice %22 {offsets = [4, 0], sizes = [1, 24], strides = [1, 1]} : vector<8x24xf32> to vector<1x24xf32>
    %59 = vector.broadcast %57 : vector<2x1xf32> to vector<2x24xf32>
    %60 = vector.broadcast %58 : vector<1x24xf32> to vector<2x24xf32>
    %61 = arith.mulf %59, %60 : vector<2x24xf32>
    %62 = arith.addf %56, %61 : vector<2x24xf32>
    %63 = vector.extract_strided_slice %30 {offsets = [0, 5], sizes = [2, 1], strides = [1, 1]} : vector<2x8xf32> to vector<2x1xf32>
    %64 = vector.extract_strided_slice %22 {offsets = [5, 0], sizes = [1, 24], strides = [1, 1]} : vector<8x24xf32> to vector<1x24xf32>
    %65 = vector.broadcast %63 : vector<2x1xf32> to vector<2x24xf32>
    %66 = vector.broadcast %64 : vector<1x24xf32> to vector<2x24xf32>
    %67 = arith.mulf %65, %66 : vector<2x24xf32>
    %68 = arith.addf %62, %67 : vector<2x24xf32>
    %69 = vector.extract_strided_slice %30 {offsets = [0, 6], sizes = [2, 1], strides = [1, 1]} : vector<2x8xf32> to vector<2x1xf32>
    %70 = vector.extract_strided_slice %22 {offsets = [6, 0], sizes = [1, 24], strides = [1, 1]} : vector<8x24xf32> to vector<1x24xf32>
    %71 = vector.broadcast %69 : vector<2x1xf32> to vector<2x24xf32>
    %72 = vector.broadcast %70 : vector<1x24xf32> to vector<2x24xf32>
    %73 = arith.mulf %71, %72 : vector<2x24xf32>
    %74 = arith.addf %68, %73 : vector<2x24xf32>
    %75 = vector.extract_strided_slice %30 {offsets = [0, 7], sizes = [2, 1], strides = [1, 1]} : vector<2x8xf32> to vector<2x1xf32>
    %76 = vector.extract_strided_slice %22 {offsets = [7, 0], sizes = [1, 24], strides = [1, 1]} : vector<8x24xf32> to vector<1x24xf32>
    %77 = vector.broadcast %75 : vector<2x1xf32> to vector<2x24xf32>
    %78 = vector.broadcast %76 : vector<1x24xf32> to vector<2x24xf32>
    %79 = arith.mulf %77, %78 : vector<2x24xf32>
    %80 = arith.addf %74, %79 : vector<2x24xf32>
    %81 = vector.extract_strided_slice %31 {offsets = [0, 0], sizes = [2, 8], strides = [1, 1]} : vector<2x24xf32> to vector<2x8xf32>
    %82 = vector.extract_strided_slice %80 {offsets = [0, 0], sizes = [2, 8], strides = [1, 1]} : vector<2x24xf32> to vector<2x8xf32>
    %83 = arith.addf %81, %82 : vector<2x8xf32>
    %84 = arith.negf %83 : vector<2x8xf32>
    %85 = math.exp %84 : vector<2x8xf32>
    %cst_18 = arith.constant 1.000000e+00 : f32
    %86 = vector.broadcast %cst_18 : f32 to vector<2x8xf32>
    %87 = arith.addf %86, %85 : vector<2x8xf32>
    %88 = arith.divf %86, %87 : vector<2x8xf32>
    %89 = vector.extract_strided_slice %31 {offsets = [0, 8], sizes = [2, 8], strides = [1, 1]} : vector<2x24xf32> to vector<2x8xf32>
    %90 = vector.extract_strided_slice %80 {offsets = [0, 8], sizes = [2, 8], strides = [1, 1]} : vector<2x24xf32> to vector<2x8xf32>
    %91 = arith.addf %89, %90 : vector<2x8xf32>
    %92 = arith.negf %91 : vector<2x8xf32>
    %93 = math.exp %92 : vector<2x8xf32>
    %cst_19 = arith.constant 1.000000e+00 : f32
    %94 = vector.broadcast %cst_19 : f32 to vector<2x8xf32>
    %95 = arith.addf %94, %93 : vector<2x8xf32>
    %96 = arith.divf %94, %95 : vector<2x8xf32>
    %97 = vector.extract_strided_slice %31 {offsets = [0, 16], sizes = [2, 8], strides = [1, 1]} : vector<2x24xf32> to vector<2x8xf32>
    %98 = vector.extract_strided_slice %80 {offsets = [0, 16], sizes = [2, 8], strides = [1, 1]} : vector<2x24xf32> to vector<2x8xf32>
    %99 = arith.mulf %88, %98 : vector<2x8xf32>
    %100 = arith.addf %97, %99 : vector<2x8xf32>
    %101 = math.tanh %100 : vector<2x8xf32>
    %cst_20 = arith.constant 1.000000e+00 : f32
    %102 = vector.broadcast %cst_20 : f32 to vector<2x8xf32>
    %103 = arith.subf %102, %96 : vector<2x8xf32>
    %104 = arith.mulf %103, %101 : vector<2x8xf32>
    %105 = arith.mulf %96, %30 : vector<2x8xf32>
    %106 = arith.addf %104, %105 : vector<2x8xf32>
    %107 = vector.extract_strided_slice %29 {offsets = [2, 0], sizes = [2, 24], strides = [1, 1]} : vector<20x24xf32> to vector<2x24xf32>
    %108 = vector.extract_strided_slice %106 {offsets = [0, 0], sizes = [2, 1], strides = [1, 1]} : vector<2x8xf32> to vector<2x1xf32>
    %109 = vector.extract_strided_slice %22 {offsets = [0, 0], sizes = [1, 24], strides = [1, 1]} : vector<8x24xf32> to vector<1x24xf32>
    %110 = vector.broadcast %108 : vector<2x1xf32> to vector<2x24xf32>
    %111 = vector.broadcast %109 : vector<1x24xf32> to vector<2x24xf32>
    %112 = arith.mulf %110, %111 : vector<2x24xf32>
    %113 = vector.broadcast %25 : vector<1x24xf32> to vector<2x24xf32>
    %114 = arith.addf %113, %112 : vector<2x24xf32>
    %115 = vector.extract_strided_slice %106 {offsets = [0, 1], sizes = [2, 1], strides = [1, 1]} : vector<2x8xf32> to vector<2x1xf32>
    %116 = vector.extract_strided_slice %22 {offsets = [1, 0], sizes = [1, 24], strides = [1, 1]} : vector<8x24xf32> to vector<1x24xf32>
    %117 = vector.broadcast %115 : vector<2x1xf32> to vector<2x24xf32>
    %118 = vector.broadcast %116 : vector<1x24xf32> to vector<2x24xf32>
    %119 = arith.mulf %117, %118 : vector<2x24xf32>
    %120 = arith.addf %114, %119 : vector<2x24xf32>
    %121 = vector.extract_strided_slice %106 {offsets = [0, 2], sizes = [2, 1], strides = [1, 1]} : vector<2x8xf32> to vector<2x1xf32>
    %122 = vector.extract_strided_slice %22 {offsets = [2, 0], sizes = [1, 24], strides = [1, 1]} : vector<8x24xf32> to vector<1x24xf32>
    %123 = vector.broadcast %121 : vector<2x1xf32> to vector<2x24xf32>
    %124 = vector.broadcast %122 : vector<1x24xf32> to vector<2x24xf32>
    %125 = arith.mulf %123, %124 : vector<2x24xf32>
    %126 = arith.addf %120, %125 : vector<2x24xf32>
    %127 = vector.extract_strided_slice %106 {offsets = [0, 3], sizes = [2, 1], strides = [1, 1]} : vector<2x8xf32> to vector<2x1xf32>
    %128 = vector.extract_strided_slice %22 {offsets = [3, 0], sizes = [1, 24], strides = [1, 1]} : vector<8x24xf32> to vector<1x24xf32>
    %129 = vector.broadcast %127 : vector<2x1xf32> to vector<2x24xf32>
    %130 = vector.broadcast %128 : vector<1x24xf32> to vector<2x24xf32>
    %131 = arith.mulf %129, %130 : vector<2x24xf32>
    %132 = arith.addf %126, %131 : vector<2x24xf32>
    %133 = vector.extract_strided_slice %106 {offsets = [0, 4], sizes = [2, 1], strides = [1, 1]} : vector<2x8xf32> to vector<2x1xf32>
    %134 = vector.extract_strided_slice %22 {offsets = [4, 0], sizes = [1, 24], strides = [1, 1]} : vector<8x24xf32> to vector<1x24xf32>
    %135 = vector.broadcast %133 : vector<2x1xf32> to vector<2x24xf32>
    %136 = vector.broadcast %134 : vector<1x24xf32> to vector<2x24xf32>
    %137 = arith.mulf %135, %136 : vector<2x24xf32>
    %138 = arith.addf %132, %137 : vector<2x24xf32>
    %139 = vector.extract_strided_slice %106 {offsets = [0, 5], sizes = [2, 1], strides = [1, 1]} : vector<2x8xf32> to vector<2x1xf32>
    %140 = vector.extract_strided_slice %22 {offsets = [5, 0], sizes = [1, 24], strides = [1, 1]} : vector<8x24xf32> to vector<1x24xf32>
    %141 = vector.broadcast %139 : vector<2x1xf32> to vector<2x24xf32>
    %142 = vector.broadcast %140 : vector<1x24xf32> to vector<2x24xf32>
    %143 = arith.mulf %141, %142 : vector<2x24xf32>
    %144 = arith.addf %138, %143 : vector<2x24xf32>
    %145 = vector.extract_strided_slice %106 {offsets = [0, 6], sizes = [2, 1], strides = [1, 1]} : vector<2x8xf32> to vector<2x1xf32>
    %146 = vector.extract_strided_slice %22 {offsets = [6, 0], sizes = [1, 24], strides = [1, 1]} : vector<8x24xf32> to vector<1x24xf32>
    %147 = vector.broadcast %145 : vector<2x1xf32> to vector<2x24xf32>
    %148 = vector.broadcast %146 : vector<1x24xf32> to vector<2x24xf32>
    %149 = arith.mulf %147, %148 : vector<2x24xf32>
    %150 = arith.addf %144, %149 : vector<2x24xf32>
    %151 = vector.extract_strided_slice %106 {offsets = [0, 7], sizes = [2, 1], strides = [1, 1]} : vector<2x8xf32> to vector<2x1xf32>
    %152 = vector.extract_strided_slice %22 {offsets = [7, 0], sizes = [1, 24], strides = [1, 1]} : vector<8x24xf32> to vector<1x24xf32>
    %153 = vector.broadcast %151 : vector<2x1xf32> to vector<2x24xf32>
    %154 = vector.broadcast %152 : vector<1x24xf32> to vector<2x24xf32>
    %155 = arith.mulf %153, %154 : vector<2x24xf32>
    %156 = arith.addf %150, %155 : vector<2x24xf32>
    %157 = vector.extract_strided_slice %107 {offsets = [0, 0], sizes = [2, 8], strides = [1, 1]} : vector<2x24xf32> to vector<2x8xf32>
    %158 = vector.extract_strided_slice %156 {offsets = [0, 0], sizes = [2, 8], strides = [1, 1]} : vector<2x24xf32> to vector<2x8xf32>
    %159 = arith.addf %157, %158 : vector<2x8xf32>
    %160 = arith.negf %159 : vector<2x8xf32>
    %161 = math.exp %160 : vector<2x8xf32>
    %cst_21 = arith.constant 1.000000e+00 : f32
    %162 = vector.broadcast %cst_21 : f32 to vector<2x8xf32>
    %163 = arith.addf %162, %161 : vector<2x8xf32>
    %164 = arith.divf %162, %163 : vector<2x8xf32>
    %165 = vector.extract_strided_slice %107 {offsets = [0, 8], sizes = [2, 8], strides = [1, 1]} : vector<2x24xf32> to vector<2x8xf32>
    %166 = vector.extract_strided_slice %156 {offsets = [0, 8], sizes = [2, 8], strides = [1, 1]} : vector<2x24xf32> to vector<2x8xf32>
    %167 = arith.addf %165, %166 : vector<2x8xf32>
    %168 = arith.negf %167 : vector<2x8xf32>
    %169 = math.exp %168 : vector<2x8xf32>
    %cst_22 = arith.constant 1.000000e+00 : f32
    %170 = vector.broadcast %cst_22 : f32 to vector<2x8xf32>
    %171 = arith.addf %170, %169 : vector<2x8xf32>
    %172 = arith.divf %170, %171 : vector<2x8xf32>
    %173 = vector.extract_strided_slice %107 {offsets = [0, 16], sizes = [2, 8], strides = [1, 1]} : vector<2x24xf32> to vector<2x8xf32>
    %174 = vector.extract_strided_slice %156 {offsets = [0, 16], sizes = [2, 8], strides = [1, 1]} : vector<2x24xf32> to vector<2x8xf32>
    %175 = arith.mulf %164, %174 : vector<2x8xf32>
    %176 = arith.addf %173, %175 : vector<2x8xf32>
    %177 = math.tanh %176 : vector<2x8xf32>
    %cst_23 = arith.constant 1.000000e+00 : f32
    %178 = vector.broadcast %cst_23 : f32 to vector<2x8xf32>
    %179 = arith.subf %178, %172 : vector<2x8xf32>
    %180 = arith.mulf %179, %177 : vector<2x8xf32>
    %181 = arith.mulf %172, %106 : vector<2x8xf32>
    %182 = arith.addf %180, %181 : vector<2x8xf32>
    %183 = vector.extract_strided_slice %29 {offsets = [4, 0], sizes = [2, 24], strides = [1, 1]} : vector<20x24xf32> to vector<2x24xf32>
    %184 = vector.extract_strided_slice %182 {offsets = [0, 0], sizes = [2, 1], strides = [1, 1]} : vector<2x8xf32> to vector<2x1xf32>
    %185 = vector.extract_strided_slice %22 {offsets = [0, 0], sizes = [1, 24], strides = [1, 1]} : vector<8x24xf32> to vector<1x24xf32>
    %186 = vector.broadcast %184 : vector<2x1xf32> to vector<2x24xf32>
    %187 = vector.broadcast %185 : vector<1x24xf32> to vector<2x24xf32>
    %188 = arith.mulf %186, %187 : vector<2x24xf32>
    %189 = vector.broadcast %25 : vector<1x24xf32> to vector<2x24xf32>
    %190 = arith.addf %189, %188 : vector<2x24xf32>
    %191 = vector.extract_strided_slice %182 {offsets = [0, 1], sizes = [2, 1], strides = [1, 1]} : vector<2x8xf32> to vector<2x1xf32>
    %192 = vector.extract_strided_slice %22 {offsets = [1, 0], sizes = [1, 24], strides = [1, 1]} : vector<8x24xf32> to vector<1x24xf32>
    %193 = vector.broadcast %191 : vector<2x1xf32> to vector<2x24xf32>
    %194 = vector.broadcast %192 : vector<1x24xf32> to vector<2x24xf32>
    %195 = arith.mulf %193, %194 : vector<2x24xf32>
    %196 = arith.addf %190, %195 : vector<2x24xf32>
    %197 = vector.extract_strided_slice %182 {offsets = [0, 2], sizes = [2, 1], strides = [1, 1]} : vector<2x8xf32> to vector<2x1xf32>
    %198 = vector.extract_strided_slice %22 {offsets = [2, 0], sizes = [1, 24], strides = [1, 1]} : vector<8x24xf32> to vector<1x24xf32>
    %199 = vector.broadcast %197 : vector<2x1xf32> to vector<2x24xf32>
    %200 = vector.broadcast %198 : vector<1x24xf32> to vector<2x24xf32>
    %201 = arith.mulf %199, %200 : vector<2x24xf32>
    %202 = arith.addf %196, %201 : vector<2x24xf32>
    %203 = vector.extract_strided_slice %182 {offsets = [0, 3], sizes = [2, 1], strides = [1, 1]} : vector<2x8xf32> to vector<2x1xf32>
    %204 = vector.extract_strided_slice %22 {offsets = [3, 0], sizes = [1, 24], strides = [1, 1]} : vector<8x24xf32> to vector<1x24xf32>
    %205 = vector.broadcast %203 : vector<2x1xf32> to vector<2x24xf32>
    %206 = vector.broadcast %204 : vector<1x24xf32> to vector<2x24xf32>
    %207 = arith.mulf %205, %206 : vector<2x24xf32>
    %208 = arith.addf %202, %207 : vector<2x24xf32>
    %209 = vector.extract_strided_slice %182 {offsets = [0, 4], sizes = [2, 1], strides = [1, 1]} : vector<2x8xf32> to vector<2x1xf32>
    %210 = vector.extract_strided_slice %22 {offsets = [4, 0], sizes = [1, 24], strides = [1, 1]} : vector<8x24xf32> to vector<1x24xf32>
    %211 = vector.broadcast %209 : vector<2x1xf32> to vector<2x24xf32>
    %212 = vector.broadcast %210 : vector<1x24xf32> to vector<2x24xf32>
    %213 = arith.mulf %211, %212 : vector<2x24xf32>
    %214 = arith.addf %208, %213 : vector<2x24xf32>
    %215 = vector.extract_strided_slice %182 {offsets = [0, 5], sizes = [2, 1], strides = [1, 1]} : vector<2x8xf32> to vector<2x1xf32>
    %216 = vector.extract_strided_slice %22 {offsets = [5, 0], sizes = [1, 24], strides = [1, 1]} : vector<8x24xf32> to vector<1x24xf32>
    %217 = vector.broadcast %215 : vector<2x1xf32> to vector<2x24xf32>
    %218 = vector.broadcast %216 : vector<1x24xf32> to vector<2x24xf32>
    %219 = arith.mulf %217, %218 : vector<2x24xf32>
    %220 = arith.addf %214, %219 : vector<2x24xf32>
    %221 = vector.extract_strided_slice %182 {offsets = [0, 6], sizes = [2, 1], strides = [1, 1]} : vector<2x8xf32> to vector<2x1xf32>
    %222 = vector.extract_strided_slice %22 {offsets = [6, 0], sizes = [1, 24], strides = [1, 1]} : vector<8x24xf32> to vector<1x24xf32>
    %223 = vector.broadcast %221 : vector<2x1xf32> to vector<2x24xf32>
    %224 = vector.broadcast %222 : vector<1x24xf32> to vector<2x24xf32>
    %225 = arith.mulf %223, %224 : vector<2x24xf32>
    %226 = arith.addf %220, %225 : vector<2x24xf32>
    %227 = vector.extract_strided_slice %182 {offsets = [0, 7], sizes = [2, 1], strides = [1, 1]} : vector<2x8xf32> to vector<2x1xf32>
    %228 = vector.extract_strided_slice %22 {offsets = [7, 0], sizes = [1, 24], strides = [1, 1]} : vector<8x24xf32> to vector<1x24xf32>
    %229 = vector.broadcast %227 : vector<2x1xf32> to vector<2x24xf32>
    %230 = vector.broadcast %228 : vector<1x24xf32> to vector<2x24xf32>
    %231 = arith.mulf %229, %230 : vector<2x24xf32>
    %232 = arith.addf %226, %231 : vector<2x24xf32>
    %233 = vector.extract_strided_slice %183 {offsets = [0, 0], sizes = [2, 8], strides = [1, 1]} : vector<2x24xf32> to vector<2x8xf32>
    %234 = vector.extract_strided_slice %232 {offsets = [0, 0], sizes = [2, 8], strides = [1, 1]} : vector<2x24xf32> to vector<2x8xf32>
    %235 = arith.addf %233, %234 : vector<2x8xf32>
    %236 = arith.negf %235 : vector<2x8xf32>
    %237 = math.exp %236 : vector<2x8xf32>
    %cst_24 = arith.constant 1.000000e+00 : f32
    %238 = vector.broadcast %cst_24 : f32 to vector<2x8xf32>
    %239 = arith.addf %238, %237 : vector<2x8xf32>
    %240 = arith.divf %238, %239 : vector<2x8xf32>
    %241 = vector.extract_strided_slice %183 {offsets = [0, 8], sizes = [2, 8], strides = [1, 1]} : vector<2x24xf32> to vector<2x8xf32>
    %242 = vector.extract_strided_slice %232 {offsets = [0, 8], sizes = [2, 8], strides = [1, 1]} : vector<2x24xf32> to vector<2x8xf32>
    %243 = arith.addf %241, %242 : vector<2x8xf32>
    %244 = arith.negf %243 : vector<2x8xf32>
    %245 = math.exp %244 : vector<2x8xf32>
    %cst_25 = arith.constant 1.000000e+00 : f32
    %246 = vector.broadcast %cst_25 : f32 to vector<2x8xf32>
    %247 = arith.addf %246, %245 : vector<2x8xf32>
    %248 = arith.divf %246, %247 : vector<2x8xf32>
    %249 = vector.extract_strided_slice %183 {offsets = [0, 16], sizes = [2, 8], strides = [1, 1]} : vector<2x24xf32> to vector<2x8xf32>
    %250 = vector.extract_strided_slice %232 {offsets = [0, 16], sizes = [2, 8], strides = [1, 1]} : vector<2x24xf32> to vector<2x8xf32>
    %251 = arith.mulf %240, %250 : vector<2x8xf32>
    %252 = arith.addf %249, %251 : vector<2x8xf32>
    %253 = math.tanh %252 : vector<2x8xf32>
    %cst_26 = arith.constant 1.000000e+00 : f32
    %254 = vector.broadcast %cst_26 : f32 to vector<2x8xf32>
    %255 = arith.subf %254, %248 : vector<2x8xf32>
    %256 = arith.mulf %255, %253 : vector<2x8xf32>
    %257 = arith.mulf %248, %182 : vector<2x8xf32>
    %258 = arith.addf %256, %257 : vector<2x8xf32>
    %259 = vector.extract_strided_slice %29 {offsets = [6, 0], sizes = [2, 24], strides = [1, 1]} : vector<20x24xf32> to vector<2x24xf32>
    %260 = vector.extract_strided_slice %258 {offsets = [0, 0], sizes = [2, 1], strides = [1, 1]} : vector<2x8xf32> to vector<2x1xf32>
    %261 = vector.extract_strided_slice %22 {offsets = [0, 0], sizes = [1, 24], strides = [1, 1]} : vector<8x24xf32> to vector<1x24xf32>
    %262 = vector.broadcast %260 : vector<2x1xf32> to vector<2x24xf32>
    %263 = vector.broadcast %261 : vector<1x24xf32> to vector<2x24xf32>
    %264 = arith.mulf %262, %263 : vector<2x24xf32>
    %265 = vector.broadcast %25 : vector<1x24xf32> to vector<2x24xf32>
    %266 = arith.addf %265, %264 : vector<2x24xf32>
    %267 = vector.extract_strided_slice %258 {offsets = [0, 1], sizes = [2, 1], strides = [1, 1]} : vector<2x8xf32> to vector<2x1xf32>
    %268 = vector.extract_strided_slice %22 {offsets = [1, 0], sizes = [1, 24], strides = [1, 1]} : vector<8x24xf32> to vector<1x24xf32>
    %269 = vector.broadcast %267 : vector<2x1xf32> to vector<2x24xf32>
    %270 = vector.broadcast %268 : vector<1x24xf32> to vector<2x24xf32>
    %271 = arith.mulf %269, %270 : vector<2x24xf32>
    %272 = arith.addf %266, %271 : vector<2x24xf32>
    %273 = vector.extract_strided_slice %258 {offsets = [0, 2], sizes = [2, 1], strides = [1, 1]} : vector<2x8xf32> to vector<2x1xf32>
    %274 = vector.extract_strided_slice %22 {offsets = [2, 0], sizes = [1, 24], strides = [1, 1]} : vector<8x24xf32> to vector<1x24xf32>
    %275 = vector.broadcast %273 : vector<2x1xf32> to vector<2x24xf32>
    %276 = vector.broadcast %274 : vector<1x24xf32> to vector<2x24xf32>
    %277 = arith.mulf %275, %276 : vector<2x24xf32>
    %278 = arith.addf %272, %277 : vector<2x24xf32>
    %279 = vector.extract_strided_slice %258 {offsets = [0, 3], sizes = [2, 1], strides = [1, 1]} : vector<2x8xf32> to vector<2x1xf32>
    %280 = vector.extract_strided_slice %22 {offsets = [3, 0], sizes = [1, 24], strides = [1, 1]} : vector<8x24xf32> to vector<1x24xf32>
    %281 = vector.broadcast %279 : vector<2x1xf32> to vector<2x24xf32>
    %282 = vector.broadcast %280 : vector<1x24xf32> to vector<2x24xf32>
    %283 = arith.mulf %281, %282 : vector<2x24xf32>
    %284 = arith.addf %278, %283 : vector<2x24xf32>
    %285 = vector.extract_strided_slice %258 {offsets = [0, 4], sizes = [2, 1], strides = [1, 1]} : vector<2x8xf32> to vector<2x1xf32>
    %286 = vector.extract_strided_slice %22 {offsets = [4, 0], sizes = [1, 24], strides = [1, 1]} : vector<8x24xf32> to vector<1x24xf32>
    %287 = vector.broadcast %285 : vector<2x1xf32> to vector<2x24xf32>
    %288 = vector.broadcast %286 : vector<1x24xf32> to vector<2x24xf32>
    %289 = arith.mulf %287, %288 : vector<2x24xf32>
    %290 = arith.addf %284, %289 : vector<2x24xf32>
    %291 = vector.extract_strided_slice %258 {offsets = [0, 5], sizes = [2, 1], strides = [1, 1]} : vector<2x8xf32> to vector<2x1xf32>
    %292 = vector.extract_strided_slice %22 {offsets = [5, 0], sizes = [1, 24], strides = [1, 1]} : vector<8x24xf32> to vector<1x24xf32>
    %293 = vector.broadcast %291 : vector<2x1xf32> to vector<2x24xf32>
    %294 = vector.broadcast %292 : vector<1x24xf32> to vector<2x24xf32>
    %295 = arith.mulf %293, %294 : vector<2x24xf32>
    %296 = arith.addf %290, %295 : vector<2x24xf32>
    %297 = vector.extract_strided_slice %258 {offsets = [0, 6], sizes = [2, 1], strides = [1, 1]} : vector<2x8xf32> to vector<2x1xf32>
    %298 = vector.extract_strided_slice %22 {offsets = [6, 0], sizes = [1, 24], strides = [1, 1]} : vector<8x24xf32> to vector<1x24xf32>
    %299 = vector.broadcast %297 : vector<2x1xf32> to vector<2x24xf32>
    %300 = vector.broadcast %298 : vector<1x24xf32> to vector<2x24xf32>
    %301 = arith.mulf %299, %300 : vector<2x24xf32>
    %302 = arith.addf %296, %301 : vector<2x24xf32>
    %303 = vector.extract_strided_slice %258 {offsets = [0, 7], sizes = [2, 1], strides = [1, 1]} : vector<2x8xf32> to vector<2x1xf32>
    %304 = vector.extract_strided_slice %22 {offsets = [7, 0], sizes = [1, 24], strides = [1, 1]} : vector<8x24xf32> to vector<1x24xf32>
    %305 = vector.broadcast %303 : vector<2x1xf32> to vector<2x24xf32>
    %306 = vector.broadcast %304 : vector<1x24xf32> to vector<2x24xf32>
    %307 = arith.mulf %305, %306 : vector<2x24xf32>
    %308 = arith.addf %302, %307 : vector<2x24xf32>
    %309 = vector.extract_strided_slice %259 {offsets = [0, 0], sizes = [2, 8], strides = [1, 1]} : vector<2x24xf32> to vector<2x8xf32>
    %310 = vector.extract_strided_slice %308 {offsets = [0, 0], sizes = [2, 8], strides = [1, 1]} : vector<2x24xf32> to vector<2x8xf32>
    %311 = arith.addf %309, %310 : vector<2x8xf32>
    %312 = arith.negf %311 : vector<2x8xf32>
    %313 = math.exp %312 : vector<2x8xf32>
    %cst_27 = arith.constant 1.000000e+00 : f32
    %314 = vector.broadcast %cst_27 : f32 to vector<2x8xf32>
    %315 = arith.addf %314, %313 : vector<2x8xf32>
    %316 = arith.divf %314, %315 : vector<2x8xf32>
    %317 = vector.extract_strided_slice %259 {offsets = [0, 8], sizes = [2, 8], strides = [1, 1]} : vector<2x24xf32> to vector<2x8xf32>
    %318 = vector.extract_strided_slice %308 {offsets = [0, 8], sizes = [2, 8], strides = [1, 1]} : vector<2x24xf32> to vector<2x8xf32>
    %319 = arith.addf %317, %318 : vector<2x8xf32>
    %320 = arith.negf %319 : vector<2x8xf32>
    %321 = math.exp %320 : vector<2x8xf32>
    %cst_28 = arith.constant 1.000000e+00 : f32
    %322 = vector.broadcast %cst_28 : f32 to vector<2x8xf32>
    %323 = arith.addf %322, %321 : vector<2x8xf32>
    %324 = arith.divf %322, %323 : vector<2x8xf32>
    %325 = vector.extract_strided_slice %259 {offsets = [0, 16], sizes = [2, 8], strides = [1, 1]} : vector<2x24xf32> to vector<2x8xf32>
    %326 = vector.extract_strided_slice %308 {offsets = [0, 16], sizes = [2, 8], strides = [1, 1]} : vector<2x24xf32> to vector<2x8xf32>
    %327 = arith.mulf %316, %326 : vector<2x8xf32>
    %328 = arith.addf %325, %327 : vector<2x8xf32>
    %329 = math.tanh %328 : vector<2x8xf32>
    %cst_29 = arith.constant 1.000000e+00 : f32
    %330 = vector.broadcast %cst_29 : f32 to vector<2x8xf32>
    %331 = arith.subf %330, %324 : vector<2x8xf32>
    %332 = arith.mulf %331, %329 : vector<2x8xf32>
    %333 = arith.mulf %324, %258 : vector<2x8xf32>
    %334 = arith.addf %332, %333 : vector<2x8xf32>
    %335 = vector.extract_strided_slice %29 {offsets = [8, 0], sizes = [2, 24], strides = [1, 1]} : vector<20x24xf32> to vector<2x24xf32>
    %336 = vector.extract_strided_slice %334 {offsets = [0, 0], sizes = [2, 1], strides = [1, 1]} : vector<2x8xf32> to vector<2x1xf32>
    %337 = vector.extract_strided_slice %22 {offsets = [0, 0], sizes = [1, 24], strides = [1, 1]} : vector<8x24xf32> to vector<1x24xf32>
    %338 = vector.broadcast %336 : vector<2x1xf32> to vector<2x24xf32>
    %339 = vector.broadcast %337 : vector<1x24xf32> to vector<2x24xf32>
    %340 = arith.mulf %338, %339 : vector<2x24xf32>
    %341 = vector.broadcast %25 : vector<1x24xf32> to vector<2x24xf32>
    %342 = arith.addf %341, %340 : vector<2x24xf32>
    %343 = vector.extract_strided_slice %334 {offsets = [0, 1], sizes = [2, 1], strides = [1, 1]} : vector<2x8xf32> to vector<2x1xf32>
    %344 = vector.extract_strided_slice %22 {offsets = [1, 0], sizes = [1, 24], strides = [1, 1]} : vector<8x24xf32> to vector<1x24xf32>
    %345 = vector.broadcast %343 : vector<2x1xf32> to vector<2x24xf32>
    %346 = vector.broadcast %344 : vector<1x24xf32> to vector<2x24xf32>
    %347 = arith.mulf %345, %346 : vector<2x24xf32>
    %348 = arith.addf %342, %347 : vector<2x24xf32>
    %349 = vector.extract_strided_slice %334 {offsets = [0, 2], sizes = [2, 1], strides = [1, 1]} : vector<2x8xf32> to vector<2x1xf32>
    %350 = vector.extract_strided_slice %22 {offsets = [2, 0], sizes = [1, 24], strides = [1, 1]} : vector<8x24xf32> to vector<1x24xf32>
    %351 = vector.broadcast %349 : vector<2x1xf32> to vector<2x24xf32>
    %352 = vector.broadcast %350 : vector<1x24xf32> to vector<2x24xf32>
    %353 = arith.mulf %351, %352 : vector<2x24xf32>
    %354 = arith.addf %348, %353 : vector<2x24xf32>
    %355 = vector.extract_strided_slice %334 {offsets = [0, 3], sizes = [2, 1], strides = [1, 1]} : vector<2x8xf32> to vector<2x1xf32>
    %356 = vector.extract_strided_slice %22 {offsets = [3, 0], sizes = [1, 24], strides = [1, 1]} : vector<8x24xf32> to vector<1x24xf32>
    %357 = vector.broadcast %355 : vector<2x1xf32> to vector<2x24xf32>
    %358 = vector.broadcast %356 : vector<1x24xf32> to vector<2x24xf32>
    %359 = arith.mulf %357, %358 : vector<2x24xf32>
    %360 = arith.addf %354, %359 : vector<2x24xf32>
    %361 = vector.extract_strided_slice %334 {offsets = [0, 4], sizes = [2, 1], strides = [1, 1]} : vector<2x8xf32> to vector<2x1xf32>
    %362 = vector.extract_strided_slice %22 {offsets = [4, 0], sizes = [1, 24], strides = [1, 1]} : vector<8x24xf32> to vector<1x24xf32>
    %363 = vector.broadcast %361 : vector<2x1xf32> to vector<2x24xf32>
    %364 = vector.broadcast %362 : vector<1x24xf32> to vector<2x24xf32>
    %365 = arith.mulf %363, %364 : vector<2x24xf32>
    %366 = arith.addf %360, %365 : vector<2x24xf32>
    %367 = vector.extract_strided_slice %334 {offsets = [0, 5], sizes = [2, 1], strides = [1, 1]} : vector<2x8xf32> to vector<2x1xf32>
    %368 = vector.extract_strided_slice %22 {offsets = [5, 0], sizes = [1, 24], strides = [1, 1]} : vector<8x24xf32> to vector<1x24xf32>
    %369 = vector.broadcast %367 : vector<2x1xf32> to vector<2x24xf32>
    %370 = vector.broadcast %368 : vector<1x24xf32> to vector<2x24xf32>
    %371 = arith.mulf %369, %370 : vector<2x24xf32>
    %372 = arith.addf %366, %371 : vector<2x24xf32>
    %373 = vector.extract_strided_slice %334 {offsets = [0, 6], sizes = [2, 1], strides = [1, 1]} : vector<2x8xf32> to vector<2x1xf32>
    %374 = vector.extract_strided_slice %22 {offsets = [6, 0], sizes = [1, 24], strides = [1, 1]} : vector<8x24xf32> to vector<1x24xf32>
    %375 = vector.broadcast %373 : vector<2x1xf32> to vector<2x24xf32>
    %376 = vector.broadcast %374 : vector<1x24xf32> to vector<2x24xf32>
    %377 = arith.mulf %375, %376 : vector<2x24xf32>
    %378 = arith.addf %372, %377 : vector<2x24xf32>
    %379 = vector.extract_strided_slice %334 {offsets = [0, 7], sizes = [2, 1], strides = [1, 1]} : vector<2x8xf32> to vector<2x1xf32>
    %380 = vector.extract_strided_slice %22 {offsets = [7, 0], sizes = [1, 24], strides = [1, 1]} : vector<8x24xf32> to vector<1x24xf32>
    %381 = vector.broadcast %379 : vector<2x1xf32> to vector<2x24xf32>
    %382 = vector.broadcast %380 : vector<1x24xf32> to vector<2x24xf32>
    %383 = arith.mulf %381, %382 : vector<2x24xf32>
    %384 = arith.addf %378, %383 : vector<2x24xf32>
    %385 = vector.extract_strided_slice %335 {offsets = [0, 0], sizes = [2, 8], strides = [1, 1]} : vector<2x24xf32> to vector<2x8xf32>
    %386 = vector.extract_strided_slice %384 {offsets = [0, 0], sizes = [2, 8], strides = [1, 1]} : vector<2x24xf32> to vector<2x8xf32>
    %387 = arith.addf %385, %386 : vector<2x8xf32>
    %388 = arith.negf %387 : vector<2x8xf32>
    %389 = math.exp %388 : vector<2x8xf32>
    %cst_30 = arith.constant 1.000000e+00 : f32
    %390 = vector.broadcast %cst_30 : f32 to vector<2x8xf32>
    %391 = arith.addf %390, %389 : vector<2x8xf32>
    %392 = arith.divf %390, %391 : vector<2x8xf32>
    %393 = vector.extract_strided_slice %335 {offsets = [0, 8], sizes = [2, 8], strides = [1, 1]} : vector<2x24xf32> to vector<2x8xf32>
    %394 = vector.extract_strided_slice %384 {offsets = [0, 8], sizes = [2, 8], strides = [1, 1]} : vector<2x24xf32> to vector<2x8xf32>
    %395 = arith.addf %393, %394 : vector<2x8xf32>
    %396 = arith.negf %395 : vector<2x8xf32>
    %397 = math.exp %396 : vector<2x8xf32>
    %cst_31 = arith.constant 1.000000e+00 : f32
    %398 = vector.broadcast %cst_31 : f32 to vector<2x8xf32>
    %399 = arith.addf %398, %397 : vector<2x8xf32>
    %400 = arith.divf %398, %399 : vector<2x8xf32>
    %401 = vector.extract_strided_slice %335 {offsets = [0, 16], sizes = [2, 8], strides = [1, 1]} : vector<2x24xf32> to vector<2x8xf32>
    %402 = vector.extract_strided_slice %384 {offsets = [0, 16], sizes = [2, 8], strides = [1, 1]} : vector<2x24xf32> to vector<2x8xf32>
    %403 = arith.mulf %392, %402 : vector<2x8xf32>
    %404 = arith.addf %401, %403 : vector<2x8xf32>
    %405 = math.tanh %404 : vector<2x8xf32>
    %cst_32 = arith.constant 1.000000e+00 : f32
    %406 = vector.broadcast %cst_32 : f32 to vector<2x8xf32>
    %407 = arith.subf %406, %400 : vector<2x8xf32>
    %408 = arith.mulf %407, %405 : vector<2x8xf32>
    %409 = arith.mulf %400, %334 : vector<2x8xf32>
    %410 = arith.addf %408, %409 : vector<2x8xf32>
    %411 = vector.extract_strided_slice %29 {offsets = [10, 0], sizes = [2, 24], strides = [1, 1]} : vector<20x24xf32> to vector<2x24xf32>
    %412 = vector.extract_strided_slice %410 {offsets = [0, 0], sizes = [2, 1], strides = [1, 1]} : vector<2x8xf32> to vector<2x1xf32>
    %413 = vector.extract_strided_slice %22 {offsets = [0, 0], sizes = [1, 24], strides = [1, 1]} : vector<8x24xf32> to vector<1x24xf32>
    %414 = vector.broadcast %412 : vector<2x1xf32> to vector<2x24xf32>
    %415 = vector.broadcast %413 : vector<1x24xf32> to vector<2x24xf32>
    %416 = arith.mulf %414, %415 : vector<2x24xf32>
    %417 = vector.broadcast %25 : vector<1x24xf32> to vector<2x24xf32>
    %418 = arith.addf %417, %416 : vector<2x24xf32>
    %419 = vector.extract_strided_slice %410 {offsets = [0, 1], sizes = [2, 1], strides = [1, 1]} : vector<2x8xf32> to vector<2x1xf32>
    %420 = vector.extract_strided_slice %22 {offsets = [1, 0], sizes = [1, 24], strides = [1, 1]} : vector<8x24xf32> to vector<1x24xf32>
    %421 = vector.broadcast %419 : vector<2x1xf32> to vector<2x24xf32>
    %422 = vector.broadcast %420 : vector<1x24xf32> to vector<2x24xf32>
    %423 = arith.mulf %421, %422 : vector<2x24xf32>
    %424 = arith.addf %418, %423 : vector<2x24xf32>
    %425 = vector.extract_strided_slice %410 {offsets = [0, 2], sizes = [2, 1], strides = [1, 1]} : vector<2x8xf32> to vector<2x1xf32>
    %426 = vector.extract_strided_slice %22 {offsets = [2, 0], sizes = [1, 24], strides = [1, 1]} : vector<8x24xf32> to vector<1x24xf32>
    %427 = vector.broadcast %425 : vector<2x1xf32> to vector<2x24xf32>
    %428 = vector.broadcast %426 : vector<1x24xf32> to vector<2x24xf32>
    %429 = arith.mulf %427, %428 : vector<2x24xf32>
    %430 = arith.addf %424, %429 : vector<2x24xf32>
    %431 = vector.extract_strided_slice %410 {offsets = [0, 3], sizes = [2, 1], strides = [1, 1]} : vector<2x8xf32> to vector<2x1xf32>
    %432 = vector.extract_strided_slice %22 {offsets = [3, 0], sizes = [1, 24], strides = [1, 1]} : vector<8x24xf32> to vector<1x24xf32>
    %433 = vector.broadcast %431 : vector<2x1xf32> to vector<2x24xf32>
    %434 = vector.broadcast %432 : vector<1x24xf32> to vector<2x24xf32>
    %435 = arith.mulf %433, %434 : vector<2x24xf32>
    %436 = arith.addf %430, %435 : vector<2x24xf32>
    %437 = vector.extract_strided_slice %410 {offsets = [0, 4], sizes = [2, 1], strides = [1, 1]} : vector<2x8xf32> to vector<2x1xf32>
    %438 = vector.extract_strided_slice %22 {offsets = [4, 0], sizes = [1, 24], strides = [1, 1]} : vector<8x24xf32> to vector<1x24xf32>
    %439 = vector.broadcast %437 : vector<2x1xf32> to vector<2x24xf32>
    %440 = vector.broadcast %438 : vector<1x24xf32> to vector<2x24xf32>
    %441 = arith.mulf %439, %440 : vector<2x24xf32>
    %442 = arith.addf %436, %441 : vector<2x24xf32>
    %443 = vector.extract_strided_slice %410 {offsets = [0, 5], sizes = [2, 1], strides = [1, 1]} : vector<2x8xf32> to vector<2x1xf32>
    %444 = vector.extract_strided_slice %22 {offsets = [5, 0], sizes = [1, 24], strides = [1, 1]} : vector<8x24xf32> to vector<1x24xf32>
    %445 = vector.broadcast %443 : vector<2x1xf32> to vector<2x24xf32>
    %446 = vector.broadcast %444 : vector<1x24xf32> to vector<2x24xf32>
    %447 = arith.mulf %445, %446 : vector<2x24xf32>
    %448 = arith.addf %442, %447 : vector<2x24xf32>
    %449 = vector.extract_strided_slice %410 {offsets = [0, 6], sizes = [2, 1], strides = [1, 1]} : vector<2x8xf32> to vector<2x1xf32>
    %450 = vector.extract_strided_slice %22 {offsets = [6, 0], sizes = [1, 24], strides = [1, 1]} : vector<8x24xf32> to vector<1x24xf32>
    %451 = vector.broadcast %449 : vector<2x1xf32> to vector<2x24xf32>
    %452 = vector.broadcast %450 : vector<1x24xf32> to vector<2x24xf32>
    %453 = arith.mulf %451, %452 : vector<2x24xf32>
    %454 = arith.addf %448, %453 : vector<2x24xf32>
    %455 = vector.extract_strided_slice %410 {offsets = [0, 7], sizes = [2, 1], strides = [1, 1]} : vector<2x8xf32> to vector<2x1xf32>
    %456 = vector.extract_strided_slice %22 {offsets = [7, 0], sizes = [1, 24], strides = [1, 1]} : vector<8x24xf32> to vector<1x24xf32>
    %457 = vector.broadcast %455 : vector<2x1xf32> to vector<2x24xf32>
    %458 = vector.broadcast %456 : vector<1x24xf32> to vector<2x24xf32>
    %459 = arith.mulf %457, %458 : vector<2x24xf32>
    %460 = arith.addf %454, %459 : vector<2x24xf32>
    %461 = vector.extract_strided_slice %411 {offsets = [0, 0], sizes = [2, 8], strides = [1, 1]} : vector<2x24xf32> to vector<2x8xf32>
    %462 = vector.extract_strided_slice %460 {offsets = [0, 0], sizes = [2, 8], strides = [1, 1]} : vector<2x24xf32> to vector<2x8xf32>
    %463 = arith.addf %461, %462 : vector<2x8xf32>
    %464 = arith.negf %463 : vector<2x8xf32>
    %465 = math.exp %464 : vector<2x8xf32>
    %cst_33 = arith.constant 1.000000e+00 : f32
    %466 = vector.broadcast %cst_33 : f32 to vector<2x8xf32>
    %467 = arith.addf %466, %465 : vector<2x8xf32>
    %468 = arith.divf %466, %467 : vector<2x8xf32>
    %469 = vector.extract_strided_slice %411 {offsets = [0, 8], sizes = [2, 8], strides = [1, 1]} : vector<2x24xf32> to vector<2x8xf32>
    %470 = vector.extract_strided_slice %460 {offsets = [0, 8], sizes = [2, 8], strides = [1, 1]} : vector<2x24xf32> to vector<2x8xf32>
    %471 = arith.addf %469, %470 : vector<2x8xf32>
    %472 = arith.negf %471 : vector<2x8xf32>
    %473 = math.exp %472 : vector<2x8xf32>
    %cst_34 = arith.constant 1.000000e+00 : f32
    %474 = vector.broadcast %cst_34 : f32 to vector<2x8xf32>
    %475 = arith.addf %474, %473 : vector<2x8xf32>
    %476 = arith.divf %474, %475 : vector<2x8xf32>
    %477 = vector.extract_strided_slice %411 {offsets = [0, 16], sizes = [2, 8], strides = [1, 1]} : vector<2x24xf32> to vector<2x8xf32>
    %478 = vector.extract_strided_slice %460 {offsets = [0, 16], sizes = [2, 8], strides = [1, 1]} : vector<2x24xf32> to vector<2x8xf32>
    %479 = arith.mulf %468, %478 : vector<2x8xf32>
    %480 = arith.addf %477, %479 : vector<2x8xf32>
    %481 = math.tanh %480 : vector<2x8xf32>
    %cst_35 = arith.constant 1.000000e+00 : f32
    %482 = vector.broadcast %cst_35 : f32 to vector<2x8xf32>
    %483 = arith.subf %482, %476 : vector<2x8xf32>
    %484 = arith.mulf %483, %481 : vector<2x8xf32>
    %485 = arith.mulf %476, %410 : vector<2x8xf32>
    %486 = arith.addf %484, %485 : vector<2x8xf32>
    %487 = vector.extract_strided_slice %29 {offsets = [12, 0], sizes = [2, 24], strides = [1, 1]} : vector<20x24xf32> to vector<2x24xf32>
    %488 = vector.extract_strided_slice %486 {offsets = [0, 0], sizes = [2, 1], strides = [1, 1]} : vector<2x8xf32> to vector<2x1xf32>
    %489 = vector.extract_strided_slice %22 {offsets = [0, 0], sizes = [1, 24], strides = [1, 1]} : vector<8x24xf32> to vector<1x24xf32>
    %490 = vector.broadcast %488 : vector<2x1xf32> to vector<2x24xf32>
    %491 = vector.broadcast %489 : vector<1x24xf32> to vector<2x24xf32>
    %492 = arith.mulf %490, %491 : vector<2x24xf32>
    %493 = vector.broadcast %25 : vector<1x24xf32> to vector<2x24xf32>
    %494 = arith.addf %493, %492 : vector<2x24xf32>
    %495 = vector.extract_strided_slice %486 {offsets = [0, 1], sizes = [2, 1], strides = [1, 1]} : vector<2x8xf32> to vector<2x1xf32>
    %496 = vector.extract_strided_slice %22 {offsets = [1, 0], sizes = [1, 24], strides = [1, 1]} : vector<8x24xf32> to vector<1x24xf32>
    %497 = vector.broadcast %495 : vector<2x1xf32> to vector<2x24xf32>
    %498 = vector.broadcast %496 : vector<1x24xf32> to vector<2x24xf32>
    %499 = arith.mulf %497, %498 : vector<2x24xf32>
    %500 = arith.addf %494, %499 : vector<2x24xf32>
    %501 = vector.extract_strided_slice %486 {offsets = [0, 2], sizes = [2, 1], strides = [1, 1]} : vector<2x8xf32> to vector<2x1xf32>
    %502 = vector.extract_strided_slice %22 {offsets = [2, 0], sizes = [1, 24], strides = [1, 1]} : vector<8x24xf32> to vector<1x24xf32>
    %503 = vector.broadcast %501 : vector<2x1xf32> to vector<2x24xf32>
    %504 = vector.broadcast %502 : vector<1x24xf32> to vector<2x24xf32>
    %505 = arith.mulf %503, %504 : vector<2x24xf32>
    %506 = arith.addf %500, %505 : vector<2x24xf32>
    %507 = vector.extract_strided_slice %486 {offsets = [0, 3], sizes = [2, 1], strides = [1, 1]} : vector<2x8xf32> to vector<2x1xf32>
    %508 = vector.extract_strided_slice %22 {offsets = [3, 0], sizes = [1, 24], strides = [1, 1]} : vector<8x24xf32> to vector<1x24xf32>
    %509 = vector.broadcast %507 : vector<2x1xf32> to vector<2x24xf32>
    %510 = vector.broadcast %508 : vector<1x24xf32> to vector<2x24xf32>
    %511 = arith.mulf %509, %510 : vector<2x24xf32>
    %512 = arith.addf %506, %511 : vector<2x24xf32>
    %513 = vector.extract_strided_slice %486 {offsets = [0, 4], sizes = [2, 1], strides = [1, 1]} : vector<2x8xf32> to vector<2x1xf32>
    %514 = vector.extract_strided_slice %22 {offsets = [4, 0], sizes = [1, 24], strides = [1, 1]} : vector<8x24xf32> to vector<1x24xf32>
    %515 = vector.broadcast %513 : vector<2x1xf32> to vector<2x24xf32>
    %516 = vector.broadcast %514 : vector<1x24xf32> to vector<2x24xf32>
    %517 = arith.mulf %515, %516 : vector<2x24xf32>
    %518 = arith.addf %512, %517 : vector<2x24xf32>
    %519 = vector.extract_strided_slice %486 {offsets = [0, 5], sizes = [2, 1], strides = [1, 1]} : vector<2x8xf32> to vector<2x1xf32>
    %520 = vector.extract_strided_slice %22 {offsets = [5, 0], sizes = [1, 24], strides = [1, 1]} : vector<8x24xf32> to vector<1x24xf32>
    %521 = vector.broadcast %519 : vector<2x1xf32> to vector<2x24xf32>
    %522 = vector.broadcast %520 : vector<1x24xf32> to vector<2x24xf32>
    %523 = arith.mulf %521, %522 : vector<2x24xf32>
    %524 = arith.addf %518, %523 : vector<2x24xf32>
    %525 = vector.extract_strided_slice %486 {offsets = [0, 6], sizes = [2, 1], strides = [1, 1]} : vector<2x8xf32> to vector<2x1xf32>
    %526 = vector.extract_strided_slice %22 {offsets = [6, 0], sizes = [1, 24], strides = [1, 1]} : vector<8x24xf32> to vector<1x24xf32>
    %527 = vector.broadcast %525 : vector<2x1xf32> to vector<2x24xf32>
    %528 = vector.broadcast %526 : vector<1x24xf32> to vector<2x24xf32>
    %529 = arith.mulf %527, %528 : vector<2x24xf32>
    %530 = arith.addf %524, %529 : vector<2x24xf32>
    %531 = vector.extract_strided_slice %486 {offsets = [0, 7], sizes = [2, 1], strides = [1, 1]} : vector<2x8xf32> to vector<2x1xf32>
    %532 = vector.extract_strided_slice %22 {offsets = [7, 0], sizes = [1, 24], strides = [1, 1]} : vector<8x24xf32> to vector<1x24xf32>
    %533 = vector.broadcast %531 : vector<2x1xf32> to vector<2x24xf32>
    %534 = vector.broadcast %532 : vector<1x24xf32> to vector<2x24xf32>
    %535 = arith.mulf %533, %534 : vector<2x24xf32>
    %536 = arith.addf %530, %535 : vector<2x24xf32>
    %537 = vector.extract_strided_slice %487 {offsets = [0, 0], sizes = [2, 8], strides = [1, 1]} : vector<2x24xf32> to vector<2x8xf32>
    %538 = vector.extract_strided_slice %536 {offsets = [0, 0], sizes = [2, 8], strides = [1, 1]} : vector<2x24xf32> to vector<2x8xf32>
    %539 = arith.addf %537, %538 : vector<2x8xf32>
    %540 = arith.negf %539 : vector<2x8xf32>
    %541 = math.exp %540 : vector<2x8xf32>
    %cst_36 = arith.constant 1.000000e+00 : f32
    %542 = vector.broadcast %cst_36 : f32 to vector<2x8xf32>
    %543 = arith.addf %542, %541 : vector<2x8xf32>
    %544 = arith.divf %542, %543 : vector<2x8xf32>
    %545 = vector.extract_strided_slice %487 {offsets = [0, 8], sizes = [2, 8], strides = [1, 1]} : vector<2x24xf32> to vector<2x8xf32>
    %546 = vector.extract_strided_slice %536 {offsets = [0, 8], sizes = [2, 8], strides = [1, 1]} : vector<2x24xf32> to vector<2x8xf32>
    %547 = arith.addf %545, %546 : vector<2x8xf32>
    %548 = arith.negf %547 : vector<2x8xf32>
    %549 = math.exp %548 : vector<2x8xf32>
    %cst_37 = arith.constant 1.000000e+00 : f32
    %550 = vector.broadcast %cst_37 : f32 to vector<2x8xf32>
    %551 = arith.addf %550, %549 : vector<2x8xf32>
    %552 = arith.divf %550, %551 : vector<2x8xf32>
    %553 = vector.extract_strided_slice %487 {offsets = [0, 16], sizes = [2, 8], strides = [1, 1]} : vector<2x24xf32> to vector<2x8xf32>
    %554 = vector.extract_strided_slice %536 {offsets = [0, 16], sizes = [2, 8], strides = [1, 1]} : vector<2x24xf32> to vector<2x8xf32>
    %555 = arith.mulf %544, %554 : vector<2x8xf32>
    %556 = arith.addf %553, %555 : vector<2x8xf32>
    %557 = math.tanh %556 : vector<2x8xf32>
    %cst_38 = arith.constant 1.000000e+00 : f32
    %558 = vector.broadcast %cst_38 : f32 to vector<2x8xf32>
    %559 = arith.subf %558, %552 : vector<2x8xf32>
    %560 = arith.mulf %559, %557 : vector<2x8xf32>
    %561 = arith.mulf %552, %486 : vector<2x8xf32>
    %562 = arith.addf %560, %561 : vector<2x8xf32>
    %563 = vector.extract_strided_slice %29 {offsets = [14, 0], sizes = [2, 24], strides = [1, 1]} : vector<20x24xf32> to vector<2x24xf32>
    %564 = vector.extract_strided_slice %562 {offsets = [0, 0], sizes = [2, 1], strides = [1, 1]} : vector<2x8xf32> to vector<2x1xf32>
    %565 = vector.extract_strided_slice %22 {offsets = [0, 0], sizes = [1, 24], strides = [1, 1]} : vector<8x24xf32> to vector<1x24xf32>
    %566 = vector.broadcast %564 : vector<2x1xf32> to vector<2x24xf32>
    %567 = vector.broadcast %565 : vector<1x24xf32> to vector<2x24xf32>
    %568 = arith.mulf %566, %567 : vector<2x24xf32>
    %569 = vector.broadcast %25 : vector<1x24xf32> to vector<2x24xf32>
    %570 = arith.addf %569, %568 : vector<2x24xf32>
    %571 = vector.extract_strided_slice %562 {offsets = [0, 1], sizes = [2, 1], strides = [1, 1]} : vector<2x8xf32> to vector<2x1xf32>
    %572 = vector.extract_strided_slice %22 {offsets = [1, 0], sizes = [1, 24], strides = [1, 1]} : vector<8x24xf32> to vector<1x24xf32>
    %573 = vector.broadcast %571 : vector<2x1xf32> to vector<2x24xf32>
    %574 = vector.broadcast %572 : vector<1x24xf32> to vector<2x24xf32>
    %575 = arith.mulf %573, %574 : vector<2x24xf32>
    %576 = arith.addf %570, %575 : vector<2x24xf32>
    %577 = vector.extract_strided_slice %562 {offsets = [0, 2], sizes = [2, 1], strides = [1, 1]} : vector<2x8xf32> to vector<2x1xf32>
    %578 = vector.extract_strided_slice %22 {offsets = [2, 0], sizes = [1, 24], strides = [1, 1]} : vector<8x24xf32> to vector<1x24xf32>
    %579 = vector.broadcast %577 : vector<2x1xf32> to vector<2x24xf32>
    %580 = vector.broadcast %578 : vector<1x24xf32> to vector<2x24xf32>
    %581 = arith.mulf %579, %580 : vector<2x24xf32>
    %582 = arith.addf %576, %581 : vector<2x24xf32>
    %583 = vector.extract_strided_slice %562 {offsets = [0, 3], sizes = [2, 1], strides = [1, 1]} : vector<2x8xf32> to vector<2x1xf32>
    %584 = vector.extract_strided_slice %22 {offsets = [3, 0], sizes = [1, 24], strides = [1, 1]} : vector<8x24xf32> to vector<1x24xf32>
    %585 = vector.broadcast %583 : vector<2x1xf32> to vector<2x24xf32>
    %586 = vector.broadcast %584 : vector<1x24xf32> to vector<2x24xf32>
    %587 = arith.mulf %585, %586 : vector<2x24xf32>
    %588 = arith.addf %582, %587 : vector<2x24xf32>
    %589 = vector.extract_strided_slice %562 {offsets = [0, 4], sizes = [2, 1], strides = [1, 1]} : vector<2x8xf32> to vector<2x1xf32>
    %590 = vector.extract_strided_slice %22 {offsets = [4, 0], sizes = [1, 24], strides = [1, 1]} : vector<8x24xf32> to vector<1x24xf32>
    %591 = vector.broadcast %589 : vector<2x1xf32> to vector<2x24xf32>
    %592 = vector.broadcast %590 : vector<1x24xf32> to vector<2x24xf32>
    %593 = arith.mulf %591, %592 : vector<2x24xf32>
    %594 = arith.addf %588, %593 : vector<2x24xf32>
    %595 = vector.extract_strided_slice %562 {offsets = [0, 5], sizes = [2, 1], strides = [1, 1]} : vector<2x8xf32> to vector<2x1xf32>
    %596 = vector.extract_strided_slice %22 {offsets = [5, 0], sizes = [1, 24], strides = [1, 1]} : vector<8x24xf32> to vector<1x24xf32>
    %597 = vector.broadcast %595 : vector<2x1xf32> to vector<2x24xf32>
    %598 = vector.broadcast %596 : vector<1x24xf32> to vector<2x24xf32>
    %599 = arith.mulf %597, %598 : vector<2x24xf32>
    %600 = arith.addf %594, %599 : vector<2x24xf32>
    %601 = vector.extract_strided_slice %562 {offsets = [0, 6], sizes = [2, 1], strides = [1, 1]} : vector<2x8xf32> to vector<2x1xf32>
    %602 = vector.extract_strided_slice %22 {offsets = [6, 0], sizes = [1, 24], strides = [1, 1]} : vector<8x24xf32> to vector<1x24xf32>
    %603 = vector.broadcast %601 : vector<2x1xf32> to vector<2x24xf32>
    %604 = vector.broadcast %602 : vector<1x24xf32> to vector<2x24xf32>
    %605 = arith.mulf %603, %604 : vector<2x24xf32>
    %606 = arith.addf %600, %605 : vector<2x24xf32>
    %607 = vector.extract_strided_slice %562 {offsets = [0, 7], sizes = [2, 1], strides = [1, 1]} : vector<2x8xf32> to vector<2x1xf32>
    %608 = vector.extract_strided_slice %22 {offsets = [7, 0], sizes = [1, 24], strides = [1, 1]} : vector<8x24xf32> to vector<1x24xf32>
    %609 = vector.broadcast %607 : vector<2x1xf32> to vector<2x24xf32>
    %610 = vector.broadcast %608 : vector<1x24xf32> to vector<2x24xf32>
    %611 = arith.mulf %609, %610 : vector<2x24xf32>
    %612 = arith.addf %606, %611 : vector<2x24xf32>
    %613 = vector.extract_strided_slice %563 {offsets = [0, 0], sizes = [2, 8], strides = [1, 1]} : vector<2x24xf32> to vector<2x8xf32>
    %614 = vector.extract_strided_slice %612 {offsets = [0, 0], sizes = [2, 8], strides = [1, 1]} : vector<2x24xf32> to vector<2x8xf32>
    %615 = arith.addf %613, %614 : vector<2x8xf32>
    %616 = arith.negf %615 : vector<2x8xf32>
    %617 = math.exp %616 : vector<2x8xf32>
    %cst_39 = arith.constant 1.000000e+00 : f32
    %618 = vector.broadcast %cst_39 : f32 to vector<2x8xf32>
    %619 = arith.addf %618, %617 : vector<2x8xf32>
    %620 = arith.divf %618, %619 : vector<2x8xf32>
    %621 = vector.extract_strided_slice %563 {offsets = [0, 8], sizes = [2, 8], strides = [1, 1]} : vector<2x24xf32> to vector<2x8xf32>
    %622 = vector.extract_strided_slice %612 {offsets = [0, 8], sizes = [2, 8], strides = [1, 1]} : vector<2x24xf32> to vector<2x8xf32>
    %623 = arith.addf %621, %622 : vector<2x8xf32>
    %624 = arith.negf %623 : vector<2x8xf32>
    %625 = math.exp %624 : vector<2x8xf32>
    %cst_40 = arith.constant 1.000000e+00 : f32
    %626 = vector.broadcast %cst_40 : f32 to vector<2x8xf32>
    %627 = arith.addf %626, %625 : vector<2x8xf32>
    %628 = arith.divf %626, %627 : vector<2x8xf32>
    %629 = vector.extract_strided_slice %563 {offsets = [0, 16], sizes = [2, 8], strides = [1, 1]} : vector<2x24xf32> to vector<2x8xf32>
    %630 = vector.extract_strided_slice %612 {offsets = [0, 16], sizes = [2, 8], strides = [1, 1]} : vector<2x24xf32> to vector<2x8xf32>
    %631 = arith.mulf %620, %630 : vector<2x8xf32>
    %632 = arith.addf %629, %631 : vector<2x8xf32>
    %633 = math.tanh %632 : vector<2x8xf32>
    %cst_41 = arith.constant 1.000000e+00 : f32
    %634 = vector.broadcast %cst_41 : f32 to vector<2x8xf32>
    %635 = arith.subf %634, %628 : vector<2x8xf32>
    %636 = arith.mulf %635, %633 : vector<2x8xf32>
    %637 = arith.mulf %628, %562 : vector<2x8xf32>
    %638 = arith.addf %636, %637 : vector<2x8xf32>
    %639 = vector.extract_strided_slice %29 {offsets = [16, 0], sizes = [2, 24], strides = [1, 1]} : vector<20x24xf32> to vector<2x24xf32>
    %640 = vector.extract_strided_slice %638 {offsets = [0, 0], sizes = [2, 1], strides = [1, 1]} : vector<2x8xf32> to vector<2x1xf32>
    %641 = vector.extract_strided_slice %22 {offsets = [0, 0], sizes = [1, 24], strides = [1, 1]} : vector<8x24xf32> to vector<1x24xf32>
    %642 = vector.broadcast %640 : vector<2x1xf32> to vector<2x24xf32>
    %643 = vector.broadcast %641 : vector<1x24xf32> to vector<2x24xf32>
    %644 = arith.mulf %642, %643 : vector<2x24xf32>
    %645 = vector.broadcast %25 : vector<1x24xf32> to vector<2x24xf32>
    %646 = arith.addf %645, %644 : vector<2x24xf32>
    %647 = vector.extract_strided_slice %638 {offsets = [0, 1], sizes = [2, 1], strides = [1, 1]} : vector<2x8xf32> to vector<2x1xf32>
    %648 = vector.extract_strided_slice %22 {offsets = [1, 0], sizes = [1, 24], strides = [1, 1]} : vector<8x24xf32> to vector<1x24xf32>
    %649 = vector.broadcast %647 : vector<2x1xf32> to vector<2x24xf32>
    %650 = vector.broadcast %648 : vector<1x24xf32> to vector<2x24xf32>
    %651 = arith.mulf %649, %650 : vector<2x24xf32>
    %652 = arith.addf %646, %651 : vector<2x24xf32>
    %653 = vector.extract_strided_slice %638 {offsets = [0, 2], sizes = [2, 1], strides = [1, 1]} : vector<2x8xf32> to vector<2x1xf32>
    %654 = vector.extract_strided_slice %22 {offsets = [2, 0], sizes = [1, 24], strides = [1, 1]} : vector<8x24xf32> to vector<1x24xf32>
    %655 = vector.broadcast %653 : vector<2x1xf32> to vector<2x24xf32>
    %656 = vector.broadcast %654 : vector<1x24xf32> to vector<2x24xf32>
    %657 = arith.mulf %655, %656 : vector<2x24xf32>
    %658 = arith.addf %652, %657 : vector<2x24xf32>
    %659 = vector.extract_strided_slice %638 {offsets = [0, 3], sizes = [2, 1], strides = [1, 1]} : vector<2x8xf32> to vector<2x1xf32>
    %660 = vector.extract_strided_slice %22 {offsets = [3, 0], sizes = [1, 24], strides = [1, 1]} : vector<8x24xf32> to vector<1x24xf32>
    %661 = vector.broadcast %659 : vector<2x1xf32> to vector<2x24xf32>
    %662 = vector.broadcast %660 : vector<1x24xf32> to vector<2x24xf32>
    %663 = arith.mulf %661, %662 : vector<2x24xf32>
    %664 = arith.addf %658, %663 : vector<2x24xf32>
    %665 = vector.extract_strided_slice %638 {offsets = [0, 4], sizes = [2, 1], strides = [1, 1]} : vector<2x8xf32> to vector<2x1xf32>
    %666 = vector.extract_strided_slice %22 {offsets = [4, 0], sizes = [1, 24], strides = [1, 1]} : vector<8x24xf32> to vector<1x24xf32>
    %667 = vector.broadcast %665 : vector<2x1xf32> to vector<2x24xf32>
    %668 = vector.broadcast %666 : vector<1x24xf32> to vector<2x24xf32>
    %669 = arith.mulf %667, %668 : vector<2x24xf32>
    %670 = arith.addf %664, %669 : vector<2x24xf32>
    %671 = vector.extract_strided_slice %638 {offsets = [0, 5], sizes = [2, 1], strides = [1, 1]} : vector<2x8xf32> to vector<2x1xf32>
    %672 = vector.extract_strided_slice %22 {offsets = [5, 0], sizes = [1, 24], strides = [1, 1]} : vector<8x24xf32> to vector<1x24xf32>
    %673 = vector.broadcast %671 : vector<2x1xf32> to vector<2x24xf32>
    %674 = vector.broadcast %672 : vector<1x24xf32> to vector<2x24xf32>
    %675 = arith.mulf %673, %674 : vector<2x24xf32>
    %676 = arith.addf %670, %675 : vector<2x24xf32>
    %677 = vector.extract_strided_slice %638 {offsets = [0, 6], sizes = [2, 1], strides = [1, 1]} : vector<2x8xf32> to vector<2x1xf32>
    %678 = vector.extract_strided_slice %22 {offsets = [6, 0], sizes = [1, 24], strides = [1, 1]} : vector<8x24xf32> to vector<1x24xf32>
    %679 = vector.broadcast %677 : vector<2x1xf32> to vector<2x24xf32>
    %680 = vector.broadcast %678 : vector<1x24xf32> to vector<2x24xf32>
    %681 = arith.mulf %679, %680 : vector<2x24xf32>
    %682 = arith.addf %676, %681 : vector<2x24xf32>
    %683 = vector.extract_strided_slice %638 {offsets = [0, 7], sizes = [2, 1], strides = [1, 1]} : vector<2x8xf32> to vector<2x1xf32>
    %684 = vector.extract_strided_slice %22 {offsets = [7, 0], sizes = [1, 24], strides = [1, 1]} : vector<8x24xf32> to vector<1x24xf32>
    %685 = vector.broadcast %683 : vector<2x1xf32> to vector<2x24xf32>
    %686 = vector.broadcast %684 : vector<1x24xf32> to vector<2x24xf32>
    %687 = arith.mulf %685, %686 : vector<2x24xf32>
    %688 = arith.addf %682, %687 : vector<2x24xf32>
    %689 = vector.extract_strided_slice %639 {offsets = [0, 0], sizes = [2, 8], strides = [1, 1]} : vector<2x24xf32> to vector<2x8xf32>
    %690 = vector.extract_strided_slice %688 {offsets = [0, 0], sizes = [2, 8], strides = [1, 1]} : vector<2x24xf32> to vector<2x8xf32>
    %691 = arith.addf %689, %690 : vector<2x8xf32>
    %692 = arith.negf %691 : vector<2x8xf32>
    %693 = math.exp %692 : vector<2x8xf32>
    %cst_42 = arith.constant 1.000000e+00 : f32
    %694 = vector.broadcast %cst_42 : f32 to vector<2x8xf32>
    %695 = arith.addf %694, %693 : vector<2x8xf32>
    %696 = arith.divf %694, %695 : vector<2x8xf32>
    %697 = vector.extract_strided_slice %639 {offsets = [0, 8], sizes = [2, 8], strides = [1, 1]} : vector<2x24xf32> to vector<2x8xf32>
    %698 = vector.extract_strided_slice %688 {offsets = [0, 8], sizes = [2, 8], strides = [1, 1]} : vector<2x24xf32> to vector<2x8xf32>
    %699 = arith.addf %697, %698 : vector<2x8xf32>
    %700 = arith.negf %699 : vector<2x8xf32>
    %701 = math.exp %700 : vector<2x8xf32>
    %cst_43 = arith.constant 1.000000e+00 : f32
    %702 = vector.broadcast %cst_43 : f32 to vector<2x8xf32>
    %703 = arith.addf %702, %701 : vector<2x8xf32>
    %704 = arith.divf %702, %703 : vector<2x8xf32>
    %705 = vector.extract_strided_slice %639 {offsets = [0, 16], sizes = [2, 8], strides = [1, 1]} : vector<2x24xf32> to vector<2x8xf32>
    %706 = vector.extract_strided_slice %688 {offsets = [0, 16], sizes = [2, 8], strides = [1, 1]} : vector<2x24xf32> to vector<2x8xf32>
    %707 = arith.mulf %696, %706 : vector<2x8xf32>
    %708 = arith.addf %705, %707 : vector<2x8xf32>
    %709 = math.tanh %708 : vector<2x8xf32>
    %cst_44 = arith.constant 1.000000e+00 : f32
    %710 = vector.broadcast %cst_44 : f32 to vector<2x8xf32>
    %711 = arith.subf %710, %704 : vector<2x8xf32>
    %712 = arith.mulf %711, %709 : vector<2x8xf32>
    %713 = arith.mulf %704, %638 : vector<2x8xf32>
    %714 = arith.addf %712, %713 : vector<2x8xf32>
    %715 = vector.extract_strided_slice %29 {offsets = [18, 0], sizes = [2, 24], strides = [1, 1]} : vector<20x24xf32> to vector<2x24xf32>
    %716 = vector.extract_strided_slice %714 {offsets = [0, 0], sizes = [2, 1], strides = [1, 1]} : vector<2x8xf32> to vector<2x1xf32>
    %717 = vector.extract_strided_slice %22 {offsets = [0, 0], sizes = [1, 24], strides = [1, 1]} : vector<8x24xf32> to vector<1x24xf32>
    %718 = vector.broadcast %716 : vector<2x1xf32> to vector<2x24xf32>
    %719 = vector.broadcast %717 : vector<1x24xf32> to vector<2x24xf32>
    %720 = arith.mulf %718, %719 : vector<2x24xf32>
    %721 = vector.broadcast %25 : vector<1x24xf32> to vector<2x24xf32>
    %722 = arith.addf %721, %720 : vector<2x24xf32>
    %723 = vector.extract_strided_slice %714 {offsets = [0, 1], sizes = [2, 1], strides = [1, 1]} : vector<2x8xf32> to vector<2x1xf32>
    %724 = vector.extract_strided_slice %22 {offsets = [1, 0], sizes = [1, 24], strides = [1, 1]} : vector<8x24xf32> to vector<1x24xf32>
    %725 = vector.broadcast %723 : vector<2x1xf32> to vector<2x24xf32>
    %726 = vector.broadcast %724 : vector<1x24xf32> to vector<2x24xf32>
    %727 = arith.mulf %725, %726 : vector<2x24xf32>
    %728 = arith.addf %722, %727 : vector<2x24xf32>
    %729 = vector.extract_strided_slice %714 {offsets = [0, 2], sizes = [2, 1], strides = [1, 1]} : vector<2x8xf32> to vector<2x1xf32>
    %730 = vector.extract_strided_slice %22 {offsets = [2, 0], sizes = [1, 24], strides = [1, 1]} : vector<8x24xf32> to vector<1x24xf32>
    %731 = vector.broadcast %729 : vector<2x1xf32> to vector<2x24xf32>
    %732 = vector.broadcast %730 : vector<1x24xf32> to vector<2x24xf32>
    %733 = arith.mulf %731, %732 : vector<2x24xf32>
    %734 = arith.addf %728, %733 : vector<2x24xf32>
    %735 = vector.extract_strided_slice %714 {offsets = [0, 3], sizes = [2, 1], strides = [1, 1]} : vector<2x8xf32> to vector<2x1xf32>
    %736 = vector.extract_strided_slice %22 {offsets = [3, 0], sizes = [1, 24], strides = [1, 1]} : vector<8x24xf32> to vector<1x24xf32>
    %737 = vector.broadcast %735 : vector<2x1xf32> to vector<2x24xf32>
    %738 = vector.broadcast %736 : vector<1x24xf32> to vector<2x24xf32>
    %739 = arith.mulf %737, %738 : vector<2x24xf32>
    %740 = arith.addf %734, %739 : vector<2x24xf32>
    %741 = vector.extract_strided_slice %714 {offsets = [0, 4], sizes = [2, 1], strides = [1, 1]} : vector<2x8xf32> to vector<2x1xf32>
    %742 = vector.extract_strided_slice %22 {offsets = [4, 0], sizes = [1, 24], strides = [1, 1]} : vector<8x24xf32> to vector<1x24xf32>
    %743 = vector.broadcast %741 : vector<2x1xf32> to vector<2x24xf32>
    %744 = vector.broadcast %742 : vector<1x24xf32> to vector<2x24xf32>
    %745 = arith.mulf %743, %744 : vector<2x24xf32>
    %746 = arith.addf %740, %745 : vector<2x24xf32>
    %747 = vector.extract_strided_slice %714 {offsets = [0, 5], sizes = [2, 1], strides = [1, 1]} : vector<2x8xf32> to vector<2x1xf32>
    %748 = vector.extract_strided_slice %22 {offsets = [5, 0], sizes = [1, 24], strides = [1, 1]} : vector<8x24xf32> to vector<1x24xf32>
    %749 = vector.broadcast %747 : vector<2x1xf32> to vector<2x24xf32>
    %750 = vector.broadcast %748 : vector<1x24xf32> to vector<2x24xf32>
    %751 = arith.mulf %749, %750 : vector<2x24xf32>
    %752 = arith.addf %746, %751 : vector<2x24xf32>
    %753 = vector.extract_strided_slice %714 {offsets = [0, 6], sizes = [2, 1], strides = [1, 1]} : vector<2x8xf32> to vector<2x1xf32>
    %754 = vector.extract_strided_slice %22 {offsets = [6, 0], sizes = [1, 24], strides = [1, 1]} : vector<8x24xf32> to vector<1x24xf32>
    %755 = vector.broadcast %753 : vector<2x1xf32> to vector<2x24xf32>
    %756 = vector.broadcast %754 : vector<1x24xf32> to vector<2x24xf32>
    %757 = arith.mulf %755, %756 : vector<2x24xf32>
    %758 = arith.addf %752, %757 : vector<2x24xf32>
    %759 = vector.extract_strided_slice %714 {offsets = [0, 7], sizes = [2, 1], strides = [1, 1]} : vector<2x8xf32> to vector<2x1xf32>
    %760 = vector.extract_strided_slice %22 {offsets = [7, 0], sizes = [1, 24], strides = [1, 1]} : vector<8x24xf32> to vector<1x24xf32>
    %761 = vector.broadcast %759 : vector<2x1xf32> to vector<2x24xf32>
    %762 = vector.broadcast %760 : vector<1x24xf32> to vector<2x24xf32>
    %763 = arith.mulf %761, %762 : vector<2x24xf32>
    %764 = arith.addf %758, %763 : vector<2x24xf32>
    %765 = vector.extract_strided_slice %715 {offsets = [0, 0], sizes = [2, 8], strides = [1, 1]} : vector<2x24xf32> to vector<2x8xf32>
    %766 = vector.extract_strided_slice %764 {offsets = [0, 0], sizes = [2, 8], strides = [1, 1]} : vector<2x24xf32> to vector<2x8xf32>
    %767 = arith.addf %765, %766 : vector<2x8xf32>
    %768 = arith.negf %767 : vector<2x8xf32>
    %769 = math.exp %768 : vector<2x8xf32>
    %cst_45 = arith.constant 1.000000e+00 : f32
    %770 = vector.broadcast %cst_45 : f32 to vector<2x8xf32>
    %771 = arith.addf %770, %769 : vector<2x8xf32>
    %772 = arith.divf %770, %771 : vector<2x8xf32>
    %773 = vector.extract_strided_slice %715 {offsets = [0, 8], sizes = [2, 8], strides = [1, 1]} : vector<2x24xf32> to vector<2x8xf32>
    %774 = vector.extract_strided_slice %764 {offsets = [0, 8], sizes = [2, 8], strides = [1, 1]} : vector<2x24xf32> to vector<2x8xf32>
    %775 = arith.addf %773, %774 : vector<2x8xf32>
    %776 = arith.negf %775 : vector<2x8xf32>
    %777 = math.exp %776 : vector<2x8xf32>
    %cst_46 = arith.constant 1.000000e+00 : f32
    %778 = vector.broadcast %cst_46 : f32 to vector<2x8xf32>
    %779 = arith.addf %778, %777 : vector<2x8xf32>
    %780 = arith.divf %778, %779 : vector<2x8xf32>
    %781 = vector.extract_strided_slice %715 {offsets = [0, 16], sizes = [2, 8], strides = [1, 1]} : vector<2x24xf32> to vector<2x8xf32>
    %782 = vector.extract_strided_slice %764 {offsets = [0, 16], sizes = [2, 8], strides = [1, 1]} : vector<2x24xf32> to vector<2x8xf32>
    %783 = arith.mulf %772, %782 : vector<2x8xf32>
    %784 = arith.addf %781, %783 : vector<2x8xf32>
    %785 = math.tanh %784 : vector<2x8xf32>
    %cst_47 = arith.constant 1.000000e+00 : f32
    %786 = vector.broadcast %cst_47 : f32 to vector<2x8xf32>
    %787 = arith.subf %786, %780 : vector<2x8xf32>
    %788 = arith.mulf %787, %785 : vector<2x8xf32>
    %789 = arith.mulf %780, %714 : vector<2x8xf32>
    %790 = arith.addf %788, %789 : vector<2x8xf32>
    %cst_48 = arith.constant dense<0.000000e+00> : vector<2x32xf32>
    %791 = tpu.matmul %790, %23, %cst_48 {dimension_numbers = #tpu.dot_dimension_numbers<[1], [0], [0], [1], [0, 0, 1, 1], [], []>} : vector<2x8xf32>, vector<8x32xf32>, vector<2x32xf32> -> vector<2x32xf32>
    %792 = vector.broadcast %26 : vector<1x32xf32> to vector<2x32xf32>
    %793 = arith.addf %791, %792 : vector<2x32xf32>
    %c0_49 = arith.constant 0 : index
    %c0_50 = arith.constant 0 : index
    %794 = vector.load %arg3[%c0_49, %c0_50] : memref<2x32xf32, #tpu.memory_space<vmem>>, vector<2x32xf32>
    tpu.vector_store %arg3[%c0_49, %c0_50], %793 {strides = array<i32>} : memref<2x32xf32, #tpu.memory_space<vmem>>, vector<2x32xf32>,
    return
  }
}

</mosaic_0001>

<llo_original>
// kernel: custom-call.1
$region0: #{custom-call.1}
  %s0 = inlined_call_operand.hbm [shape: c64[2,4,10], index: 0, kind: input, shape index: {}]
  %s1 = inlined_call_operand.vmem [shape: f32[2,4,10], index: 1, kind: output, shape index: {}]
  %s2 = scalar_lea.hbm %s0, 8
  $region1: #{custom-call.1} parent=0
    #allocation0 [shape = 's32[1]{0}', space=sflag, size = 0x4, scoped, tag = 'scoped memory for custom-call.1']
    %3 = vsyncpa [#allocation0], 0
    %s5 = sshll.u32 %s2, 4
    %s6 = int_to_ptr.hbm [resolvable:$true] %s5
    %s7 = sshll.u32 %s1, 4
    %s8 = int_to_ptr.vmem [resolvable:$true] %s7
    %10 = dma.hbm_to_vmem [thread:$0]  %s6, 128, %s8, [#allocation0]
    %12 = dma.done [#allocation0], 128
    %13 = vsyncpa [#allocation0], 1

// kernel: custom-call
$region0: #{custom-call}
  %s0 = inlined_call_operand.hbm [shape: c64[2,4,10], index: 0, kind: input, shape index: {}]
  %s1 = inlined_call_operand.vmem [shape: f32[2,4,10], index: 1, kind: output, shape index: {}]
  $region1: #{custom-call} parent=0
    #allocation0 [shape = 's32[1]{0}', space=sflag, size = 0x4, scoped, tag = 'scoped memory for custom-call']
    %2 = vsyncpa [#allocation0], 0
    %s4 = sshll.u32 %s0, 4
    %s5 = int_to_ptr.hbm [resolvable:$true] %s4
    %s6 = sshll.u32 %s1, 4
    %s7 = int_to_ptr.vmem [resolvable:$true] %s6
    %9 = dma.hbm_to_vmem [thread:$0]  %s5, 128, %s7, [#allocation0]
    %11 = dma.done [#allocation0], 128
    %12 = vsyncpa [#allocation0], 1

// kernel: deep_augmented_music_forward.3
$region0: #{deep_augmented_music_forward.3}
  #allocation0 [shape = 'u32[]', space=smem, size = 0x4, offset = 0x4, fixed_abs, tag = 'smem constant byte address 0x4 - core index']
  #allocation1 [shape = 'u32[72,128]{1,0:T(1,128)}', space=vmem, size = 0x9000, scoped, tag = 'internal scratch']
  %s0 = inlined_call_operand.hbm [shape: f32[2,32], index: 0, kind: input, shape index: {}]
  %s1 = inlined_call_operand.vmem [shape: f32[32,384], index: 1, kind: input, shape index: {}]
  %s2 = inlined_call_operand.vmem [shape: f32[384,8], index: 2, kind: input, shape index: {}]
  %s3 = inlined_call_operand.vmem [shape: f32[11,10], index: 3, kind: input, shape index: {}]
  %s4 = inlined_call_operand.hbm [shape: f32[2,2], index: 4, kind: output, shape index: {}]
  %s5 = sld [smem:[#allocation0]]
  $region30: #{deep_augmented_music_forward.3} parent=0
    _
  %s7 = ssub.s32 1, %s5
  %s8 = scalar_select 0, %s7, %s5
  $region1: #{deep_augmented_music_forward.3} parent=0
    #allocation2 [shape = 'u8[1024]{0}', space=vmem, size = 0x400, scoped, tag = 'input window, operand 0, single buffered']
    #allocation3 [shape = 's32[1]{0}', space=sflag, size = 0x4, scoped, tag = 'scoped memory for deep_augmented_music_forward.3']
    #allocation4 [shape = 's32[1]{0}', space=sflag, size = 0x4, scoped, tag = 'scoped memory for deep_augmented_music_forward.3']
    #allocation5 [shape = 'u8[1024]{0}', space=vmem, size = 0x400, scoped, tag = 'output window, operand 0, single buffered']
    %9 = vsyncpa [#allocation3], 0
    %10 = vsyncpa [#allocation4], 0
    // Predicated region
    $region2: #{deep_augmented_music_forward.3} parent=1 // pred_check
      _
    $region3: #{deep_augmented_music_forward.3} parent=1 // pred_check_branch
      %12 = sbr.rel (0) target = $region5
    $region4: #{deep_augmented_music_forward.3} parent=1 // pred_region
      %14 = vsyncadd [#allocation3], 0
      %s16 = sshll.u32 %s0, 4
      %s17 = int_to_ptr.hbm [resolvable:$true] %s16
      %s18 = sshll.u32 [#allocation2], 4
      %s19 = int_to_ptr.vmem [resolvable:$true] %s18
      %21 = dma.hbm_to_vmem [thread:$0]  %s17, 32, %s19, [#allocation3]
    $region5: #{deep_augmented_music_forward.3} parent=1 // pred_fallthru
      _
    // Predicated region
    $region6: #{deep_augmented_music_forward.3} parent=1 // pred_check
      _
    $region7: #{deep_augmented_music_forward.3} parent=1 // pred_check_branch
      %23 = sbr.rel (0) target = $region9
    $region8: #{deep_augmented_music_forward.3} parent=1 // pred_region
      _
    $region9: #{deep_augmented_music_forward.3} parent=1 // pred_fallthru
      _
    // Predicated region
    $region10: #{deep_augmented_music_forward.3} parent=1 // pred_check
      _
    $region11: #{deep_augmented_music_forward.3} parent=1 // pred_check_branch
      %25 = sbr.rel (0) target = $region13
    $region12: #{deep_augmented_music_forward.3} parent=1 // pred_region
      _
    $region13: #{deep_augmented_music_forward.3} parent=1 // pred_fallthru
      _
    // Predicated region
    $region14: #{deep_augmented_music_forward.3} parent=1 // pred_check
      _
    $region15: #{deep_augmented_music_forward.3} parent=1 // pred_check_branch
      %27 = sbr.rel (0) target = $region17
    $region16: #{deep_augmented_music_forward.3} parent=1 // pred_region
      _
    $region17: #{deep_augmented_music_forward.3} parent=1 // pred_fallthru
      _
    // Predicated region
    $region18: #{deep_augmented_music_forward.3} parent=1 // pred_check
      _
    $region19: #{deep_augmented_music_forward.3} parent=1 // pred_check_branch
      %29 = sbr.rel (0) target = $region21
    $region20: #{deep_augmented_music_forward.3} parent=1 // pred_region
      %31 = dma.done [#allocation3], 32
    $region21: #{deep_augmented_music_forward.3} parent=1 // pred_fallthru
      _
    %v32 = vld [vmem:[#allocation2] sm:$0x3]
    %v33 = vld [vmem:[%s1] sm:$0xff]
    %v34 = vld [vmem:[%s1 + $0x8] sm:$0xff]
    %v35 = vld [vmem:[%s1 + $0x10] sm:$0xff]
    %v36 = vld [vmem:[%s1 + $0x18] sm:$0xff]
    %v37 = vld [vmem:[%s1 + $0x20] sm:$0xff]
    %v38 = vld [vmem:[%s1 + $0x28] sm:$0xff]
    %v39 = vld [vmem:[%s1 + $0x30] sm:$0xff]
    %v40 = vld [vmem:[%s1 + $0x38] sm:$0xff]
    %v41 = vld [vmem:[%s1 + $0x40] sm:$0xff]
    %v42 = vld [vmem:[%s1 + $0x48] sm:$0xff]
    %v43 = vld [vmem:[%s1 + $0x50] sm:$0xff]
    %v44 = vld [vmem:[%s1 + $0x58] sm:$0xff]
    %vm45 = vcmask 261120
    %v47 = vsel %vm45, %v32, 0
    %49 = vmatpush.msra.mxu0 0.0
    %50 = vmatpush.msra.mxu0 0.0
    %51 = vmatpush.msra.mxu0 0.0
    %52 = vmatpush.msra.mxu0 0.0
    %53 = vmatpush.msra.mxu0 0.0
    %54 = vmatpush.msra.mxu0 0.0
    %55 = vmatpush.msra.mxu0 0.0
    %56 = vmatpush.msra.mxu0 0.0
    %57 = vmatpush.msra.mxu0 0.0
    %58 = vmatpush.msra.mxu0 0.0
    %59 = vmatpush.msra.mxu0 0.0
    %60 = vmatpush.msra.mxu0 0.0
    %61 = vmatpush.msra.mxu0 %v42
    %62 = vmatpush.msra.mxu0 %v39
    %63 = vmatpush.msra.mxu0 %v36
    %64 = vmatpush.msra.mxu0 %v33
    %65 = vmatmul.f32.gmra.mxu0 %v47
    %v66 = vpop.f32.mrf.mxu0
    %v67 = vadd.f32 0.0, %v66
    %68 = vdwg.mxu0
    %69 = vmatpush.msra.mxu0 0.0
    %70 = vmatpush.msra.mxu0 0.0
    %71 = vmatpush.msra.mxu0 0.0
    %72 = vmatpush.msra.mxu0 0.0
    %73 = vmatpush.msra.mxu0 0.0
    %74 = vmatpush.msra.mxu0 0.0
    %75 = vmatpush.msra.mxu0 0.0
    %76 = vmatpush.msra.mxu0 0.0
    %77 = vmatpush.msra.mxu0 0.0
    %78 = vmatpush.msra.mxu0 0.0
    %79 = vmatpush.msra.mxu0 0.0
    %80 = vmatpush.msra.mxu0 0.0
    %81 = vmatpush.msra.mxu0 %v43
    %82 = vmatpush.msra.mxu0 %v40
    %83 = vmatpush.msra.mxu0 %v37
    %84 = vmatpush.msra.mxu0 %v34
    %85 = vmatmul.f32.gmra.mxu0 %v47
    %v86 = vpop.f32.mrf.mxu0
    %v87 = vadd.f32 0.0, %v86
    %88 = vdwg.mxu0
    %89 = vmatpush.msra.mxu0 0.0
    %90 = vmatpush.msra.mxu0 0.0
    %91 = vmatpush.msra.mxu0 0.0
    %92 = vmatpush.msra.mxu0 0.0
    %93 = vmatpush.msra.mxu0 0.0
    %94 = vmatpush.msra.mxu0 0.0
    %95 = vmatpush.msra.mxu0 0.0
    %96 = vmatpush.msra.mxu0 0.0
    %97 = vmatpush.msra.mxu0 0.0
    %98 = vmatpush.msra.mxu0 0.0
    %99 = vmatpush.msra.mxu0 0.0
    %100 = vmatpush.msra.mxu0 0.0
    %101 = vmatpush.msra.mxu0 %v44
    %102 = vmatpush.msra.mxu0 %v41
    %103 = vmatpush.msra.mxu0 %v38
    %104 = vmatpush.msra.mxu0 %v35
    %105 = vmatmul.f32.gmra.mxu0 %v47
    %v106 = vpop.f32.mrf.mxu0
    %v107 = vadd.f32 0.0, %v106
    %108 = vdwg.mxu0
    %v109 = vlaneseq
    %v110 = vand.u32 %v109, 127
    %v111 = vadd.s32 %v110, 128
    %v112 = vadd.s32 %v110, 256
    %vm113 = vcmp.lt.s32.totalorder %v110, 361
    %vm114 = vcmp.lt.s32.totalorder %v111, 361
    %vm115 = vcmp.lt.s32.totalorder %v112, 361
    %v116 = vsel %vm113, %v67, 1.0
    %v117 = vsel %vm114, %v87, 1.0
    %v118 = vsel %vm115, %v107, 1.0
    %v119 = vrcp.pop %v116
    %v120 = vmul.f32 %v116, %v119
    %v121 = vsub.f32 1.0, %v120
    %v122 = vmul.f32 %v119, %v121
    %v123 = vadd.f32 %v119, %v122
    %vm124 = vweird.f32 %v116
    %vm125 = vweird.f32 %v119
    %vm126 = vmor %vm124, %vm125
    %v127 = vsel %vm126, %v119, %v123
    %v128 = vand.u32 2147483647, %v116
    %vm129 = vcmp.eq.f32.partialorder %v128, 8.507059e+37
    %v130 = vand.u32 %v116, 2147483648
    %v131 = vor.u32 1.1754944e-38, %v130
    %v132 = vsel %vm129, %v131, %v127
    %v133 = vrcp.pop %v117
    %v134 = vmul.f32 %v117, %v133
    %v135 = vsub.f32 1.0, %v134
    %v136 = vmul.f32 %v133, %v135
    %v137 = vadd.f32 %v133, %v136
    %vm138 = vweird.f32 %v117
    %vm139 = vweird.f32 %v133
    %vm140 = vmor %vm138, %vm139
    %v141 = vsel %vm140, %v133, %v137
    %v142 = vand.u32 2147483647, %v117
    %vm143 = vcmp.eq.f32.partialorder %v142, 8.507059e+37
    %v144 = vand.u32 %v117, 2147483648
    %v145 = vor.u32 1.1754944e-38, %v144
    %v146 = vsel %vm143, %v145, %v141
    %v147 = vrcp.pop %v118
    %v148 = vmul.f32 %v118, %v147
    %v149 = vsub.f32 1.0, %v148
    %v150 = vmul.f32 %v147, %v149
    %v151 = vadd.f32 %v147, %v150
    %vm152 = vweird.f32 %v118
    %vm153 = vweird.f32 %v147
    %vm154 = vmor %vm152, %vm153
    %v155 = vsel %vm154, %v147, %v151
    %v156 = vand.u32 2147483647, %v118
    %vm157 = vcmp.eq.f32.partialorder %v156, 8.507059e+37
    %v158 = vand.u32 %v118, 2147483648
    %v159 = vor.u32 1.1754944e-38, %v158
    %v160 = vsel %vm157, %v159, %v155
    %v161 = vld [vmem:[%s3] sm:$0xff]
    %v162 = vld [vmem:[%s3 + $0x8] sm:$0x1]
    %v163 = vld [vmem:[%s3 + $0x9] sm:$0x1]
    %v164 = vld [vmem:[%s3 + $0xa] sm:$0x1]
    %v165 = vld [vmem:[%s2] sm:$0xff]
    %v166 = vld [vmem:[%s2 + $0x8] sm:$0xff]
    %v167 = vld [vmem:[%s2 + $0x10] sm:$0xff]
    %v168 = vld [vmem:[%s2 + $0x18] sm:$0xff]
    %v169 = vld [vmem:[%s2 + $0x20] sm:$0xff]
    %v170 = vld [vmem:[%s2 + $0x28] sm:$0xff]
    %v171 = vld [vmem:[%s2 + $0x30] sm:$0xff]
    %v172 = vld [vmem:[%s2 + $0x38] sm:$0xff]
    %v173 = vld [vmem:[%s2 + $0x40] sm:$0xff]
    %v174 = vld [vmem:[%s2 + $0x48] sm:$0xff]
    %v175 = vld [vmem:[%s2 + $0x50] sm:$0xff]
    %v176 = vld [vmem:[%s2 + $0x58] sm:$0xff]
    %v177 = vld [vmem:[%s2 + $0x60] sm:$0xff]
    %v178 = vld [vmem:[%s2 + $0x68] sm:$0xff]
    %v179 = vld [vmem:[%s2 + $0x70] sm:$0xff]
    %v180 = vld [vmem:[%s2 + $0x78] sm:$0xff]
    %v181 = vld [vmem:[%s2 + $0x80] sm:$0xff]
    %v182 = vld [vmem:[%s2 + $0x88] sm:$0xff]
    %v183 = vld [vmem:[%s2 + $0x90] sm:$0xff]
    %v184 = vld [vmem:[%s2 + $0x98] sm:$0xff]
    %v185 = vld [vmem:[%s2 + $0xa0] sm:$0xff]
    %v186 = vld [vmem:[%s2 + $0xa8] sm:$0xff]
    %v187 = vld [vmem:[%s2 + $0xb0] sm:$0xff]
    %v188 = vld [vmem:[%s2 + $0xb8] sm:$0xff]
    %v189 = vld [vmem:[%s2 + $0xc0] sm:$0xff]
    %v190 = vld [vmem:[%s2 + $0xc8] sm:$0xff]
    %v191 = vld [vmem:[%s2 + $0xd0] sm:$0xff]
    %v192 = vld [vmem:[%s2 + $0xd8] sm:$0xff]
    %v193 = vld [vmem:[%s2 + $0xe0] sm:$0xff]
    %v194 = vld [vmem:[%s2 + $0xe8] sm:$0xff]
    %v195 = vld [vmem:[%s2 + $0xf0] sm:$0xff]
    %v196 = vld [vmem:[%s2 + $0xf8] sm:$0xff]
    %v197 = vld [vmem:[%s2 + $0x100] sm:$0xff]
    %v198 = vld [vmem:[%s2 + $0x108] sm:$0xff]
    %v199 = vld [vmem:[%s2 + $0x110] sm:$0xff]
    %v200 = vld [vmem:[%s2 + $0x118] sm:$0xff]
    %v201 = vld [vmem:[%s2 + $0x120] sm:$0xff]
    %v202 = vld [vmem:[%s2 + $0x128] sm:$0xff]
    %v203 = vld [vmem:[%s2 + $0x130] sm:$0xff]
    %v204 = vld [vmem:[%s2 + $0x138] sm:$0xff]
    %v205 = vld [vmem:[%s2 + $0x140] sm:$0xff]
    %v206 = vld [vmem:[%s2 + $0x148] sm:$0xff]
    %v207 = vld [vmem:[%s2 + $0x150] sm:$0xff]
    %v208 = vld [vmem:[%s2 + $0x158] sm:$0xff]
    %v209 = vld [vmem:[%s2 + $0x160] sm:$0xff]
    %v210 = vld [vmem:[%s2 + $0x168] sm:$0xff]
    %v211 = vld [vmem:[%s2 + $0x170] sm:$0xff]
    %v212 = vld [vmem:[%s2 + $0x178] sm:$0xff]
    %v213 = vperm.slane %v162, 0
    %214 = vmatpush.msra.mxu0 %v180
    %215 = vmatpush.msra.mxu0 %v179
    %216 = vmatpush.msra.mxu0 %v178
    %217 = vmatpush.msra.mxu0 %v177
    %218 = vmatpush.msra.mxu0 %v176
    %219 = vmatpush.msra.mxu0 %v175
    %220 = vmatpush.msra.mxu0 %v174
    %221 = vmatpush.msra.mxu0 %v173
    %222 = vmatpush.msra.mxu0 %v172
    %223 = vmatpush.msra.mxu0 %v171
    %224 = vmatpush.msra.mxu0 %v170
    %225 = vmatpush.msra.mxu0 %v169
    %226 = vmatpush.msra.mxu0 %v168
    %227 = vmatpush.msra.mxu0 %v167
    %228 = vmatpush.msra.mxu0 %v166
    %229 = vmatpush.msra.mxu0 %v165
    %230 = vmatmul.f32.gmra.mxu0 %v132
    %v231 = vpop.f32.mrf.mxu0
    %v232 = vadd.f32 %v213, %v231
    %233 = vdwg.mxu0
    %234 = vmatpush.msra.mxu0 %v196
    %235 = vmatpush.msra.mxu0 %v195
    %236 = vmatpush.msra.mxu0 %v194
    %237 = vmatpush.msra.mxu0 %v193
    %238 = vmatpush.msra.mxu0 %v192
    %239 = vmatpush.msra.mxu0 %v191
    %240 = vmatpush.msra.mxu0 %v190
    %241 = vmatpush.msra.mxu0 %v189
    %242 = vmatpush.msra.mxu0 %v188
    %243 = vmatpush.msra.mxu0 %v187
    %244 = vmatpush.msra.mxu0 %v186
    %245 = vmatpush.msra.mxu0 %v185
    %246 = vmatpush.msra.mxu0 %v184
    %247 = vmatpush.msra.mxu0 %v183
    %248 = vmatpush.msra.mxu0 %v182
    %249 = vmatpush.msra.mxu0 %v181
    %250 = vmatmul.f32.gmra.mxu0 %v146
    %v251 = vpop.f32.mrf.mxu0
    %v252 = vadd.f32 %v232, %v251
    %253 = vdwg.mxu0
    %254 = vmatpush.msra.mxu0 %v212
    %255 = vmatpush.msra.mxu0 %v211
    %256 = vmatpush.msra.mxu0 %v210
    %257 = vmatpush.msra.mxu0 %v209
    %258 = vmatpush.msra.mxu0 %v208
    %259 = vmatpush.msra.mxu0 %v207
    %260 = vmatpush.msra.mxu0 %v206
    %261 = vmatpush.msra.mxu0 %v205
    %262 = vmatpush.msra.mxu0 %v204
    %263 = vmatpush.msra.mxu0 %v203
    %264 = vmatpush.msra.mxu0 %v202
    %265 = vmatpush.msra.mxu0 %v201
    %266 = vmatpush.msra.mxu0 %v200
    %267 = vmatpush.msra.mxu0 %v199
    %268 = vmatpush.msra.mxu0 %v198
    %269 = vmatpush.msra.mxu0 %v197
    %270 = vmatmul.f32.gmra.mxu0 %v160
    %v271 = vpop.f32.mrf.mxu0
    %v272 = vadd.f32 %v252, %v271
    %273 = vdwg.mxu0
    %v274 = vmax.f32 %v272, 0.0
    %v275 = vperm.slane %v163, 0
    %vm276 = vcmask 64512
    %v278 = vsel %vm276, %v274, 0
    %280 = vmatpush.msra.mxu0 0.0
    %281 = vmatpush.msra.mxu0 0.0
    %282 = vmatpush.msra.mxu0 0.0
    %283 = vmatpush.msra.mxu0 0.0
    %284 = vmatpush.msra.mxu0 0.0
    %285 = vmatpush.msra.mxu0 0.0
    %286 = vmatpush.msra.mxu0 0.0
    %287 = vmatpush.msra.mxu0 0.0
    %288 = vmatpush.msra.mxu0 0.0
    %289 = vmatpush.msra.mxu0 0.0
    %290 = vmatpush.msra.mxu0 0.0
    %291 = vmatpush.msra.mxu0 0.0
    %292 = vmatpush.msra.mxu0 0.0
    %293 = vmatpush.msra.mxu0 0.0
    %294 = vmatpush.msra.mxu0 0.0
    %295 = vmatpush.msra.mxu0 %v161
    %296 = vmatmul.f32.gmra.mxu0 %v278
    %v297 = vpop.f32.mrf.mxu0
    %v298 = vadd.f32 %v275, %v297
    %299 = vdwg.mxu0
    %v300 = vmax.f32 %v298, 0.0
    %v302 = vsel %vm276, %v300, 0
    %304 = vmatpush.msra.mxu0 0.0
    %305 = vmatpush.msra.mxu0 0.0
    %306 = vmatpush.msra.mxu0 0.0
    %307 = vmatpush.msra.mxu0 0.0
    %308 = vmatpush.msra.mxu0 0.0
    %309 = vmatpush.msra.mxu0 0.0
    %310 = vmatpush.msra.mxu0 0.0
    %311 = vmatpush.msra.mxu0 0.0
    %312 = vmatpush.msra.mxu0 0.0
    %313 = vmatpush.msra.mxu0 0.0
    %314 = vmatpush.msra.mxu0 0.0
    %315 = vmatpush.msra.mxu0 0.0
    %316 = vmatpush.msra.mxu0 0.0
    %317 = vmatpush.msra.mxu0 0.0
    %318 = vmatpush.msra.mxu0 0.0
    %319 = vmatpush.msra.mxu0 %v161
    %320 = vmatmul.f32.gmra.mxu0 %v302
    %v321 = vpop.f32.mrf.mxu0
    %v322 = vadd.f32 %v275, %v321
    %323 = vdwg.mxu0
    %v324 = vmax.f32 %v322, 0.0
    %v325 = vperm.slane %v164, 0
    %327 = vrot.lane.b32.xlu0 %v161, 120
    %v328 = vpop.permute.xlu0 %327
    %v331 = vsel %vm276, %v324, 0
    %333 = vmatpush.msra.mxu0 0.0
    %334 = vmatpush.msra.mxu0 0.0
    %335 = vmatpush.msra.mxu0 0.0
    %336 = vmatpush.msra.mxu0 0.0
    %337 = vmatpush.msra.mxu0 0.0
    %338 = vmatpush.msra.mxu0 0.0
    %339 = vmatpush.msra.mxu0 0.0
    %340 = vmatpush.msra.mxu0 0.0
    %341 = vmatpush.msra.mxu0 0.0
    %342 = vmatpush.msra.mxu0 0.0
    %343 = vmatpush.msra.mxu0 0.0
    %344 = vmatpush.msra.mxu0 0.0
    %345 = vmatpush.msra.mxu0 0.0
    %346 = vmatpush.msra.mxu0 0.0
    %347 = vmatpush.msra.mxu0 0.0
    %348 = vmatpush.msra.mxu0 %v328
    %349 = vmatmul.f32.gmra.mxu0 %v331
    %v350 = vpop.f32.mrf.mxu0
    %v351 = vadd.f32 %v325, %v350
    %352 = vdwg.mxu0
    %vm353 = vcmask 9216
    %354 = vst.msk [vmem:[#allocation5] sm:$0x3] %vm353, %v351
    // Predicated region
    $region22: #{deep_augmented_music_forward.3} parent=1 // pred_check
      _
    $region23: #{deep_augmented_music_forward.3} parent=1 // pred_check_branch
      %356 = sbr.rel (0) target = $region25
    $region24: #{deep_augmented_music_forward.3} parent=1 // pred_region
      %358 = vsyncadd [#allocation4], 0
      %s360 = sshll.u32 [#allocation5], 4
      %s361 = int_to_ptr.vmem [resolvable:$true] %s360
      %s362 = sshll.u32 %s4, 4
      %s363 = int_to_ptr.hbm [resolvable:$true] %s362
      %365 = dma.vmem_to_hbm [thread:$0]  %s361, 32, %s363, [#allocation4]
    $region25: #{deep_augmented_music_forward.3} parent=1 // pred_fallthru
      _
    // Predicated region
    $region26: #{deep_augmented_music_forward.3} parent=1 // pred_check
      _
    $region27: #{deep_augmented_music_forward.3} parent=1 // pred_check_branch
      %367 = sbr.rel (0) target = $region29
    $region28: #{deep_augmented_music_forward.3} parent=1 // pred_region
      %369 = dma.done [#allocation4], 32
    $region29: #{deep_augmented_music_forward.3} parent=1 // pred_fallthru
      _
    %370 = vsyncpa [#allocation3], 1
    %371 = vsyncpa [#allocation4], 1

// kernel: deep_augmented_music_forward.2
$region0: #{deep_augmented_music_forward.2}
  #allocation0 [shape = 'u32[]', space=smem, size = 0x4, offset = 0x4, fixed_abs, tag = 'smem constant byte address 0x4 - core index']
  #allocation1 [shape = 'u32[72,128]{1,0:T(1,128)}', space=vmem, size = 0x9000, scoped, tag = 'internal scratch']
  %s0 = inlined_call_operand.vmem [shape: f32[20,8], index: 0, kind: input, shape index: {}]
  %s1 = inlined_call_operand.vmem [shape: f32[20,22], index: 1, kind: input, shape index: {}]
  %s2 = inlined_call_operand.vmem [shape: f32[11,80], index: 2, kind: input, shape index: {}]
  %s3 = inlined_call_operand.hbm [shape: f32[2,32], index: 3, kind: output, shape index: {}]
  %s4 = sld [smem:[#allocation0]]
  $region22: #{deep_augmented_music_forward.2} parent=0
    _
  %s6 = ssub.s32 1, %s4
  %s7 = scalar_select 0, %s6, %s4
  $region1: #{deep_augmented_music_forward.2} parent=0
    #allocation2 [shape = 'u8[1024]{0}', space=vmem, size = 0x400, scoped, tag = 'output window, operand 0, single buffered']
    #allocation3 [shape = 's32[1]{0}', space=sflag, size = 0x4, scoped, tag = 'scoped memory for deep_augmented_music_forward.2']
    %8 = vsyncpa [#allocation3], 0
    // Predicated region
    $region2: #{deep_augmented_music_forward.2} parent=1 // pred_check
      _
    $region3: #{deep_augmented_music_forward.2} parent=1 // pred_check_branch
      %10 = sbr.rel (0) target = $region5
    $region4: #{deep_augmented_music_forward.2} parent=1 // pred_region
      _
    $region5: #{deep_augmented_music_forward.2} parent=1 // pred_fallthru
      _
    // Predicated region
    $region6: #{deep_augmented_music_forward.2} parent=1 // pred_check
      _
    $region7: #{deep_augmented_music_forward.2} parent=1 // pred_check_branch
      %12 = sbr.rel (0) target = $region9
    $region8: #{deep_augmented_music_forward.2} parent=1 // pred_region
      _
    $region9: #{deep_augmented_music_forward.2} parent=1 // pred_fallthru
      _
    // Predicated region
    $region10: #{deep_augmented_music_forward.2} parent=1 // pred_check
      _
    $region11: #{deep_augmented_music_forward.2} parent=1 // pred_check_branch
      %14 = sbr.rel (0) target = $region13
    $region12: #{deep_augmented_music_forward.2} parent=1 // pred_region
      _
    $region13: #{deep_augmented_music_forward.2} parent=1 // pred_fallthru
      _
    %v15 = vld [vmem:[%s0] sm:$0xff]
    %v16 = vld [vmem:[%s0 + $0x8] sm:$0xff]
    %v17 = vld [vmem:[%s0 + $0x10] sm:$0xf]
    %v18 = vld [vmem:[%s1] sm:$0xff]
    %v19 = vld [vmem:[%s1 + $0x8] sm:$0xff]
    %v20 = vld [vmem:[%s1 + $0x10] sm:$0xf]
    %vm21 = vcmask 162816
    %v23 = vsel %vm21, %v18, 0
    %v26 = vsel %vm21, %v19, 0
    %v29 = vsel %vm21, %v20, 0
    %vm31 = vcmask 1043456
    %v33 = vsel %vm31, %v17, 0
    %35 = vmatpush.msra.mxu0 0.0
    %36 = vmatpush.msra.mxu0 0.0
    %37 = vmatpush.msra.mxu0 0.0
    %38 = vmatpush.msra.mxu0 0.0
    %39 = vmatpush.msra.mxu0 0.0
    %40 = vmatpush.msra.mxu0 0.0
    %41 = vmatpush.msra.mxu0 0.0
    %42 = vmatpush.msra.mxu0 0.0
    %43 = vmatpush.msra.mxu0 0.0
    %44 = vmatpush.msra.mxu0 0.0
    %45 = vmatpush.msra.mxu0 0.0
    %46 = vmatpush.msra.mxu0 0.0
    %47 = vmatpush.msra.mxu0 0.0
    %48 = vmatpush.msra.mxu0 %v33
    %49 = vmatpush.msra.mxu0 %v16
    %50 = vmatpush.msra.mxu0 %v15
    %51 = vmatmul.f32.gmra.mxu0 %v23
    %v52 = vpop.f32.mrf.mxu0
    %v53 = vadd.f32 0.0, %v52
    %54 = vmatmul.f32.gmra.mxu0 %v26
    %v55 = vpop.f32.mrf.mxu0
    %v56 = vadd.f32 0.0, %v55
    %57 = vmatmul.f32.gmra.mxu0 %v29
    %v58 = vpop.f32.mrf.mxu0
    %v59 = vadd.f32 0.0, %v58
    %60 = vdwg.mxu0
    %vm61 = vcmask 64512
    %v62 = vsel %vm61, %v53, 0.0
    %63 = vadd.xlane.f32.xlu0 %v62
    %v64 = vpop.xlane.xlu0 %63
    %v65 = vsel %vm61, %v56, 0.0
    %66 = vadd.xlane.f32.xlu0 %v65
    %v67 = vpop.xlane.xlu0 %66
    %vm68 = vcmask 60416
    %v69 = vsel %vm68, %v59, 0.0
    %70 = vadd.xlane.f32.xlu0 %v69
    %v71 = vpop.xlane.xlu0 %70
    %v72 = vsub.f32 %v15, %v64
    %v73 = vsub.f32 %v16, %v67
    %v74 = vsub.f32 %v17, %v71
    %v75 = vmul.f32 %v72, %v72
    %v76 = vmul.f32 %v73, %v73
    %v77 = vmul.f32 %v74, %v74
    %v79 = vsel %vm31, %v77, 0
    %81 = vmatpush.msra.mxu0 0.0
    %82 = vmatpush.msra.mxu0 0.0
    %83 = vmatpush.msra.mxu0 0.0
    %84 = vmatpush.msra.mxu0 0.0
    %85 = vmatpush.msra.mxu0 0.0
    %86 = vmatpush.msra.mxu0 0.0
    %87 = vmatpush.msra.mxu0 0.0
    %88 = vmatpush.msra.mxu0 0.0
    %89 = vmatpush.msra.mxu0 0.0
    %90 = vmatpush.msra.mxu0 0.0
    %91 = vmatpush.msra.mxu0 0.0
    %92 = vmatpush.msra.mxu0 0.0
    %93 = vmatpush.msra.mxu0 0.0
    %94 = vmatpush.msra.mxu0 %v79
    %95 = vmatpush.msra.mxu0 %v76
    %96 = vmatpush.msra.mxu0 %v75
    %97 = vmatmul.f32.gmra.mxu0 %v23
    %v98 = vpop.f32.mrf.mxu0
    %v99 = vadd.f32 0.0, %v98
    %100 = vmatmul.f32.gmra.mxu0 %v26
    %v101 = vpop.f32.mrf.mxu0
    %v102 = vadd.f32 0.0, %v101
    %103 = vmatmul.f32.gmra.mxu0 %v29
    %v104 = vpop.f32.mrf.mxu0
    %v105 = vadd.f32 0.0, %v104
    %106 = vdwg.mxu0
    %v107 = vsel %vm61, %v99, 0.0
    %108 = vadd.xlane.f32.xlu0 %v107
    %v109 = vpop.xlane.xlu0 %108
    %v110 = vsel %vm61, %v102, 0.0
    %111 = vadd.xlane.f32.xlu0 %v110
    %v112 = vpop.xlane.xlu0 %111
    %v113 = vsel %vm68, %v105, 0.0
    %114 = vadd.xlane.f32.xlu0 %v113
    %v115 = vpop.xlane.xlu0 %114
    %v116 = vadd.f32 %v109, 1e-05
    %v117 = vadd.f32 %v112, 1e-05
    %v118 = vadd.f32 %v115, 1e-05
    %v119 = vrsqrt.pop %v116
    %v120 = vmul.f32 %v119, %v116
    %v121 = vmul.f32 %v120, %v119
    %v122 = vmul.f32 0.5, %v121
    %v123 = vsub.f32 1.5, %v122
    %v124 = vmul.f32 %v119, %v123
    %vm125 = vweird.f32 %v116
    %vm126 = vweird.f32 %v119
    %vm127 = vmor %vm125, %vm126
    %v128 = vsel %vm127, %v119, %v124
    %v129 = vrsqrt.pop %v117
    %v130 = vmul.f32 %v129, %v117
    %v131 = vmul.f32 %v130, %v129
    %v132 = vmul.f32 0.5, %v131
    %v133 = vsub.f32 1.5, %v132
    %v134 = vmul.f32 %v129, %v133
    %vm135 = vweird.f32 %v117
    %vm136 = vweird.f32 %v129
    %vm137 = vmor %vm135, %vm136
    %v138 = vsel %vm137, %v129, %v134
    %v139 = vrsqrt.pop %v118
    %v140 = vmul.f32 %v139, %v118
    %v141 = vmul.f32 %v140, %v139
    %v142 = vmul.f32 0.5, %v141
    %v143 = vsub.f32 1.5, %v142
    %v144 = vmul.f32 %v139, %v143
    %vm145 = vweird.f32 %v118
    %vm146 = vweird.f32 %v139
    %vm147 = vmor %vm145, %vm146
    %v148 = vsel %vm147, %v139, %v144
    %v149 = vmul.f32 %v18, %v128
    %v150 = vmul.f32 %v19, %v138
    %v151 = vmul.f32 %v20, %v148
    %153 = vset.pattern.permute.xlu0 20
    %154 = vperm.xlu0 %153, %v149
    %v155 = vpop.permute.xlu0 %154
    %158 = vset.pattern.permute.xlu0 20
    %159 = vperm.xlu0 %158, %v150
    %v160 = vpop.permute.xlu0 %159
    %163 = vset.pattern.permute.xlu0 20
    %164 = vperm.xlu0 %163, %v151
    %v165 = vpop.permute.xlu0 %164
    %v167 = vmul.f32 %v72, %v155
    %v168 = vmul.f32 %v73, %v160
    %v169 = vmul.f32 %v74, %v165
    %170 = vset.pattern.permute.xlu0 21
    %171 = vperm.xlu0 %170, %v18
    %v172 = vpop.permute.xlu0 %171
    %174 = vset.pattern.permute.xlu0 21
    %175 = vperm.xlu0 %174, %v19
    %v176 = vpop.permute.xlu0 %175
    %178 = vset.pattern.permute.xlu0 21
    %179 = vperm.xlu0 %178, %v20
    %v180 = vpop.permute.xlu0 %179
    %v182 = vadd.f32 %v167, %v172
    %v183 = vadd.f32 %v168, %v176
    %v184 = vadd.f32 %v169, %v180
    %v185 = vld [vmem:[%s2] sm:$0xff]
    %v186 = vld [vmem:[%s2 + $0x8] sm:$0x1]
    %v187 = vld [vmem:[%s2 + $0x9] sm:$0x1]
    %v188 = vld [vmem:[%s2 + $0xa] sm:$0x1]
    %v189 = vperm.slane %v186, 0
    %v191 = vsel %vm61, %v182, 0
    %v194 = vsel %vm61, %v183, 0
    %v197 = vsel %vm61, %v184, 0
    %199 = vmatpush.msra.mxu0 0.0
    %200 = vmatpush.msra.mxu0 0.0
    %201 = vmatpush.msra.mxu0 0.0
    %202 = vmatpush.msra.mxu0 0.0
    %203 = vmatpush.msra.mxu0 0.0
    %204 = vmatpush.msra.mxu0 0.0
    %205 = vmatpush.msra.mxu0 0.0
    %206 = vmatpush.msra.mxu0 0.0
    %207 = vmatpush.msra.mxu0 0.0
    %208 = vmatpush.msra.mxu0 0.0
    %209 = vmatpush.msra.mxu0 0.0
    %210 = vmatpush.msra.mxu0 0.0
    %211 = vmatpush.msra.mxu0 0.0
    %212 = vmatpush.msra.mxu0 0.0
    %213 = vmatpush.msra.mxu0 0.0
    %214 = vmatpush.msra.mxu0 %v185
    %215 = vmatmul.f32.gmra.mxu0 %v191
    %v216 = vpop.f32.mrf.mxu0
    %v217 = vadd.f32 %v189, %v216
    %218 = vmatmul.f32.gmra.mxu0 %v194
    %v219 = vpop.f32.mrf.mxu0
    %v220 = vadd.f32 %v189, %v219
    %221 = vmatmul.f32.gmra.mxu0 %v197
    %v222 = vpop.f32.mrf.mxu0
    %v223 = vadd.f32 %v189, %v222
    %224 = vdwg.mxu0
    %v225 = vperm.slane %v185, 0
    %v226 = vmul.f32 %v225, 0.0
    %v227 = vperm.slane %v187, 0
    %229 = vrot.lane.b32.xlu0 %v226, 104
    %v230 = vpop.permute.xlu0 %229
    %v232 = vadd.f32 %v227, %v230
    %v233 = vperm.slane %v185, 1
    %v234 = vmul.f32 %v233, 0.0
    %236 = vrot.lane.b32.xlu0 %v234, 104
    %v237 = vpop.permute.xlu0 %236
    %v239 = vadd.f32 %v232, %v237
    %v240 = vperm.slane %v185, 2
    %v241 = vmul.f32 %v240, 0.0
    %243 = vrot.lane.b32.xlu0 %v241, 104
    %v244 = vpop.permute.xlu0 %243
    %v246 = vadd.f32 %v239, %v244
    %v247 = vperm.slane %v185, 3
    %v248 = vmul.f32 %v247, 0.0
    %250 = vrot.lane.b32.xlu0 %v248, 104
    %v251 = vpop.permute.xlu0 %250
    %v253 = vadd.f32 %v246, %v251
    %v254 = vperm.slane %v185, 4
    %v255 = vmul.f32 %v254, 0.0
    %257 = vrot.lane.b32.xlu0 %v255, 104
    %v258 = vpop.permute.xlu0 %257
    %v260 = vadd.f32 %v253, %v258
    %v261 = vperm.slane %v185, 5
    %v262 = vmul.f32 %v261, 0.0
    %264 = vrot.lane.b32.xlu0 %v262, 104
    %v265 = vpop.permute.xlu0 %264
    %v267 = vadd.f32 %v260, %v265
    %v268 = vperm.slane %v185, 6
    %v269 = vmul.f32 %v268, 0.0
    %271 = vrot.lane.b32.xlu0 %v269, 104
    %v272 = vpop.permute.xlu0 %271
    %v274 = vadd.f32 %v267, %v272
    %v275 = vperm.slane %v185, 7
    %v276 = vmul.f32 %v275, 0.0
    %278 = vrot.lane.b32.xlu0 %v276, 104
    %v279 = vpop.permute.xlu0 %278
    %v281 = vadd.f32 %v274, %v279
    %v282 = vadd.f32 %v217, %v281
    %v283 = vxor.u32 %v282, 2147483648
    %v284 = vmul.f32 %v283, 1.442695
    %v285 = vpow.pop %v284
    %v286 = vadd.f32 %v285, 1.0
    %v287 = vrcp.pop %v286
    %v288 = vmul.f32 %v286, %v287
    %v289 = vsub.f32 1.0, %v288
    %v290 = vmul.f32 %v287, %v289
    %v291 = vadd.f32 %v287, %v290
    %vm292 = vweird.f32 %v286
    %vm293 = vweird.f32 %v287
    %vm294 = vmor %vm292, %vm293
    %v295 = vsel %vm294, %v287, %v291
    %v296 = vand.u32 2147483647, %v286
    %vm297 = vcmp.eq.f32.partialorder %v296, 8.507059e+37
    %v298 = vand.u32 %v286, 2147483648
    %v299 = vor.u32 1.1754944e-38, %v298
    %v300 = vsel %vm297, %v299, %v295
    %v301 = vmul.f32 1.0, %v300
    %303 = vrot.lane.b32.xlu0 %v281, 112
    %v304 = vpop.permute.xlu0 %303
    %v306 = vmul.f32 %v301, %v304
    %308 = vrot.lane.b32.xlu0 %v306, 16
    %v309 = vpop.permute.xlu0 %308
    %v311 = vadd.f32 %v217, %v309
    %v312 = vtanh.pop %v311
    %v313 = vsub.f32 1.0, %v301
    %315 = vrot.lane.b32.xlu0 %v312, 120
    %v316 = vpop.permute.xlu0 %315
    %v318 = vmul.f32 %v313, %v316
    %v319 = vmul.f32 %v301, 0.0
    %v320 = vadd.f32 %v318, %v319
    %322 = vset.pattern.permute.xlu0 8
    %323 = vperm.xlu0 %322, %v320
    %v324 = vpop.permute.xlu0 %323
    %v326 = vmul.f32 %v324, %v225
    %328 = vrot.lane.b32.xlu0 %v326, 104
    %v329 = vpop.permute.xlu0 %328
    %v331 = vadd.f32 %v227, %v329
    %332 = vset.pattern.permute.xlu0 9
    %333 = vperm.xlu0 %332, %v320
    %v334 = vpop.permute.xlu0 %333
    %v336 = vmul.f32 %v334, %v233
    %338 = vrot.lane.b32.xlu0 %v336, 104
    %v339 = vpop.permute.xlu0 %338
    %v341 = vadd.f32 %v331, %v339
    %342 = vset.pattern.permute.xlu0 10
    %343 = vperm.xlu0 %342, %v320
    %v344 = vpop.permute.xlu0 %343
    %v346 = vmul.f32 %v344, %v240
    %348 = vrot.lane.b32.xlu0 %v346, 104
    %v349 = vpop.permute.xlu0 %348
    %v351 = vadd.f32 %v341, %v349
    %352 = vset.pattern.permute.xlu0 11
    %353 = vperm.xlu0 %352, %v320
    %v354 = vpop.permute.xlu0 %353
    %v356 = vmul.f32 %v354, %v247
    %358 = vrot.lane.b32.xlu0 %v356, 104
    %v359 = vpop.permute.xlu0 %358
    %v361 = vadd.f32 %v351, %v359
    %362 = vset.pattern.permute.xlu0 12
    %363 = vperm.xlu0 %362, %v320
    %v364 = vpop.permute.xlu0 %363
    %v366 = vmul.f32 %v364, %v254
    %368 = vrot.lane.b32.xlu0 %v366, 104
    %v369 = vpop.permute.xlu0 %368
    %v371 = vadd.f32 %v361, %v369
    %372 = vset.pattern.permute.xlu0 13
    %373 = vperm.xlu0 %372, %v320
    %v374 = vpop.permute.xlu0 %373
    %v376 = vmul.f32 %v374, %v261
    %378 = vrot.lane.b32.xlu0 %v376, 104
    %v379 = vpop.permute.xlu0 %378
    %v381 = vadd.f32 %v371, %v379
    %382 = vset.pattern.permute.xlu0 14
    %383 = vperm.xlu0 %382, %v320
    %v384 = vpop.permute.xlu0 %383
    %v386 = vmul.f32 %v384, %v268
    %388 = vrot.lane.b32.xlu0 %v386, 104
    %v389 = vpop.permute.xlu0 %388
    %v391 = vadd.f32 %v381, %v389
    %392 = vset.pattern.permute.xlu0 15
    %393 = vperm.xlu0 %392, %v320
    %v394 = vpop.permute.xlu0 %393
    %v396 = vmul.f32 %v394, %v275
    %398 = vrot.lane.b32.xlu0 %v396, 104
    %v399 = vpop.permute.xlu0 %398
    %v401 = vadd.f32 %v391, %v399
    %v403 = vrot.slane %v401, 6
    %v405 = vadd.f32 %v217, %v403
    %v406 = vxor.u32 %v405, 2147483648
    %v407 = vmul.f32 %v406, 1.442695
    %v408 = vpow.pop %v407
    %v409 = vadd.f32 %v408, 1.0
    %v410 = vrcp.pop %v409
    %v411 = vmul.f32 %v409, %v410
    %v412 = vsub.f32 1.0, %v411
    %v413 = vmul.f32 %v410, %v412
    %v414 = vadd.f32 %v410, %v413
    %vm415 = vweird.f32 %v409
    %vm416 = vweird.f32 %v410
    %vm417 = vmor %vm415, %vm416
    %v418 = vsel %vm417, %v410, %v414
    %v419 = vand.u32 2147483647, %v409
    %vm420 = vcmp.eq.f32.partialorder %v419, 8.507059e+37
    %v421 = vand.u32 %v409, 2147483648
    %v422 = vor.u32 1.1754944e-38, %v421
    %v423 = vsel %vm420, %v422, %v418
    %v424 = vmul.f32 1.0, %v423
    %425 = vrot.lane.b32.xlu0 %v403, 112
    %v426 = vpop.permute.xlu0 %425
    %v428 = vmul.f32 %v424, %v426
    %430 = vrot.lane.b32.xlu0 %v428, 16
    %v431 = vpop.permute.xlu0 %430
    %v433 = vadd.f32 %v217, %v431
    %v434 = vtanh.pop %v433
    %v435 = vsub.f32 1.0, %v424
    %437 = vrot.lane.b32.xlu0 %v434, 120
    %v438 = vpop.permute.xlu0 %437
    %v440 = vmul.f32 %v435, %v438
    %v441 = vrot.slane %v320, 6
    %v443 = vmul.f32 %v424, %v441
    %v444 = vadd.f32 %v440, %v443
    %446 = vset.pattern.permute.xlu0 8
    %447 = vperm.xlu0 %446, %v444
    %v448 = vpop.permute.xlu0 %447
    %v450 = vmul.f32 %v448, %v225
    %v452 = vrot.slane %v450, 2
    %453 = vrot.lane.b32.xlu0 %v452, 104
    %v454 = vpop.permute.xlu0 %453
    %v456 = vadd.f32 %v227, %v454
    %457 = vset.pattern.permute.xlu0 9
    %458 = vperm.xlu0 %457, %v444
    %v459 = vpop.permute.xlu0 %458
    %v461 = vmul.f32 %v459, %v233
    %v463 = vrot.slane %v461, 2
    %464 = vrot.lane.b32.xlu0 %v463, 104
    %v465 = vpop.permute.xlu0 %464
    %v467 = vadd.f32 %v456, %v465
    %468 = vset.pattern.permute.xlu0 10
    %469 = vperm.xlu0 %468, %v444
    %v470 = vpop.permute.xlu0 %469
    %v472 = vmul.f32 %v470, %v240
    %v474 = vrot.slane %v472, 2
    %475 = vrot.lane.b32.xlu0 %v474, 104
    %v476 = vpop.permute.xlu0 %475
    %v478 = vadd.f32 %v467, %v476
    %479 = vset.pattern.permute.xlu0 11
    %480 = vperm.xlu0 %479, %v444
    %v481 = vpop.permute.xlu0 %480
    %v483 = vmul.f32 %v481, %v247
    %v485 = vrot.slane %v483, 2
    %486 = vrot.lane.b32.xlu0 %v485, 104
    %v487 = vpop.permute.xlu0 %486
    %v489 = vadd.f32 %v478, %v487
    %490 = vset.pattern.permute.xlu0 12
    %491 = vperm.xlu0 %490, %v444
    %v492 = vpop.permute.xlu0 %491
    %v494 = vmul.f32 %v492, %v254
    %v496 = vrot.slane %v494, 2
    %497 = vrot.lane.b32.xlu0 %v496, 104
    %v498 = vpop.permute.xlu0 %497
    %v500 = vadd.f32 %v489, %v498
    %501 = vset.pattern.permute.xlu0 13
    %502 = vperm.xlu0 %501, %v444
    %v503 = vpop.permute.xlu0 %502
    %v505 = vmul.f32 %v503, %v261
    %v507 = vrot.slane %v505, 2
    %508 = vrot.lane.b32.xlu0 %v507, 104
    %v509 = vpop.permute.xlu0 %508
    %v511 = vadd.f32 %v500, %v509
    %512 = vset.pattern.permute.xlu0 14
    %513 = vperm.xlu0 %512, %v444
    %v514 = vpop.permute.xlu0 %513
    %v516 = vmul.f32 %v514, %v268
    %v518 = vrot.slane %v516, 2
    %519 = vrot.lane.b32.xlu0 %v518, 104
    %v520 = vpop.permute.xlu0 %519
    %v522 = vadd.f32 %v511, %v520
    %523 = vset.pattern.permute.xlu0 15
    %524 = vperm.xlu0 %523, %v444
    %v525 = vpop.permute.xlu0 %524
    %v527 = vmul.f32 %v525, %v275
    %v529 = vrot.slane %v527, 2
    %530 = vrot.lane.b32.xlu0 %v529, 104
    %v531 = vpop.permute.xlu0 %530
    %v533 = vadd.f32 %v522, %v531
    %v535 = vrot.slane %v533, 4
    %v537 = vadd.f32 %v217, %v535
    %v538 = vxor.u32 %v537, 2147483648
    %v539 = vmul.f32 %v538, 1.442695
    %v540 = vpow.pop %v539
    %v541 = vadd.f32 %v540, 1.0
    %v542 = vrcp.pop %v541
    %v543 = vmul.f32 %v541, %v542
    %v544 = vsub.f32 1.0, %v543
    %v545 = vmul.f32 %v542, %v544
    %v546 = vadd.f32 %v542, %v545
    %vm547 = vweird.f32 %v541
    %vm548 = vweird.f32 %v542
    %vm549 = vmor %vm547, %vm548
    %v550 = vsel %vm549, %v542, %v546
    %v551 = vand.u32 2147483647, %v541
    %vm552 = vcmp.eq.f32.partialorder %v551, 8.507059e+37
    %v553 = vand.u32 %v541, 2147483648
    %v554 = vor.u32 1.1754944e-38, %v553
    %v555 = vsel %vm552, %v554, %v550
    %v556 = vmul.f32 1.0, %v555
    %557 = vrot.lane.b32.xlu0 %v535, 112
    %v558 = vpop.permute.xlu0 %557
    %v560 = vmul.f32 %v556, %v558
    %562 = vrot.lane.b32.xlu0 %v560, 16
    %v563 = vpop.permute.xlu0 %562
    %v565 = vadd.f32 %v217, %v563
    %v566 = vtanh.pop %v565
    %v567 = vsub.f32 1.0, %v556
    %569 = vrot.lane.b32.xlu0 %v566, 120
    %v570 = vpop.permute.xlu0 %569
    %v572 = vmul.f32 %v567, %v570
    %v573 = vrot.slane %v444, 6
    %v575 = vmul.f32 %v556, %v573
    %v576 = vadd.f32 %v572, %v575
    %578 = vset.pattern.permute.xlu0 8
    %579 = vperm.xlu0 %578, %v576
    %v580 = vpop.permute.xlu0 %579
    %v582 = vmul.f32 %v580, %v225
    %v584 = vrot.slane %v582, 4
    %585 = vrot.lane.b32.xlu0 %v584, 104
    %v586 = vpop.permute.xlu0 %585
    %v588 = vadd.f32 %v227, %v586
    %589 = vset.pattern.permute.xlu0 9
    %590 = vperm.xlu0 %589, %v576
    %v591 = vpop.permute.xlu0 %590
    %v593 = vmul.f32 %v591, %v233
    %v595 = vrot.slane %v593, 4
    %596 = vrot.lane.b32.xlu0 %v595, 104
    %v597 = vpop.permute.xlu0 %596
    %v599 = vadd.f32 %v588, %v597
    %600 = vset.pattern.permute.xlu0 10
    %601 = vperm.xlu0 %600, %v576
    %v602 = vpop.permute.xlu0 %601
    %v604 = vmul.f32 %v602, %v240
    %v606 = vrot.slane %v604, 4
    %607 = vrot.lane.b32.xlu0 %v606, 104
    %v608 = vpop.permute.xlu0 %607
    %v610 = vadd.f32 %v599, %v608
    %611 = vset.pattern.permute.xlu0 11
    %612 = vperm.xlu0 %611, %v576
    %v613 = vpop.permute.xlu0 %612
    %v615 = vmul.f32 %v613, %v247
    %v617 = vrot.slane %v615, 4
    %618 = vrot.lane.b32.xlu0 %v617, 104
    %v619 = vpop.permute.xlu0 %618
    %v621 = vadd.f32 %v610, %v619
    %622 = vset.pattern.permute.xlu0 12
    %623 = vperm.xlu0 %622, %v576
    %v624 = vpop.permute.xlu0 %623
    %v626 = vmul.f32 %v624, %v254
    %v628 = vrot.slane %v626, 4
    %629 = vrot.lane.b32.xlu0 %v628, 104
    %v630 = vpop.permute.xlu0 %629
    %v632 = vadd.f32 %v621, %v630
    %633 = vset.pattern.permute.xlu0 13
    %634 = vperm.xlu0 %633, %v576
    %v635 = vpop.permute.xlu0 %634
    %v637 = vmul.f32 %v635, %v261
    %v639 = vrot.slane %v637, 4
    %640 = vrot.lane.b32.xlu0 %v639, 104
    %v641 = vpop.permute.xlu0 %640
    %v643 = vadd.f32 %v632, %v641
    %644 = vset.pattern.permute.xlu0 14
    %645 = vperm.xlu0 %644, %v576
    %v646 = vpop.permute.xlu0 %645
    %v648 = vmul.f32 %v646, %v268
    %v650 = vrot.slane %v648, 4
    %651 = vrot.lane.b32.xlu0 %v650, 104
    %v652 = vpop.permute.xlu0 %651
    %v654 = vadd.f32 %v643, %v652
    %655 = vset.pattern.permute.xlu0 15
    %656 = vperm.xlu0 %655, %v576
    %v657 = vpop.permute.xlu0 %656
    %v659 = vmul.f32 %v657, %v275
    %v661 = vrot.slane %v659, 4
    %662 = vrot.lane.b32.xlu0 %v661, 104
    %v663 = vpop.permute.xlu0 %662
    %v665 = vadd.f32 %v654, %v663
    %v667 = vrot.slane %v665, 2
    %v669 = vadd.f32 %v217, %v667
    %v670 = vxor.u32 %v669, 2147483648
    %v671 = vmul.f32 %v670, 1.442695
    %v672 = vpow.pop %v671
    %v673 = vadd.f32 %v672, 1.0
    %v674 = vrcp.pop %v673
    %v675 = vmul.f32 %v673, %v674
    %v676 = vsub.f32 1.0, %v675
    %v677 = vmul.f32 %v674, %v676
    %v678 = vadd.f32 %v674, %v677
    %vm679 = vweird.f32 %v673
    %vm680 = vweird.f32 %v674
    %vm681 = vmor %vm679, %vm680
    %v682 = vsel %vm681, %v674, %v678
    %v683 = vand.u32 2147483647, %v673
    %vm684 = vcmp.eq.f32.partialorder %v683, 8.507059e+37
    %v685 = vand.u32 %v673, 2147483648
    %v686 = vor.u32 1.1754944e-38, %v685
    %v687 = vsel %vm684, %v686, %v682
    %v688 = vmul.f32 1.0, %v687
    %689 = vrot.lane.b32.xlu0 %v667, 112
    %v690 = vpop.permute.xlu0 %689
    %v692 = vmul.f32 %v688, %v690
    %694 = vrot.lane.b32.xlu0 %v692, 16
    %v695 = vpop.permute.xlu0 %694
    %v697 = vadd.f32 %v217, %v695
    %v698 = vtanh.pop %v697
    %v699 = vsub.f32 1.0, %v688
    %701 = vrot.lane.b32.xlu0 %v698, 120
    %v702 = vpop.permute.xlu0 %701
    %v704 = vmul.f32 %v699, %v702
    %v705 = vrot.slane %v576, 6
    %v707 = vmul.f32 %v688, %v705
    %v708 = vadd.f32 %v704, %v707
    %710 = vset.pattern.permute.xlu0 8
    %711 = vperm.xlu0 %710, %v708
    %v712 = vpop.permute.xlu0 %711
    %v714 = vmul.f32 %v712, %v225
    %v716 = vrot.slane %v714, 6
    %717 = vrot.lane.b32.xlu0 %v716, 104
    %v718 = vpop.permute.xlu0 %717
    %v720 = vadd.f32 %v227, %v718
    %721 = vset.pattern.permute.xlu0 9
    %722 = vperm.xlu0 %721, %v708
    %v723 = vpop.permute.xlu0 %722
    %v725 = vmul.f32 %v723, %v233
    %v727 = vrot.slane %v725, 6
    %728 = vrot.lane.b32.xlu0 %v727, 104
    %v729 = vpop.permute.xlu0 %728
    %v731 = vadd.f32 %v720, %v729
    %732 = vset.pattern.permute.xlu0 10
    %733 = vperm.xlu0 %732, %v708
    %v734 = vpop.permute.xlu0 %733
    %v736 = vmul.f32 %v734, %v240
    %v738 = vrot.slane %v736, 6
    %739 = vrot.lane.b32.xlu0 %v738, 104
    %v740 = vpop.permute.xlu0 %739
    %v742 = vadd.f32 %v731, %v740
    %743 = vset.pattern.permute.xlu0 11
    %744 = vperm.xlu0 %743, %v708
    %v745 = vpop.permute.xlu0 %744
    %v747 = vmul.f32 %v745, %v247
    %v749 = vrot.slane %v747, 6
    %750 = vrot.lane.b32.xlu0 %v749, 104
    %v751 = vpop.permute.xlu0 %750
    %v753 = vadd.f32 %v742, %v751
    %754 = vset.pattern.permute.xlu0 12
    %755 = vperm.xlu0 %754, %v708
    %v756 = vpop.permute.xlu0 %755
    %v758 = vmul.f32 %v756, %v254
    %v760 = vrot.slane %v758, 6
    %761 = vrot.lane.b32.xlu0 %v760, 104
    %v762 = vpop.permute.xlu0 %761
    %v764 = vadd.f32 %v753, %v762
    %765 = vset.pattern.permute.xlu0 13
    %766 = vperm.xlu0 %765, %v708
    %v767 = vpop.permute.xlu0 %766
    %v769 = vmul.f32 %v767, %v261
    %v771 = vrot.slane %v769, 6
    %772 = vrot.lane.b32.xlu0 %v771, 104
    %v773 = vpop.permute.xlu0 %772
    %v775 = vadd.f32 %v764, %v773
    %776 = vset.pattern.permute.xlu0 14
    %777 = vperm.xlu0 %776, %v708
    %v778 = vpop.permute.xlu0 %777
    %v780 = vmul.f32 %v778, %v268
    %v782 = vrot.slane %v780, 6
    %783 = vrot.lane.b32.xlu0 %v782, 104
    %v784 = vpop.permute.xlu0 %783
    %v786 = vadd.f32 %v775, %v784
    %787 = vset.pattern.permute.xlu0 15
    %788 = vperm.xlu0 %787, %v708
    %v789 = vpop.permute.xlu0 %788
    %v791 = vmul.f32 %v789, %v275
    %v793 = vrot.slane %v791, 6
    %794 = vrot.lane.b32.xlu0 %v793, 104
    %v795 = vpop.permute.xlu0 %794
    %v797 = vadd.f32 %v786, %v795
    %v798 = vadd.f32 %v220, %v797
    %v799 = vxor.u32 %v798, 2147483648
    %v800 = vmul.f32 %v799, 1.442695
    %v801 = vpow.pop %v800
    %v802 = vadd.f32 %v801, 1.0
    %v803 = vrcp.pop %v802
    %v804 = vmul.f32 %v802, %v803
    %v805 = vsub.f32 1.0, %v804
    %v806 = vmul.f32 %v803, %v805
    %v807 = vadd.f32 %v803, %v806
    %vm808 = vweird.f32 %v802
    %vm809 = vweird.f32 %v803
    %vm810 = vmor %vm808, %vm809
    %v811 = vsel %vm810, %v803, %v807
    %v812 = vand.u32 2147483647, %v802
    %vm813 = vcmp.eq.f32.partialorder %v812, 8.507059e+37
    %v814 = vand.u32 %v802, 2147483648
    %v815 = vor.u32 1.1754944e-38, %v814
    %v816 = vsel %vm813, %v815, %v811
    %v817 = vmul.f32 1.0, %v816
    %819 = vrot.lane.b32.xlu0 %v797, 112
    %v820 = vpop.permute.xlu0 %819
    %v822 = vmul.f32 %v817, %v820
    %824 = vrot.lane.b32.xlu0 %v822, 16
    %v825 = vpop.permute.xlu0 %824
    %v827 = vadd.f32 %v220, %v825
    %v828 = vtanh.pop %v827
    %v829 = vsub.f32 1.0, %v817
    %831 = vrot.lane.b32.xlu0 %v828, 120
    %v832 = vpop.permute.xlu0 %831
    %v834 = vmul.f32 %v829, %v832
    %v835 = vrot.slane %v708, 6
    %v837 = vmul.f32 %v817, %v835
    %v838 = vadd.f32 %v834, %v837
    %840 = vset.pattern.permute.xlu0 8
    %841 = vperm.xlu0 %840, %v838
    %v842 = vpop.permute.xlu0 %841
    %v844 = vmul.f32 %v842, %v225
    %846 = vrot.lane.b32.xlu0 %v844, 104
    %v847 = vpop.permute.xlu0 %846
    %v849 = vadd.f32 %v227, %v847
    %850 = vset.pattern.permute.xlu0 9
    %851 = vperm.xlu0 %850, %v838
    %v852 = vpop.permute.xlu0 %851
    %v854 = vmul.f32 %v852, %v233
    %856 = vrot.lane.b32.xlu0 %v854, 104
    %v857 = vpop.permute.xlu0 %856
    %v859 = vadd.f32 %v849, %v857
    %860 = vset.pattern.permute.xlu0 10
    %861 = vperm.xlu0 %860, %v838
    %v862 = vpop.permute.xlu0 %861
    %v864 = vmul.f32 %v862, %v240
    %866 = vrot.lane.b32.xlu0 %v864, 104
    %v867 = vpop.permute.xlu0 %866
    %v869 = vadd.f32 %v859, %v867
    %870 = vset.pattern.permute.xlu0 11
    %871 = vperm.xlu0 %870, %v838
    %v872 = vpop.permute.xlu0 %871
    %v874 = vmul.f32 %v872, %v247
    %876 = vrot.lane.b32.xlu0 %v874, 104
    %v877 = vpop.permute.xlu0 %876
    %v879 = vadd.f32 %v869, %v877
    %880 = vset.pattern.permute.xlu0 12
    %881 = vperm.xlu0 %880, %v838
    %v882 = vpop.permute.xlu0 %881
    %v884 = vmul.f32 %v882, %v254
    %886 = vrot.lane.b32.xlu0 %v884, 104
    %v887 = vpop.permute.xlu0 %886
    %v889 = vadd.f32 %v879, %v887
    %890 = vset.pattern.permute.xlu0 13
    %891 = vperm.xlu0 %890, %v838
    %v892 = vpop.permute.xlu0 %891
    %v894 = vmul.f32 %v892, %v261
    %896 = vrot.lane.b32.xlu0 %v894, 104
    %v897 = vpop.permute.xlu0 %896
    %v899 = vadd.f32 %v889, %v897
    %900 = vset.pattern.permute.xlu0 14
    %901 = vperm.xlu0 %900, %v838
    %v902 = vpop.permute.xlu0 %901
    %v904 = vmul.f32 %v902, %v268
    %906 = vrot.lane.b32.xlu0 %v904, 104
    %v907 = vpop.permute.xlu0 %906
    %v909 = vadd.f32 %v899, %v907
    %910 = vset.pattern.permute.xlu0 15
    %911 = vperm.xlu0 %910, %v838
    %v912 = vpop.permute.xlu0 %911
    %v914 = vmul.f32 %v912, %v275
    %916 = vrot.lane.b32.xlu0 %v914, 104
    %v917 = vpop.permute.xlu0 %916
    %v919 = vadd.f32 %v909, %v917
    %v921 = vrot.slane %v919, 6
    %v923 = vadd.f32 %v220, %v921
    %v924 = vxor.u32 %v923, 2147483648
    %v925 = vmul.f32 %v924, 1.442695
    %v926 = vpow.pop %v925
    %v927 = vadd.f32 %v926, 1.0
    %v928 = vrcp.pop %v927
    %v929 = vmul.f32 %v927, %v928
    %v930 = vsub.f32 1.0, %v929
    %v931 = vmul.f32 %v928, %v930
    %v932 = vadd.f32 %v928, %v931
    %vm933 = vweird.f32 %v927
    %vm934 = vweird.f32 %v928
    %vm935 = vmor %vm933, %vm934
    %v936 = vsel %vm935, %v928, %v932
    %v937 = vand.u32 2147483647, %v927
    %vm938 = vcmp.eq.f32.partialorder %v937, 8.507059e+37
    %v939 = vand.u32 %v927, 2147483648
    %v940 = vor.u32 1.1754944e-38, %v939
    %v941 = vsel %vm938, %v940, %v936
    %v942 = vmul.f32 1.0, %v941
    %943 = vrot.lane.b32.xlu0 %v921, 112
    %v944 = vpop.permute.xlu0 %943
    %v946 = vmul.f32 %v942, %v944
    %948 = vrot.lane.b32.xlu0 %v946, 16
    %v949 = vpop.permute.xlu0 %948
    %v951 = vadd.f32 %v220, %v949
    %v952 = vtanh.pop %v951
    %v953 = vsub.f32 1.0, %v942
    %955 = vrot.lane.b32.xlu0 %v952, 120
    %v956 = vpop.permute.xlu0 %955
    %v958 = vmul.f32 %v953, %v956
    %v959 = vrot.slane %v838, 6
    %v961 = vmul.f32 %v942, %v959
    %v962 = vadd.f32 %v958, %v961
    %964 = vset.pattern.permute.xlu0 8
    %965 = vperm.xlu0 %964, %v962
    %v966 = vpop.permute.xlu0 %965
    %v968 = vmul.f32 %v966, %v225
    %v970 = vrot.slane %v968, 2
    %971 = vrot.lane.b32.xlu0 %v970, 104
    %v972 = vpop.permute.xlu0 %971
    %v974 = vadd.f32 %v227, %v972
    %975 = vset.pattern.permute.xlu0 9
    %976 = vperm.xlu0 %975, %v962
    %v977 = vpop.permute.xlu0 %976
    %v979 = vmul.f32 %v977, %v233
    %v981 = vrot.slane %v979, 2
    %982 = vrot.lane.b32.xlu0 %v981, 104
    %v983 = vpop.permute.xlu0 %982
    %v985 = vadd.f32 %v974, %v983
    %986 = vset.pattern.permute.xlu0 10
    %987 = vperm.xlu0 %986, %v962
    %v988 = vpop.permute.xlu0 %987
    %v990 = vmul.f32 %v988, %v240
    %v992 = vrot.slane %v990, 2
    %993 = vrot.lane.b32.xlu0 %v992, 104
    %v994 = vpop.permute.xlu0 %993
    %v996 = vadd.f32 %v985, %v994
    %997 = vset.pattern.permute.xlu0 11
    %998 = vperm.xlu0 %997, %v962
    %v999 = vpop.permute.xlu0 %998
    %v1001 = vmul.f32 %v999, %v247
    %v1003 = vrot.slane %v1001, 2
    %1004 = vrot.lane.b32.xlu0 %v1003, 104
    %v1005 = vpop.permute.xlu0 %1004
    %v1007 = vadd.f32 %v996, %v1005
    %1008 = vset.pattern.permute.xlu0 12
    %1009 = vperm.xlu0 %1008, %v962
    %v1010 = vpop.permute.xlu0 %1009
    %v1012 = vmul.f32 %v1010, %v254
    %v1014 = vrot.slane %v1012, 2
    %1015 = vrot.lane.b32.xlu0 %v1014, 104
    %v1016 = vpop.permute.xlu0 %1015
    %v1018 = vadd.f32 %v1007, %v1016
    %1019 = vset.pattern.permute.xlu0 13
    %1020 = vperm.xlu0 %1019, %v962
    %v1021 = vpop.permute.xlu0 %1020
    %v1023 = vmul.f32 %v1021, %v261
    %v1025 = vrot.slane %v1023, 2
    %1026 = vrot.lane.b32.xlu0 %v1025, 104
    %v1027 = vpop.permute.xlu0 %1026
    %v1029 = vadd.f32 %v1018, %v1027
    %1030 = vset.pattern.permute.xlu0 14
    %1031 = vperm.xlu0 %1030, %v962
    %v1032 = vpop.permute.xlu0 %1031
    %v1034 = vmul.f32 %v1032, %v268
    %v1036 = vrot.slane %v1034, 2
    %1037 = vrot.lane.b32.xlu0 %v1036, 104
    %v1038 = vpop.permute.xlu0 %1037
    %v1040 = vadd.f32 %v1029, %v1038
    %1041 = vset.pattern.permute.xlu0 15
    %1042 = vperm.xlu0 %1041, %v962
    %v1043 = vpop.permute.xlu0 %1042
    %v1045 = vmul.f32 %v1043, %v275
    %v1047 = vrot.slane %v1045, 2
    %1048 = vrot.lane.b32.xlu0 %v1047, 104
    %v1049 = vpop.permute.xlu0 %1048
    %v1051 = vadd.f32 %v1040, %v1049
    %v1053 = vrot.slane %v1051, 4
    %v1055 = vadd.f32 %v220, %v1053
    %v1056 = vxor.u32 %v1055, 2147483648
    %v1057 = vmul.f32 %v1056, 1.442695
    %v1058 = vpow.pop %v1057
    %v1059 = vadd.f32 %v1058, 1.0
    %v1060 = vrcp.pop %v1059
    %v1061 = vmul.f32 %v1059, %v1060
    %v1062 = vsub.f32 1.0, %v1061
    %v1063 = vmul.f32 %v1060, %v1062
    %v1064 = vadd.f32 %v1060, %v1063
    %vm1065 = vweird.f32 %v1059
    %vm1066 = vweird.f32 %v1060
    %vm1067 = vmor %vm1065, %vm1066
    %v1068 = vsel %vm1067, %v1060, %v1064
    %v1069 = vand.u32 2147483647, %v1059
    %vm1070 = vcmp.eq.f32.partialorder %v1069, 8.507059e+37
    %v1071 = vand.u32 %v1059, 2147483648
    %v1072 = vor.u32 1.1754944e-38, %v1071
    %v1073 = vsel %vm1070, %v1072, %v1068
    %v1074 = vmul.f32 1.0, %v1073
    %1075 = vrot.lane.b32.xlu0 %v1053, 112
    %v1076 = vpop.permute.xlu0 %1075
    %v1078 = vmul.f32 %v1074, %v1076
    %1080 = vrot.lane.b32.xlu0 %v1078, 16
    %v1081 = vpop.permute.xlu0 %1080
    %v1083 = vadd.f32 %v220, %v1081
    %v1084 = vtanh.pop %v1083
    %v1085 = vsub.f32 1.0, %v1074
    %1087 = vrot.lane.b32.xlu0 %v1084, 120
    %v1088 = vpop.permute.xlu0 %1087
    %v1090 = vmul.f32 %v1085, %v1088
    %v1091 = vrot.slane %v962, 6
    %v1093 = vmul.f32 %v1074, %v1091
    %v1094 = vadd.f32 %v1090, %v1093
    %1096 = vset.pattern.permute.xlu0 8
    %1097 = vperm.xlu0 %1096, %v1094
    %v1098 = vpop.permute.xlu0 %1097
    %v1100 = vmul.f32 %v1098, %v225
    %v1102 = vrot.slane %v1100, 4
    %1103 = vrot.lane.b32.xlu0 %v1102, 104
    %v1104 = vpop.permute.xlu0 %1103
    %v1106 = vadd.f32 %v227, %v1104
    %1107 = vset.pattern.permute.xlu0 9
    %1108 = vperm.xlu0 %1107, %v1094
    %v1109 = vpop.permute.xlu0 %1108
    %v1111 = vmul.f32 %v1109, %v233
    %v1113 = vrot.slane %v1111, 4
    %1114 = vrot.lane.b32.xlu0 %v1113, 104
    %v1115 = vpop.permute.xlu0 %1114
    %v1117 = vadd.f32 %v1106, %v1115
    %1118 = vset.pattern.permute.xlu0 10
    %1119 = vperm.xlu0 %1118, %v1094
    %v1120 = vpop.permute.xlu0 %1119
    %v1122 = vmul.f32 %v1120, %v240
    %v1124 = vrot.slane %v1122, 4
    %1125 = vrot.lane.b32.xlu0 %v1124, 104
    %v1126 = vpop.permute.xlu0 %1125
    %v1128 = vadd.f32 %v1117, %v1126
    %1129 = vset.pattern.permute.xlu0 11
    %1130 = vperm.xlu0 %1129, %v1094
    %v1131 = vpop.permute.xlu0 %1130
    %v1133 = vmul.f32 %v1131, %v247
    %v1135 = vrot.slane %v1133, 4
    %1136 = vrot.lane.b32.xlu0 %v1135, 104
    %v1137 = vpop.permute.xlu0 %1136
    %v1139 = vadd.f32 %v1128, %v1137
    %1140 = vset.pattern.permute.xlu0 12
    %1141 = vperm.xlu0 %1140, %v1094
    %v1142 = vpop.permute.xlu0 %1141
    %v1144 = vmul.f32 %v1142, %v254
    %v1146 = vrot.slane %v1144, 4
    %1147 = vrot.lane.b32.xlu0 %v1146, 104
    %v1148 = vpop.permute.xlu0 %1147
    %v1150 = vadd.f32 %v1139, %v1148
    %1151 = vset.pattern.permute.xlu0 13
    %1152 = vperm.xlu0 %1151, %v1094
    %v1153 = vpop.permute.xlu0 %1152
    %v1155 = vmul.f32 %v1153, %v261
    %v1157 = vrot.slane %v1155, 4
    %1158 = vrot.lane.b32.xlu0 %v1157, 104
    %v1159 = vpop.permute.xlu0 %1158
    %v1161 = vadd.f32 %v1150, %v1159
    %1162 = vset.pattern.permute.xlu0 14
    %1163 = vperm.xlu0 %1162, %v1094
    %v1164 = vpop.permute.xlu0 %1163
    %v1166 = vmul.f32 %v1164, %v268
    %v1168 = vrot.slane %v1166, 4
    %1169 = vrot.lane.b32.xlu0 %v1168, 104
    %v1170 = vpop.permute.xlu0 %1169
    %v1172 = vadd.f32 %v1161, %v1170
    %1173 = vset.pattern.permute.xlu0 15
    %1174 = vperm.xlu0 %1173, %v1094
    %v1175 = vpop.permute.xlu0 %1174
    %v1177 = vmul.f32 %v1175, %v275
    %v1179 = vrot.slane %v1177, 4
    %1180 = vrot.lane.b32.xlu0 %v1179, 104
    %v1181 = vpop.permute.xlu0 %1180
    %v1183 = vadd.f32 %v1172, %v1181
    %v1185 = vrot.slane %v1183, 2
    %v1187 = vadd.f32 %v220, %v1185
    %v1188 = vxor.u32 %v1187, 2147483648
    %v1189 = vmul.f32 %v1188, 1.442695
    %v1190 = vpow.pop %v1189
    %v1191 = vadd.f32 %v1190, 1.0
    %v1192 = vrcp.pop %v1191
    %v1193 = vmul.f32 %v1191, %v1192
    %v1194 = vsub.f32 1.0, %v1193
    %v1195 = vmul.f32 %v1192, %v1194
    %v1196 = vadd.f32 %v1192, %v1195
    %vm1197 = vweird.f32 %v1191
    %vm1198 = vweird.f32 %v1192
    %vm1199 = vmor %vm1197, %vm1198
    %v1200 = vsel %vm1199, %v1192, %v1196
    %v1201 = vand.u32 2147483647, %v1191
    %vm1202 = vcmp.eq.f32.partialorder %v1201, 8.507059e+37
    %v1203 = vand.u32 %v1191, 2147483648
    %v1204 = vor.u32 1.1754944e-38, %v1203
    %v1205 = vsel %vm1202, %v1204, %v1200
    %v1206 = vmul.f32 1.0, %v1205
    %1207 = vrot.lane.b32.xlu0 %v1185, 112
    %v1208 = vpop.permute.xlu0 %1207
    %v1210 = vmul.f32 %v1206, %v1208
    %1212 = vrot.lane.b32.xlu0 %v1210, 16
    %v1213 = vpop.permute.xlu0 %1212
    %v1215 = vadd.f32 %v220, %v1213
    %v1216 = vtanh.pop %v1215
    %v1217 = vsub.f32 1.0, %v1206
    %1219 = vrot.lane.b32.xlu0 %v1216, 120
    %v1220 = vpop.permute.xlu0 %1219
    %v1222 = vmul.f32 %v1217, %v1220
    %v1223 = vrot.slane %v1094, 6
    %v1225 = vmul.f32 %v1206, %v1223
    %v1226 = vadd.f32 %v1222, %v1225
    %1228 = vset.pattern.permute.xlu0 8
    %1229 = vperm.xlu0 %1228, %v1226
    %v1230 = vpop.permute.xlu0 %1229
    %v1232 = vmul.f32 %v1230, %v225
    %v1234 = vrot.slane %v1232, 6
    %1235 = vrot.lane.b32.xlu0 %v1234, 104
    %v1236 = vpop.permute.xlu0 %1235
    %v1238 = vadd.f32 %v227, %v1236
    %1239 = vset.pattern.permute.xlu0 9
    %1240 = vperm.xlu0 %1239, %v1226
    %v1241 = vpop.permute.xlu0 %1240
    %v1243 = vmul.f32 %v1241, %v233
    %v1245 = vrot.slane %v1243, 6
    %1246 = vrot.lane.b32.xlu0 %v1245, 104
    %v1247 = vpop.permute.xlu0 %1246
    %v1249 = vadd.f32 %v1238, %v1247
    %1250 = vset.pattern.permute.xlu0 10
    %1251 = vperm.xlu0 %1250, %v1226
    %v1252 = vpop.permute.xlu0 %1251
    %v1254 = vmul.f32 %v1252, %v240
    %v1256 = vrot.slane %v1254, 6
    %1257 = vrot.lane.b32.xlu0 %v1256, 104
    %v1258 = vpop.permute.xlu0 %1257
    %v1260 = vadd.f32 %v1249, %v1258
    %1261 = vset.pattern.permute.xlu0 11
    %1262 = vperm.xlu0 %1261, %v1226
    %v1263 = vpop.permute.xlu0 %1262
    %v1265 = vmul.f32 %v1263, %v247
    %v1267 = vrot.slane %v1265, 6
    %1268 = vrot.lane.b32.xlu0 %v1267, 104
    %v1269 = vpop.permute.xlu0 %1268
    %v1271 = vadd.f32 %v1260, %v1269
    %1272 = vset.pattern.permute.xlu0 12
    %1273 = vperm.xlu0 %1272, %v1226
    %v1274 = vpop.permute.xlu0 %1273
    %v1276 = vmul.f32 %v1274, %v254
    %v1278 = vrot.slane %v1276, 6
    %1279 = vrot.lane.b32.xlu0 %v1278, 104
    %v1280 = vpop.permute.xlu0 %1279
    %v1282 = vadd.f32 %v1271, %v1280
    %1283 = vset.pattern.permute.xlu0 13
    %1284 = vperm.xlu0 %1283, %v1226
    %v1285 = vpop.permute.xlu0 %1284
    %v1287 = vmul.f32 %v1285, %v261
    %v1289 = vrot.slane %v1287, 6
    %1290 = vrot.lane.b32.xlu0 %v1289, 104
    %v1291 = vpop.permute.xlu0 %1290
    %v1293 = vadd.f32 %v1282, %v1291
    %1294 = vset.pattern.permute.xlu0 14
    %1295 = vperm.xlu0 %1294, %v1226
    %v1296 = vpop.permute.xlu0 %1295
    %v1298 = vmul.f32 %v1296, %v268
    %v1300 = vrot.slane %v1298, 6
    %1301 = vrot.lane.b32.xlu0 %v1300, 104
    %v1302 = vpop.permute.xlu0 %1301
    %v1304 = vadd.f32 %v1293, %v1302
    %1305 = vset.pattern.permute.xlu0 15
    %1306 = vperm.xlu0 %1305, %v1226
    %v1307 = vpop.permute.xlu0 %1306
    %v1309 = vmul.f32 %v1307, %v275
    %v1311 = vrot.slane %v1309, 6
    %1312 = vrot.lane.b32.xlu0 %v1311, 104
    %v1313 = vpop.permute.xlu0 %1312
    %v1315 = vadd.f32 %v1304, %v1313
    %v1316 = vadd.f32 %v223, %v1315
    %v1317 = vxor.u32 %v1316, 2147483648
    %v1318 = vmul.f32 %v1317, 1.442695
    %v1319 = vpow.pop %v1318
    %v1320 = vadd.f32 %v1319, 1.0
    %v1321 = vrcp.pop %v1320
    %v1322 = vmul.f32 %v1320, %v1321
    %v1323 = vsub.f32 1.0, %v1322
    %v1324 = vmul.f32 %v1321, %v1323
    %v1325 = vadd.f32 %v1321, %v1324
    %vm1326 = vweird.f32 %v1320
    %vm1327 = vweird.f32 %v1321
    %vm1328 = vmor %vm1326, %vm1327
    %v1329 = vsel %vm1328, %v1321, %v1325
    %v1330 = vand.u32 2147483647, %v1320
    %vm1331 = vcmp.eq.f32.partialorder %v1330, 8.507059e+37
    %v1332 = vand.u32 %v1320, 2147483648
    %v1333 = vor.u32 1.1754944e-38, %v1332
    %v1334 = vsel %vm1331, %v1333, %v1329
    %v1335 = vmul.f32 1.0, %v1334
    %1337 = vrot.lane.b32.xlu0 %v1315, 112
    %v1338 = vpop.permute.xlu0 %1337
    %v1340 = vmul.f32 %v1335, %v1338
    %1342 = vrot.lane.b32.xlu0 %v1340, 16
    %v1343 = vpop.permute.xlu0 %1342
    %v1345 = vadd.f32 %v223, %v1343
    %v1346 = vtanh.pop %v1345
    %v1347 = vsub.f32 1.0, %v1335
    %1349 = vrot.lane.b32.xlu0 %v1346, 120
    %v1350 = vpop.permute.xlu0 %1349
    %v1352 = vmul.f32 %v1347, %v1350
    %v1353 = vrot.slane %v1226, 6
    %v1355 = vmul.f32 %v1335, %v1353
    %v1356 = vadd.f32 %v1352, %v1355
    %1358 = vset.pattern.permute.xlu0 8
    %1359 = vperm.xlu0 %1358, %v1356
    %v1360 = vpop.permute.xlu0 %1359
    %v1362 = vmul.f32 %v1360, %v225
    %1364 = vrot.lane.b32.xlu0 %v1362, 104
    %v1365 = vpop.permute.xlu0 %1364
    %v1367 = vadd.f32 %v227, %v1365
    %1368 = vset.pattern.permute.xlu0 9
    %1369 = vperm.xlu0 %1368, %v1356
    %v1370 = vpop.permute.xlu0 %1369
    %v1372 = vmul.f32 %v1370, %v233
    %1374 = vrot.lane.b32.xlu0 %v1372, 104
    %v1375 = vpop.permute.xlu0 %1374
    %v1377 = vadd.f32 %v1367, %v1375
    %1378 = vset.pattern.permute.xlu0 10
    %1379 = vperm.xlu0 %1378, %v1356
    %v1380 = vpop.permute.xlu0 %1379
    %v1382 = vmul.f32 %v1380, %v240
    %1384 = vrot.lane.b32.xlu0 %v1382, 104
    %v1385 = vpop.permute.xlu0 %1384
    %v1387 = vadd.f32 %v1377, %v1385
    %1388 = vset.pattern.permute.xlu0 11
    %1389 = vperm.xlu0 %1388, %v1356
    %v1390 = vpop.permute.xlu0 %1389
    %v1392 = vmul.f32 %v1390, %v247
    %1394 = vrot.lane.b32.xlu0 %v1392, 104
    %v1395 = vpop.permute.xlu0 %1394
    %v1397 = vadd.f32 %v1387, %v1395
    %1398 = vset.pattern.permute.xlu0 12
    %1399 = vperm.xlu0 %1398, %v1356
    %v1400 = vpop.permute.xlu0 %1399
    %v1402 = vmul.f32 %v1400, %v254
    %1404 = vrot.lane.b32.xlu0 %v1402, 104
    %v1405 = vpop.permute.xlu0 %1404
    %v1407 = vadd.f32 %v1397, %v1405
    %1408 = vset.pattern.permute.xlu0 13
    %1409 = vperm.xlu0 %1408, %v1356
    %v1410 = vpop.permute.xlu0 %1409
    %v1412 = vmul.f32 %v1410, %v261
    %1414 = vrot.lane.b32.xlu0 %v1412, 104
    %v1415 = vpop.permute.xlu0 %1414
    %v1417 = vadd.f32 %v1407, %v1415
    %1418 = vset.pattern.permute.xlu0 14
    %1419 = vperm.xlu0 %1418, %v1356
    %v1420 = vpop.permute.xlu0 %1419
    %v1422 = vmul.f32 %v1420, %v268
    %1424 = vrot.lane.b32.xlu0 %v1422, 104
    %v1425 = vpop.permute.xlu0 %1424
    %v1427 = vadd.f32 %v1417, %v1425
    %1428 = vset.pattern.permute.xlu0 15
    %1429 = vperm.xlu0 %1428, %v1356
    %v1430 = vpop.permute.xlu0 %1429
    %v1432 = vmul.f32 %v1430, %v275
    %1434 = vrot.lane.b32.xlu0 %v1432, 104
    %v1435 = vpop.permute.xlu0 %1434
    %v1437 = vadd.f32 %v1427, %v1435
    %v1439 = vrot.slane %v1437, 6
    %v1441 = vadd.f32 %v223, %v1439
    %v1442 = vxor.u32 %v1441, 2147483648
    %v1443 = vmul.f32 %v1442, 1.442695
    %v1444 = vpow.pop %v1443
    %v1445 = vadd.f32 %v1444, 1.0
    %v1446 = vrcp.pop %v1445
    %v1447 = vmul.f32 %v1445, %v1446
    %v1448 = vsub.f32 1.0, %v1447
    %v1449 = vmul.f32 %v1446, %v1448
    %v1450 = vadd.f32 %v1446, %v1449
    %vm1451 = vweird.f32 %v1445
    %vm1452 = vweird.f32 %v1446
    %vm1453 = vmor %vm1451, %vm1452
    %v1454 = vsel %vm1453, %v1446, %v1450
    %v1455 = vand.u32 2147483647, %v1445
    %vm1456 = vcmp.eq.f32.partialorder %v1455, 8.507059e+37
    %v1457 = vand.u32 %v1445, 2147483648
    %v1458 = vor.u32 1.1754944e-38, %v1457
    %v1459 = vsel %vm1456, %v1458, %v1454
    %v1460 = vmul.f32 1.0, %v1459
    %1461 = vrot.lane.b32.xlu0 %v1439, 112
    %v1462 = vpop.permute.xlu0 %1461
    %v1464 = vmul.f32 %v1460, %v1462
    %1466 = vrot.lane.b32.xlu0 %v1464, 16
    %v1467 = vpop.permute.xlu0 %1466
    %v1469 = vadd.f32 %v223, %v1467
    %v1470 = vtanh.pop %v1469
    %v1471 = vsub.f32 1.0, %v1460
    %1473 = vrot.lane.b32.xlu0 %v1470, 120
    %v1474 = vpop.permute.xlu0 %1473
    %v1476 = vmul.f32 %v1471, %v1474
    %v1477 = vrot.slane %v1356, 6
    %v1479 = vmul.f32 %v1460, %v1477
    %v1480 = vadd.f32 %v1476, %v1479
    %v1481 = vperm.slane %v188, 0
    %v1483 = vrot.slane %v1480, 2
    %1484 = vrot.lane.b32.xlu0 %v1483, 120
    %v1485 = vpop.permute.xlu0 %1484
    %1487 = vrot.lane.b32.xlu0 %v185, 80
    %v1488 = vpop.permute.xlu0 %1487
    %v1490 = vsel %vm61, %v1485, 0
    %1492 = vmatpush.msra.mxu0 0.0
    %1493 = vmatpush.msra.mxu0 0.0
    %1494 = vmatpush.msra.mxu0 0.0
    %1495 = vmatpush.msra.mxu0 0.0
    %1496 = vmatpush.msra.mxu0 0.0
    %1497 = vmatpush.msra.mxu0 0.0
    %1498 = vmatpush.msra.mxu0 0.0
    %1499 = vmatpush.msra.mxu0 0.0
    %1500 = vmatpush.msra.mxu0 0.0
    %1501 = vmatpush.msra.mxu0 0.0
    %1502 = vmatpush.msra.mxu0 0.0
    %1503 = vmatpush.msra.mxu0 0.0
    %1504 = vmatpush.msra.mxu0 0.0
    %1505 = vmatpush.msra.mxu0 0.0
    %1506 = vmatpush.msra.mxu0 0.0
    %1507 = vmatpush.msra.mxu0 %v1488
    %1508 = vmatmul.f32.gmra.mxu0 %v1490
    %v1509 = vpop.f32.mrf.mxu0
    %v1510 = vadd.f32 %v1481, %v1509
    %1511 = vdwg.mxu0
    %vm1512 = vcmask 254976
    %1513 = vst.msk [vmem:[#allocation2] sm:$0x3] %vm1512, %v1510
    // Predicated region
    $region14: #{deep_augmented_music_forward.2} parent=1 // pred_check
      _
    $region15: #{deep_augmented_music_forward.2} parent=1 // pred_check_branch
      %1515 = sbr.rel (0) target = $region17
    $region16: #{deep_augmented_music_forward.2} parent=1 // pred_region
      %1517 = vsyncadd [#allocation3], 0
      %s1519 = sshll.u32 [#allocation2], 4
      %s1520 = int_to_ptr.vmem [resolvable:$true] %s1519
      %s1521 = sshll.u32 %s3, 4
      %s1522 = int_to_ptr.hbm [resolvable:$true] %s1521
      %1524 = dma.vmem_to_hbm [thread:$0]  %s1520, 32, %s1522, [#allocation3]
    $region17: #{deep_augmented_music_forward.2} parent=1 // pred_fallthru
      _
    // Predicated region
    $region18: #{deep_augmented_music_forward.2} parent=1 // pred_check
      _
    $region19: #{deep_augmented_music_forward.2} parent=1 // pred_check_branch
      %1526 = sbr.rel (0) target = $region21
    $region20: #{deep_augmented_music_forward.2} parent=1 // pred_region
      %1528 = dma.done [#allocation3], 32
    $region21: #{deep_augmented_music_forward.2} parent=1 // pred_fallthru
      _
    %1529 = vsyncpa [#allocation3], 1

</llo_original>
